<compile_context>
chip_gen: v6e
topology: v6e:2x2x1
jax: 0.10.0
libtpu: 0.0.40
codegen_flags: <defaults>
</compile_context>

<pallas_src>
import numpy as np
import jax
import jax.numpy as jnp
from jax.experimental import pallas as pl
from jax.experimental.pallas import tpu as pltpu

# ----------------------------- problem sizes -------------------------------
N, CIN, D, H, W = 2, 1, 4, 16, 16          # input (N, 1, D, H, W)
C1, C2 = 8, 16                             # conv channel counts
HH, WW = H // 2, W // 2                    # 8, 8 after MaxPool3d((1,2,2))
OUT = 5                                    # AdaptiveAvgPool3d -> (1, 5, 5)
EPS = 1e-5
LANES = 128

WPAD1 = 24                                 # padded input width (W+2 -> mult of 8)
NTAP = 9                                   # number of (kd, kh) taps
K1 = 256                                   # im2col K: 9*24 = 216 + bias col + pad
BIAS_COL = NTAP * WPAD1                    # 216

HP2 = HH + 2                               # 10  h rows (incl. padding) per d slab
DP2 = D + 2                                # 6   d slabs (incl. padding)
RPB = DP2 * HP2                            # 60  stage-2 rows per batch element
HALF = 128                                 # rows per h-parity half (>= N*RPB = 120)
XR = 2 * HALF                              # 256 conv1 / im2col rows
M2 = 104                                   # conv2 output rows (>= 98, mult of 8)

# stage-1 lane order: lane = (w % 2)*64 + (w // 2)*8 + c1, so every MaxPool
# w-pair sits exactly 64 lanes apart (roll(64) is direction-proof) and the
# pooled value lands densely at lane (w//2)*8 + c1.
W_PERM = list(range(0, W, 2)) + list(range(1, W, 2))


def _ceil_div(a, b):
    return -(-a // b)


def _adaptive_windows(in_size, out_size):
    # PyTorch AdaptiveAvgPool: start = floor(i*in/out), end = ceil((i+1)*in/out)
    return [((i * in_size) // out_size, _ceil_div((i + 1) * in_size, out_size))
            for i in range(out_size)]


# ------------------------- in-kernel math helpers ---------------------------
def _gelu(x):
    # tanh-form GELU (runs on the EUP slot); |err| vs exact erf GELU < ~3e-3,
    # well inside the test tolerance.
    c = 0.7978845608028654
    return 0.5 * x * (1.0 + jnp.tanh(c * (x + 0.044715 * x * x * x)))


# --------------------------------- kernel -----------------------------------
def fused_kernel(x_ref, b1_ref, b2_ref, bias2_ref, ph_ref, pw_ref, o_ref):
    # x_ref:    (256, 256) bf16  im2col slab (both batch elements; even-h rows
    #                            in [0,128), odd-h rows in [128,256); col 216=1)
    # b1_ref:   (256, 128) bf16  banded conv1 weights, BN + bias folded in
    # b2_ref:   (9, 128, 128) bf16  per-(kd,kh) banded conv2 weights (BN folded)
    # bias2_ref:(1, 128)  f32   conv2+BN bias, tiled over lanes
    # ph_ref:   (16, 104) bf16  row-side (d & adaptive-h) average-pool matrix
    # pw_ref:   (128, 128) bf16 lane-side (adaptive-w) average-pool matrix
    # o_ref:    (16, 128) f32   output tile: row = n*8 + i, lane = j*16 + c2

    # ---- conv3d_1 + BN + bias + GELU : one MXU matmul -----------------------
    g1 = _gelu(jnp.dot(x_ref[...], b1_ref[...],
                       preferred_element_type=jnp.float32))         # (256, 128)

    # ---- MaxPool3d((1,2,2)) -------------------------------------------------
    # w-pairs are exactly 64 lanes apart -> one lane roll + max (direction-proof)
    wmax = jnp.maximum(g1, pltpu.roll(g1, shift=LANES // 2, axis=1))  # (256, 128)
    # h-pairs are exactly 128 rows apart (even/odd halves) -> one aligned max.
    # Row n*60 + dpad*10 + hpad of hpool holds the pooled activation at
    # (n, d = dpad-1, h = hpad-1); padding rows are exactly zero (GELU(0)=0),
    # so hpool is already the zero-padded conv2 input slab.
    hpool = jnp.maximum(wmax[:HALF, :], wmax[HALF:, :])               # (128, 128)

    # ---- conv3d_2 + BN + GELU : 9 banded MXU matmuls over (kd, kh) taps -----
    acc = jnp.zeros((M2, LANES), jnp.float32)
    for kd in range(3):
        for kh in range(3):
            s = kd * HP2 + kh
            a = hpool[s:s + M2, :].astype(jnp.bfloat16)               # (104, 128)
            acc = acc + jnp.dot(a, b2_ref[kd * 3 + kh],
                                preferred_element_type=jnp.float32)
    g2 = _gelu(acc + bias2_ref[...])                                  # (104, 128)

    # ---- AdaptiveAvgPool3d((1,5,5)): row-side then lane-side averaging ------
    pooled = jnp.dot(ph_ref[...], g2.astype(jnp.bfloat16),
                     preferred_element_type=jnp.float32)              # (16, 128)
    o_ref[...] = jnp.dot(pooled.astype(jnp.bfloat16), pw_ref[...],
                         preferred_element_type=jnp.float32)


# ------------------------------ pallas wrapper -------------------------------
def _pallas_forward(X, B1, B2, bias2, PH, PW):
    return pl.pallas_call(
        fused_kernel,
        out_shape=jax.ShapeDtypeStruct((16, LANES), jnp.float32),
        grid_spec=pltpu.PrefetchScalarGridSpec(
            num_scalar_prefetch=0,
            grid=(1,),
            in_specs=[
                pl.BlockSpec((XR, K1), lambda i: (0, 0)),
                pl.BlockSpec((K1, LANES), lambda i: (0, 0)),
                pl.BlockSpec((NTAP, LANES, LANES), lambda i: (0, 0, 0)),
                pl.BlockSpec((1, LANES), lambda i: (0, 0)),
                pl.BlockSpec((16, M2), lambda i: (0, 0)),
                pl.BlockSpec((LANES, LANES), lambda i: (0, 0)),
            ],
            out_specs=pl.BlockSpec((16, LANES), lambda i: (0, 0)),
        ),
        compiler_params=pltpu.CompilerParams(
            dimension_semantics=("arbitrary",)),
    )(X, B1, B2, bias2, PH, PW)


# --------------------------------- glue -------------------------------------
def build_im2col(x):
    """(N,1,D,H,W) -> (256, 256) bf16 im2col slab with padding rows pre-baked."""
    xsq = x[:, 0]                                                     # (N,D,H,W)
    xp = jnp.pad(xsq, ((0, 0), (1, 1), (1, 1), (1, WPAD1 - W - 1)))   # (N,6,18,24)
    taps = [xp[:, kd:kd + D, kh:kh + H, :]
            for kd in range(3) for kh in range(3)]                    # 9x (N,D,H,24)
    feat = jnp.stack(taps, axis=3).reshape(N, D, H, NTAP * WPAD1)     # (N,D,H,216)
    ones = jnp.ones((N, D, H, 1), feat.dtype)                         # bias column
    feat = jnp.concatenate([feat, ones], axis=-1)                     # (N,D,H,217)
    feat = jnp.pad(feat, ((0, 0), (0, 0), (0, 0), (0, K1 - BIAS_COL - 1)))

    # destination row: (h % 2)*128 + n*60 + (d+1)*10 + (h//2 + 1)
    n_i, d_i, h_i = jnp.meshgrid(jnp.arange(N), jnp.arange(D), jnp.arange(H),
                                 indexing="ij")
    rows = (h_i % 2) * HALF + n_i * RPB + (d_i + 1) * HP2 + (h_i // 2 + 1)
    X = jnp.zeros((XR, K1), feat.dtype).at[rows.reshape(-1)].set(
        feat.reshape(-1, K1))
    return X.astype(jnp.bfloat16)


def fold_and_pack(p):
    """Fold eval-mode BN into conv weights; pack banded bf16 weight matrices."""
    hi = jax.lax.Precision.HIGHEST
    s1 = p["g1"] / jnp.sqrt(p["rv1"] + EPS)
    w1f = p["w1"] * s1[:, None, None, None, None]          # (C1, 1, 3, 3, 3)
    b1f = p["b1"] * s1 + p["be1"] - p["rm1"] * s1
    s2 = p["g2"] / jnp.sqrt(p["rv2"] + EPS)
    w2f = p["w2"] * s2[:, None, None, None, None]          # (C2, C1, 3, 3, 3)
    b2f = p["b2"] * s2 + p["be2"] - p["rm2"] * s2

    # conv1: B1[t*24 + wp, lane(w,c1)] = w1f[c1, 0, kd, kh, wp - w]
    m1 = np.zeros((3, WPAD1, W), np.float32)
    for kw in range(3):
        for w in range(W):
            m1[kw, w + kw, w] = 1.0
    m1 = jnp.asarray(m1)
    perm = jnp.asarray(W_PERM)
    blocks = []
    for kd in range(3):
        for kh in range(3):
            t = jnp.einsum("kpw,ck->pwc", m1, w1f[:, 0, kd, kh, :], precision=hi)
            t = t[:, perm, :].reshape(WPAD1, W * C1)         # (24, 128)
            blocks.append(t)
    bias_row = jnp.tile(b1f, W).reshape(1, W * C1)           # lane % 8 == c1
    B1 = jnp.concatenate(
        blocks + [bias_row, jnp.zeros((K1 - BIAS_COL - 1, W * C1), jnp.float32)],
        axis=0)                                              # (256, 128)

    # conv2: B2[t][wi*8 + c1, wo*16 + c2] = w2f[c2, c1, kd, kh, wi - wo + 1]
    # rows [64, 128) are zero (they face the duplicated half of the pooled slab)
    m2 = np.zeros((3, WW, WW), np.float32)
    for kw in range(3):
        for wo in range(WW):
            wi = wo + kw - 1
            if 0 <= wi < WW:
                m2[kw, wi, wo] = 1.0
    m2 = jnp.asarray(m2)
    b2_list = []
    for kd in range(3):
        for kh in range(3):
            t = jnp.einsum("kio,cjk->ijoc", m2, w2f[:, :, kd, kh, :], precision=hi)
            t = t.reshape(WW * C1, WW * C2)                  # (64, 128)
            b2_list.append(jnp.pad(t, ((0, LANES - WW * C1), (0, 0))))
    B2 = jnp.stack(b2_list)                                  # (9, 128, 128)
    bias2 = jnp.tile(b2f, WW).reshape(1, WW * C2)            # lane % 16 == c2 (f32)

    return B1.astype(jnp.bfloat16), B2.astype(jnp.bfloat16), bias2


def make_pool_mats():
    """Parameter-independent adaptive-avg-pool matrices (trace-time numpy)."""
    hwin = _adaptive_windows(HH, OUT)
    wwin = _adaptive_windows(WW, OUT)
    ph = np.zeros((16, M2), np.float32)
    for n in range(N):
        for i, (hs, he) in enumerate(hwin):
            for d in range(D):
                for h in range(hs, he):
                    ph[n * 8 + i, n * RPB + d * HP2 + h] = 1.0 / (D * (he - hs))
    pw = np.zeros((LANES, LANES), np.float32)
    for j, (ws, we) in enumerate(wwin):
        for w in range(ws, we):
            for c in range(C2):
                pw[w * C2 + c, j * C2 + c] = 1.0 / (we - ws)
    return jnp.asarray(ph, jnp.bfloat16), jnp.asarray(pw, jnp.bfloat16)


def spatial_stream_forward(x, params):
    B1, B2, bias2 = fold_and_pack(params)
    PH, PW = make_pool_mats()
    X = build_im2col(x)
    y = _pallas_forward(X, B1, B2, bias2, PH, PW)            # (16, 128)
    y = y.reshape(N, 8, WW, C2)[:, :OUT, :OUT, :]            # (N, 5, 5, 16)
    return jnp.transpose(y, (0, 3, 1, 2))                    # (N, 16, 5, 5)


# --------------------------- parameters (synthetic) --------------------------
def make_params(key):
    ks = jax.random.split(key, 12)
    return {
        "w1": 0.25 * jax.random.normal(ks[0], (C1, CIN, 3, 3, 3), jnp.float32),
        "b1": 0.10 * jax.random.normal(ks[1], (C1,), jnp.float32),
        "w2": 0.10 * jax.random.normal(ks[2], (C2, C1, 3, 3, 3), jnp.float32),
        "b2": 0.10 * jax.random.normal(ks[3], (C2,), jnp.float32),
        "g1": 1.0 + 0.1 * jax.random.normal(ks[4], (C1,), jnp.float32),
        "be1": 0.05 * jax.random.normal(ks[5], (C1,), jnp.float32),
        "rm1": 0.10 * jax.random.normal(ks[6], (C1,), jnp.float32),
        "rv1": 0.9 + 0.2 * jax.random.uniform(ks[7], (C1,), jnp.float32),
        "g2": 1.0 + 0.1 * jax.random.normal(ks[8], (C2,), jnp.float32),
        "be2": 0.05 * jax.random.normal(ks[9], (C2,), jnp.float32),
        "rm2": 0.10 * jax.random.normal(ks[10], (C2,), jnp.float32),
        "rv2": 0.9 + 0.2 * jax.random.uniform(ks[11], (C2,), jnp.float32),
    }


# ------------------------------ pure-JAX reference ---------------------------
def _ref_conv3d(x, w, b):
    n, c, d, h, ww_ = x.shape
    xp = jnp.pad(x, ((0, 0), (0, 0), (1, 1), (1, 1), (1, 1)))
    out = jnp.zeros((n, w.shape[0], d, h, ww_), jnp.float32)
    for kd in range(3):
        for kh in range(3):
            for kw in range(3):
                out = out + jnp.einsum(
                    "ncdhw,oc->nodhw",
                    xp[:, :, kd:kd + d, kh:kh + h, kw:kw + ww_],
                    w[:, :, kd, kh, kw],
                    precision=jax.lax.Precision.HIGHEST)
    return out + b.reshape(1, -1, 1, 1, 1)


def _ref_bn(x, g, be, rm, rv):
    sc = (g / jnp.sqrt(rv + EPS)).reshape(1, -1, 1, 1, 1)
    return (x - rm.reshape(1, -1, 1, 1, 1)) * sc + be.reshape(1, -1, 1, 1, 1)


def reference_forward(x, p):
    y = jax.nn.gelu(_ref_bn(_ref_conv3d(x, p["w1"], p["b1"]),
                            p["g1"], p["be1"], p["rm1"], p["rv1"]),
                    approximate=False)
    y = jnp.maximum(jnp.maximum(y[:, :, :, 0::2, 0::2], y[:, :, :, 0::2, 1::2]),
                    jnp.maximum(y[:, :, :, 1::2, 0::2], y[:, :, :, 1::2, 1::2]))
    y = jax.nn.gelu(_ref_bn(_ref_conv3d(y, p["w2"], p["b2"]),
                            p["g2"], p["be2"], p["rm2"], p["rv2"]),
                    approximate=False)
    y = jnp.mean(y, axis=2)                                  # (N, C2, HH, WW)
    hwin = _adaptive_windows(HH, OUT)
    wwin = _adaptive_windows(WW, OUT)
    rows = []
    for hs, he in hwin:
        cols = [jnp.mean(y[:, :, hs:he, ws:we], axis=(2, 3)) for ws, we in wwin]
        rows.append(jnp.stack(cols, axis=-1))
    return jnp.stack(rows, axis=-2)                          # (N, C2, 5, 5)


# ----------------------------------- main ------------------------------------
if __name__ == "__main__":
    key = jax.random.PRNGKey(0)
    kx, kp = jax.random.split(key)
    x = jax.random.normal(kx, (N, CIN, D, H, W), jnp.float32)
    params = make_params(kp)

    fwd = jax.jit(spatial_stream_forward)
    out = jax.block_until_ready(fwd(x, params))

    assert out.shape == (N, C2, OUT, OUT), out.shape
    ref = reference_forward(x, params)
    max_err = float(jnp.max(jnp.abs(out - ref)))
    assert jnp.allclose(out, ref, atol=2e-2, rtol=2e-2), max_err

    print("KERNEL_OK")
</pallas_src>

<mosaic_0001>
module attributes {stable_mosaic.version = 11 : i64} {
  func.func @fused_kernel(%arg0: i32, %arg1: memref<256x256xbf16, #tpu.memory_space<vmem>>, %arg2: memref<256x128xbf16, #tpu.memory_space<vmem>>, %arg3: memref<9x128x128xbf16, #tpu.memory_space<vmem>>, %arg4: memref<1x128xf32, #tpu.memory_space<vmem>>, %arg5: memref<16x104xbf16, #tpu.memory_space<vmem>>, %arg6: memref<128x128xbf16, #tpu.memory_space<vmem>>, %arg7: memref<16x128xf32, #tpu.memory_space<vmem>>) attributes {dimension_semantics = [#tpu.dimension_semantics<arbitrary>], iteration_bounds = array<i64: 1>, scalar_prefetch = 0 : i64, scratch_operands = 0 : i64, tpu.core_type = #tpu.core_type<tc>, window_params = [{pipeline_mode = #tpu.pipeline_mode<synchronous>, transform_indices = @transform_0, window_bounds = array<i64: 256, 256>}, {pipeline_mode = #tpu.pipeline_mode<synchronous>, transform_indices = @transform_1, window_bounds = array<i64: 256, 128>}, {pipeline_mode = #tpu.pipeline_mode<synchronous>, transform_indices = @transform_2, window_bounds = array<i64: 9, 128, 128>}, {pipeline_mode = #tpu.pipeline_mode<synchronous>, transform_indices = @transform_3, window_bounds = array<i64: 1, 128>}, {pipeline_mode = #tpu.pipeline_mode<synchronous>, transform_indices = @transform_4, window_bounds = array<i64: 16, 104>}, {pipeline_mode = #tpu.pipeline_mode<synchronous>, transform_indices = @transform_5, window_bounds = array<i64: 128, 128>}, {pipeline_mode = #tpu.pipeline_mode<synchronous>, transform_indices = @transform_6, window_bounds = array<i64: 16, 128>}]} {
    %c0 = arith.constant 0 : index
    %c0_0 = arith.constant 0 : index
    %0 = vector.load %arg1[%c0, %c0_0] : memref<256x256xbf16, #tpu.memory_space<vmem>>, vector<256x256xbf16>
    %c0_1 = arith.constant 0 : index
    %c0_2 = arith.constant 0 : index
    %1 = vector.load %arg2[%c0_1, %c0_2] : memref<256x128xbf16, #tpu.memory_space<vmem>>, vector<256x128xbf16>
    %cst = arith.constant dense<0.000000e+00> : vector<256x128xf32>
    %2 = tpu.matmul %0, %1, %cst {dimension_numbers = #tpu.dot_dimension_numbers<[1], [0], [0], [1], [0, 0, 1, 1], [], []>} : vector<256x256xbf16>, vector<256x128xbf16>, vector<256x128xf32> -> vector<256x128xf32>
    %cst_3 = arith.constant 5.000000e-01 : f32
    %3 = vector.broadcast %cst_3 : f32 to vector<256x128xf32>
    %4 = arith.mulf %3, %2 : vector<256x128xf32>
    %cst_4 = arith.constant 4.471500e-02 : f32
    %5 = vector.broadcast %cst_4 : f32 to vector<256x128xf32>
    %6 = arith.mulf %5, %2 : vector<256x128xf32>
    %7 = arith.mulf %6, %2 : vector<256x128xf32>
    %8 = arith.mulf %7, %2 : vector<256x128xf32>
    %9 = arith.addf %2, %8 : vector<256x128xf32>
    %cst_5 = arith.constant 0.797884583 : f32
    %10 = vector.broadcast %cst_5 : f32 to vector<256x128xf32>
    %11 = arith.mulf %10, %9 : vector<256x128xf32>
    %12 = math.tanh %11 : vector<256x128xf32>
    %cst_6 = arith.constant 1.000000e+00 : f32
    %13 = vector.broadcast %cst_6 : f32 to vector<256x128xf32>
    %14 = arith.addf %13, %12 : vector<256x128xf32>
    %15 = arith.mulf %4, %14 : vector<256x128xf32>
    %c64_i32 = arith.constant 64 : i32
    %16 = tpu.dynamic_rotate %15 by %c64_i32 dim 1 : vector<256x128xf32>, i32 -> vector<256x128xf32>
    %17 = arith.maximumf %15, %16 : vector<256x128xf32>
    %18 = vector.extract_strided_slice %17 {offsets = [0, 0], sizes = [128, 128], strides = [1, 1]} : vector<256x128xf32> to vector<128x128xf32>
    %19 = vector.extract_strided_slice %17 {offsets = [128, 0], sizes = [128, 128], strides = [1, 1]} : vector<256x128xf32> to vector<128x128xf32>
    %20 = arith.maximumf %18, %19 : vector<128x128xf32>
    %cst_7 = arith.constant 0.000000e+00 : f32
    %21 = vector.broadcast %cst_7 : f32 to vector<104x128xf32>
    %22 = vector.extract_strided_slice %20 {offsets = [0, 0], sizes = [104, 128], strides = [1, 1]} : vector<128x128xf32> to vector<104x128xf32>
    %23 = arith.truncf %22 : vector<104x128xf32> to vector<104x128xbf16>
    %c0_8 = arith.constant 0 : index
    %c0_9 = arith.constant 0 : index
    %c0_10 = arith.constant 0 : index
    %24 = vector.load %arg3[%c0_8, %c0_9, %c0_10] : memref<9x128x128xbf16, #tpu.memory_space<vmem>>, vector<1x128x128xbf16>
    %25 = vector.shape_cast %24 : vector<1x128x128xbf16> to vector<128x128xbf16>
    %cst_11 = arith.constant dense<0.000000e+00> : vector<104x128xf32>
    %26 = tpu.matmul %23, %25, %cst_11 {dimension_numbers = #tpu.dot_dimension_numbers<[1], [0], [0], [1], [0, 0, 1, 1], [], []>} : vector<104x128xbf16>, vector<128x128xbf16>, vector<104x128xf32> -> vector<104x128xf32>
    %27 = arith.addf %21, %26 : vector<104x128xf32>
    %28 = vector.extract_strided_slice %20 {offsets = [1, 0], sizes = [104, 128], strides = [1, 1]} : vector<128x128xf32> to vector<104x128xf32>
    %29 = arith.truncf %28 : vector<104x128xf32> to vector<104x128xbf16>
    %c1 = arith.constant 1 : index
    %c0_12 = arith.constant 0 : index
    %c0_13 = arith.constant 0 : index
    %30 = vector.load %arg3[%c1, %c0_12, %c0_13] : memref<9x128x128xbf16, #tpu.memory_space<vmem>>, vector<1x128x128xbf16>
    %31 = vector.shape_cast %30 : vector<1x128x128xbf16> to vector<128x128xbf16>
    %cst_14 = arith.constant dense<0.000000e+00> : vector<104x128xf32>
    %32 = tpu.matmul %29, %31, %cst_14 {dimension_numbers = #tpu.dot_dimension_numbers<[1], [0], [0], [1], [0, 0, 1, 1], [], []>} : vector<104x128xbf16>, vector<128x128xbf16>, vector<104x128xf32> -> vector<104x128xf32>
    %33 = arith.addf %27, %32 : vector<104x128xf32>
    %34 = vector.extract_strided_slice %20 {offsets = [2, 0], sizes = [104, 128], strides = [1, 1]} : vector<128x128xf32> to vector<104x128xf32>
    %35 = arith.truncf %34 : vector<104x128xf32> to vector<104x128xbf16>
    %c2 = arith.constant 2 : index
    %c0_15 = arith.constant 0 : index
    %c0_16 = arith.constant 0 : index
    %36 = vector.load %arg3[%c2, %c0_15, %c0_16] : memref<9x128x128xbf16, #tpu.memory_space<vmem>>, vector<1x128x128xbf16>
    %37 = vector.shape_cast %36 : vector<1x128x128xbf16> to vector<128x128xbf16>
    %cst_17 = arith.constant dense<0.000000e+00> : vector<104x128xf32>
    %38 = tpu.matmul %35, %37, %cst_17 {dimension_numbers = #tpu.dot_dimension_numbers<[1], [0], [0], [1], [0, 0, 1, 1], [], []>} : vector<104x128xbf16>, vector<128x128xbf16>, vector<104x128xf32> -> vector<104x128xf32>
    %39 = arith.addf %33, %38 : vector<104x128xf32>
    %40 = vector.extract_strided_slice %20 {offsets = [10, 0], sizes = [104, 128], strides = [1, 1]} : vector<128x128xf32> to vector<104x128xf32>
    %41 = arith.truncf %40 : vector<104x128xf32> to vector<104x128xbf16>
    %c3 = arith.constant 3 : index
    %c0_18 = arith.constant 0 : index
    %c0_19 = arith.constant 0 : index
    %42 = vector.load %arg3[%c3, %c0_18, %c0_19] : memref<9x128x128xbf16, #tpu.memory_space<vmem>>, vector<1x128x128xbf16>
    %43 = vector.shape_cast %42 : vector<1x128x128xbf16> to vector<128x128xbf16>
    %cst_20 = arith.constant dense<0.000000e+00> : vector<104x128xf32>
    %44 = tpu.matmul %41, %43, %cst_20 {dimension_numbers = #tpu.dot_dimension_numbers<[1], [0], [0], [1], [0, 0, 1, 1], [], []>} : vector<104x128xbf16>, vector<128x128xbf16>, vector<104x128xf32> -> vector<104x128xf32>
    %45 = arith.addf %39, %44 : vector<104x128xf32>
    %46 = vector.extract_strided_slice %20 {offsets = [11, 0], sizes = [104, 128], strides = [1, 1]} : vector<128x128xf32> to vector<104x128xf32>
    %47 = arith.truncf %46 : vector<104x128xf32> to vector<104x128xbf16>
    %c4 = arith.constant 4 : index
    %c0_21 = arith.constant 0 : index
    %c0_22 = arith.constant 0 : index
    %48 = vector.load %arg3[%c4, %c0_21, %c0_22] : memref<9x128x128xbf16, #tpu.memory_space<vmem>>, vector<1x128x128xbf16>
    %49 = vector.shape_cast %48 : vector<1x128x128xbf16> to vector<128x128xbf16>
    %cst_23 = arith.constant dense<0.000000e+00> : vector<104x128xf32>
    %50 = tpu.matmul %47, %49, %cst_23 {dimension_numbers = #tpu.dot_dimension_numbers<[1], [0], [0], [1], [0, 0, 1, 1], [], []>} : vector<104x128xbf16>, vector<128x128xbf16>, vector<104x128xf32> -> vector<104x128xf32>
    %51 = arith.addf %45, %50 : vector<104x128xf32>
    %52 = vector.extract_strided_slice %20 {offsets = [12, 0], sizes = [104, 128], strides = [1, 1]} : vector<128x128xf32> to vector<104x128xf32>
    %53 = arith.truncf %52 : vector<104x128xf32> to vector<104x128xbf16>
    %c5 = arith.constant 5 : index
    %c0_24 = arith.constant 0 : index
    %c0_25 = arith.constant 0 : index
    %54 = vector.load %arg3[%c5, %c0_24, %c0_25] : memref<9x128x128xbf16, #tpu.memory_space<vmem>>, vector<1x128x128xbf16>
    %55 = vector.shape_cast %54 : vector<1x128x128xbf16> to vector<128x128xbf16>
    %cst_26 = arith.constant dense<0.000000e+00> : vector<104x128xf32>
    %56 = tpu.matmul %53, %55, %cst_26 {dimension_numbers = #tpu.dot_dimension_numbers<[1], [0], [0], [1], [0, 0, 1, 1], [], []>} : vector<104x128xbf16>, vector<128x128xbf16>, vector<104x128xf32> -> vector<104x128xf32>
    %57 = arith.addf %51, %56 : vector<104x128xf32>
    %58 = vector.extract_strided_slice %20 {offsets = [20, 0], sizes = [104, 128], strides = [1, 1]} : vector<128x128xf32> to vector<104x128xf32>
    %59 = arith.truncf %58 : vector<104x128xf32> to vector<104x128xbf16>
    %c6 = arith.constant 6 : index
    %c0_27 = arith.constant 0 : index
    %c0_28 = arith.constant 0 : index
    %60 = vector.load %arg3[%c6, %c0_27, %c0_28] : memref<9x128x128xbf16, #tpu.memory_space<vmem>>, vector<1x128x128xbf16>
    %61 = vector.shape_cast %60 : vector<1x128x128xbf16> to vector<128x128xbf16>
    %cst_29 = arith.constant dense<0.000000e+00> : vector<104x128xf32>
    %62 = tpu.matmul %59, %61, %cst_29 {dimension_numbers = #tpu.dot_dimension_numbers<[1], [0], [0], [1], [0, 0, 1, 1], [], []>} : vector<104x128xbf16>, vector<128x128xbf16>, vector<104x128xf32> -> vector<104x128xf32>
    %63 = arith.addf %57, %62 : vector<104x128xf32>
    %64 = vector.extract_strided_slice %20 {offsets = [21, 0], sizes = [104, 128], strides = [1, 1]} : vector<128x128xf32> to vector<104x128xf32>
    %65 = arith.truncf %64 : vector<104x128xf32> to vector<104x128xbf16>
    %c7 = arith.constant 7 : index
    %c0_30 = arith.constant 0 : index
    %c0_31 = arith.constant 0 : index
    %66 = vector.load %arg3[%c7, %c0_30, %c0_31] : memref<9x128x128xbf16, #tpu.memory_space<vmem>>, vector<1x128x128xbf16>
    %67 = vector.shape_cast %66 : vector<1x128x128xbf16> to vector<128x128xbf16>
    %cst_32 = arith.constant dense<0.000000e+00> : vector<104x128xf32>
    %68 = tpu.matmul %65, %67, %cst_32 {dimension_numbers = #tpu.dot_dimension_numbers<[1], [0], [0], [1], [0, 0, 1, 1], [], []>} : vector<104x128xbf16>, vector<128x128xbf16>, vector<104x128xf32> -> vector<104x128xf32>
    %69 = arith.addf %63, %68 : vector<104x128xf32>
    %70 = vector.extract_strided_slice %20 {offsets = [22, 0], sizes = [104, 128], strides = [1, 1]} : vector<128x128xf32> to vector<104x128xf32>
    %71 = arith.truncf %70 : vector<104x128xf32> to vector<104x128xbf16>
    %c8 = arith.constant 8 : index
    %c0_33 = arith.constant 0 : index
    %c0_34 = arith.constant 0 : index
    %72 = vector.load %arg3[%c8, %c0_33, %c0_34] : memref<9x128x128xbf16, #tpu.memory_space<vmem>>, vector<1x128x128xbf16>
    %73 = vector.shape_cast %72 : vector<1x128x128xbf16> to vector<128x128xbf16>
    %cst_35 = arith.constant dense<0.000000e+00> : vector<104x128xf32>
    %74 = tpu.matmul %71, %73, %cst_35 {dimension_numbers = #tpu.dot_dimension_numbers<[1], [0], [0], [1], [0, 0, 1, 1], [], []>} : vector<104x128xbf16>, vector<128x128xbf16>, vector<104x128xf32> -> vector<104x128xf32>
    %75 = arith.addf %69, %74 : vector<104x128xf32>
    %c0_36 = arith.constant 0 : index
    %c0_37 = arith.constant 0 : index
    %76 = vector.load %arg4[%c0_36, %c0_37] : memref<1x128xf32, #tpu.memory_space<vmem>>, vector<1x128xf32>
    %77 = vector.broadcast %76 : vector<1x128xf32> to vector<104x128xf32>
    %78 = arith.addf %75, %77 : vector<104x128xf32>
    %cst_38 = arith.constant 5.000000e-01 : f32
    %79 = vector.broadcast %cst_38 : f32 to vector<104x128xf32>
    %80 = arith.mulf %79, %78 : vector<104x128xf32>
    %cst_39 = arith.constant 4.471500e-02 : f32
    %81 = vector.broadcast %cst_39 : f32 to vector<104x128xf32>
    %82 = arith.mulf %81, %78 : vector<104x128xf32>
    %83 = arith.mulf %82, %78 : vector<104x128xf32>
    %84 = arith.mulf %83, %78 : vector<104x128xf32>
    %85 = arith.addf %78, %84 : vector<104x128xf32>
    %cst_40 = arith.constant 0.797884583 : f32
    %86 = vector.broadcast %cst_40 : f32 to vector<104x128xf32>
    %87 = arith.mulf %86, %85 : vector<104x128xf32>
    %88 = math.tanh %87 : vector<104x128xf32>
    %cst_41 = arith.constant 1.000000e+00 : f32
    %89 = vector.broadcast %cst_41 : f32 to vector<104x128xf32>
    %90 = arith.addf %89, %88 : vector<104x128xf32>
    %91 = arith.mulf %80, %90 : vector<104x128xf32>
    %c0_42 = arith.constant 0 : index
    %c0_43 = arith.constant 0 : index
    %92 = vector.load %arg5[%c0_42, %c0_43] : memref<16x104xbf16, #tpu.memory_space<vmem>>, vector<16x104xbf16>
    %93 = arith.truncf %91 : vector<104x128xf32> to vector<104x128xbf16>
    %cst_44 = arith.constant dense<0.000000e+00> : vector<16x128xf32>
    %94 = tpu.matmul %92, %93, %cst_44 {dimension_numbers = #tpu.dot_dimension_numbers<[1], [0], [0], [1], [0, 0, 1, 1], [], []>} : vector<16x104xbf16>, vector<104x128xbf16>, vector<16x128xf32> -> vector<16x128xf32>
    %95 = arith.truncf %94 : vector<16x128xf32> to vector<16x128xbf16>
    %c0_45 = arith.constant 0 : index
    %c0_46 = arith.constant 0 : index
    %96 = vector.load %arg6[%c0_45, %c0_46] : memref<128x128xbf16, #tpu.memory_space<vmem>>, vector<128x128xbf16>
    %cst_47 = arith.constant dense<0.000000e+00> : vector<16x128xf32>
    %97 = tpu.matmul %95, %96, %cst_47 {dimension_numbers = #tpu.dot_dimension_numbers<[1], [0], [0], [1], [0, 0, 1, 1], [], []>} : vector<16x128xbf16>, vector<128x128xbf16>, vector<16x128xf32> -> vector<16x128xf32>
    %c0_48 = arith.constant 0 : index
    %c0_49 = arith.constant 0 : index
    %98 = vector.load %arg7[%c0_48, %c0_49] : memref<16x128xf32, #tpu.memory_space<vmem>>, vector<16x128xf32>
    tpu.vector_store %arg7[%c0_48, %c0_49], %97 {strides = array<i32>} : memref<16x128xf32, #tpu.memory_space<vmem>>, vector<16x128xf32>,
    return
  }
  func.func @transform_0(%arg0: i32) -> (i32, i32) {
    %c0_i32 = arith.constant 0 : i32
    %c0_i32_0 = arith.constant 0 : i32
    %c0_i32_1 = arith.constant 0 : i32
    return %c0_i32, %c0_i32_0 : i32, i32
  }
  func.func @transform_1(%arg0: i32) -> (i32, i32) {
    %c0_i32 = arith.constant 0 : i32
    %c0_i32_0 = arith.constant 0 : i32
    %c0_i32_1 = arith.constant 0 : i32
    return %c0_i32, %c0_i32_0 : i32, i32
  }
  func.func @transform_2(%arg0: i32) -> (i32, i32, i32) {
    %c0_i32 = arith.constant 0 : i32
    %c0_i32_0 = arith.constant 0 : i32
    %c0_i32_1 = arith.constant 0 : i32
    %c0_i32_2 = arith.constant 0 : i32
    return %c0_i32, %c0_i32_0, %c0_i32_1 : i32, i32, i32
  }
  func.func @transform_3(%arg0: i32) -> (i32, i32) {
    %c0_i32 = arith.constant 0 : i32
    %c0_i32_0 = arith.constant 0 : i32
    %c0_i32_1 = arith.constant 0 : i32
    return %c0_i32, %c0_i32_0 : i32, i32
  }
  func.func @transform_4(%arg0: i32) -> (i32, i32) {
    %c0_i32 = arith.constant 0 : i32
    %c0_i32_0 = arith.constant 0 : i32
    %c0_i32_1 = arith.constant 0 : i32
    return %c0_i32, %c0_i32_0 : i32, i32
  }
  func.func @transform_5(%arg0: i32) -> (i32, i32) {
    %c0_i32 = arith.constant 0 : i32
    %c0_i32_0 = arith.constant 0 : i32
    %c0_i32_1 = arith.constant 0 : i32
    return %c0_i32, %c0_i32_0 : i32, i32
  }
  func.func @transform_6(%arg0: i32) -> (i32, i32) {
    %c0_i32 = arith.constant 0 : i32
    %c0_i32_0 = arith.constant 0 : i32
    %c0_i32_1 = arith.constant 0 : i32
    return %c0_i32, %c0_i32_0 : i32, i32
  }
}

</mosaic_0001>

<llo_original>
// kernel: tile.0
$region0: #{tile.0}
  %s0 = inlined_call_operand.vmem [shape: bf16[16,8], index: 0, kind: input, shape index: {}]
  %s1 = inlined_call_operand.vmem [shape: bf16[1,128], index: 1, kind: output, shape index: {}]
  $region1: #{tile.0} parent=0
    #allocation0 [shape = 'u8[4096]{0}', space=vmem, size = 0x1000, scoped, tag = 'scoped mem for output reshape']
    #allocation1 [shape = 'u8[8192]{0}', space=vmem, size = 0x2000, scoped, tag = 'scoped mem for input reshape']
    %s3 = smul.u32 4, 2
    %s4 = sshll.u32 1, %s3
    %s5 = ssub.s32 %s4, 1
    %s6 = scalar_lea.vmem %s0, 4
    %s7 = sshrl.u32 %s5, 1
    %s8 = sor.u32 %s5, %s7
    %s9 = sand.u32 %s8, 85
    %s10 = sshrl.u32 %s9, 1
    %s11 = sor.u32 %s9, %s10
    %s12 = sand.u32 51, %s11
    %s13 = sshrl.u32 %s12, 2
    %s14 = sor.u32 %s12, %s13
    %s15 = sand.u32 15, %s14
    %v16 = vld [vmem:[%s6] sm:%s15]
    %v17 = vunpack.c.l.bf16 %v16
    %v18 = vunpack.c.h.bf16 %v16
    %s19 = scalar_lea.vmem [#allocation1], 8
    %20 = vst [vmem:[%s19] sm:%s5] %v17
    %s21 = sshrl.u32 %s5, 1
    %s22 = sor.u32 %s5, %s21
    %s23 = sand.u32 %s22, 85
    %s24 = sshrl.u32 %s23, 1
    %s25 = sor.u32 %s23, %s24
    %s26 = sand.u32 51, %s25
    %s27 = sshrl.u32 %s26, 2
    %s28 = sor.u32 %s26, %s27
    %s29 = sand.u32 15, %s28
    %v30 = vld [vmem:[%s0] sm:%s29]
    %v31 = vunpack.c.l.bf16 %v30
    %v32 = vunpack.c.h.bf16 %v30
    %33 = vst [vmem:[#allocation1] sm:%s5] %v31
    %v34 = vld [vmem:[#allocation1] sm:$0x1]
    %vm35 = vcmask 64512
    %36 = vst.msk [vmem:[#allocation0] sm:$0x1] %vm35, %v34
    %s37 = scalar_lea.vmem [#allocation1], 15
    %v38 = vld [vmem:[%s37] sm:$0x1]
    %39 = vrot.lane.b32.xlu0 %v38, 120
    %v40 = vpop.permute.xlu0 %39
    %vm41 = vcmask 1048512
    %42 = vst.msk [vmem:[#allocation0] sm:$0x1] %vm41, %v40
    %s43 = scalar_lea.vmem [#allocation1], 14
    %v44 = vld [vmem:[%s43] sm:$0x1]
    %45 = vrot.lane.b32.xlu0 %v44, 112
    %v46 = vpop.permute.xlu0 %45
    %vm47 = vcmask 982912
    %48 = vst.msk [vmem:[#allocation0] sm:$0x1] %vm47, %v46
    %s49 = scalar_lea.vmem [#allocation1], 13
    %v50 = vld [vmem:[%s49] sm:$0x1]
    %51 = vrot.lane.b32.xlu0 %v50, 104
    %v52 = vpop.permute.xlu0 %51
    %vm53 = vcmask 917312
    %54 = vst.msk [vmem:[#allocation0] sm:$0x1] %vm53, %v52
    %s55 = scalar_lea.vmem [#allocation1], 12
    %v56 = vld [vmem:[%s55] sm:$0x1]
    %57 = vrot.lane.b32.xlu0 %v56, 96
    %v58 = vpop.permute.xlu0 %57
    %vm59 = vcmask 851712
    %60 = vst.msk [vmem:[#allocation0] sm:$0x1] %vm59, %v58
    %s61 = scalar_lea.vmem [#allocation1], 11
    %v62 = vld [vmem:[%s61] sm:$0x1]
    %63 = vrot.lane.b32.xlu0 %v62, 88
    %v64 = vpop.permute.xlu0 %63
    %vm65 = vcmask 786112
    %66 = vst.msk [vmem:[#allocation0] sm:$0x1] %vm65, %v64
    %s67 = scalar_lea.vmem [#allocation1], 10
    %v68 = vld [vmem:[%s67] sm:$0x1]
    %69 = vrot.lane.b32.xlu0 %v68, 80
    %v70 = vpop.permute.xlu0 %69
    %vm71 = vcmask 720512
    %72 = vst.msk [vmem:[#allocation0] sm:$0x1] %vm71, %v70
    %s73 = scalar_lea.vmem [#allocation1], 9
    %v74 = vld [vmem:[%s73] sm:$0x1]
    %75 = vrot.lane.b32.xlu0 %v74, 72
    %v76 = vpop.permute.xlu0 %75
    %vm77 = vcmask 654912
    %78 = vst.msk [vmem:[#allocation0] sm:$0x1] %vm77, %v76
    %s79 = scalar_lea.vmem [#allocation1], 8
    %v80 = vld [vmem:[%s79] sm:$0x1]
    %81 = vrot.lane.b32.xlu0 %v80, 64
    %v82 = vpop.permute.xlu0 %81
    %vm83 = vcmask 589312
    %84 = vst.msk [vmem:[#allocation0] sm:$0x1] %vm83, %v82
    %s85 = scalar_lea.vmem [#allocation1], 7
    %v86 = vld [vmem:[%s85] sm:$0x1]
    %87 = vrot.lane.b32.xlu0 %v86, 56
    %v88 = vpop.permute.xlu0 %87
    %vm89 = vcmask 523712
    %90 = vst.msk [vmem:[#allocation0] sm:$0x1] %vm89, %v88
    %s91 = scalar_lea.vmem [#allocation1], 6
    %v92 = vld [vmem:[%s91] sm:$0x1]
    %93 = vrot.lane.b32.xlu0 %v92, 48
    %v94 = vpop.permute.xlu0 %93
    %vm95 = vcmask 458112
    %96 = vst.msk [vmem:[#allocation0] sm:$0x1] %vm95, %v94
    %s97 = scalar_lea.vmem [#allocation1], 5
    %v98 = vld [vmem:[%s97] sm:$0x1]
    %99 = vrot.lane.b32.xlu0 %v98, 40
    %v100 = vpop.permute.xlu0 %99
    %vm101 = vcmask 392512
    %102 = vst.msk [vmem:[#allocation0] sm:$0x1] %vm101, %v100
    %s103 = scalar_lea.vmem [#allocation1], 4
    %v104 = vld [vmem:[%s103] sm:$0x1]
    %105 = vrot.lane.b32.xlu0 %v104, 32
    %v106 = vpop.permute.xlu0 %105
    %vm107 = vcmask 326912
    %108 = vst.msk [vmem:[#allocation0] sm:$0x1] %vm107, %v106
    %s109 = scalar_lea.vmem [#allocation1], 3
    %v110 = vld [vmem:[%s109] sm:$0x1]
    %111 = vrot.lane.b32.xlu0 %v110, 24
    %v112 = vpop.permute.xlu0 %111
    %vm113 = vcmask 261312
    %114 = vst.msk [vmem:[#allocation0] sm:$0x1] %vm113, %v112
    %s115 = scalar_lea.vmem [#allocation1], 2
    %v116 = vld [vmem:[%s115] sm:$0x1]
    %117 = vrot.lane.b32.xlu0 %v116, 16
    %v118 = vpop.permute.xlu0 %117
    %vm119 = vcmask 195712
    %120 = vst.msk [vmem:[#allocation0] sm:$0x1] %vm119, %v118
    %s121 = scalar_lea.vmem [#allocation1], 1
    %v122 = vld [vmem:[%s121] sm:$0x1]
    %123 = vrot.lane.b32.xlu0 %v122, 8
    %v124 = vpop.permute.xlu0 %123
    %vm125 = vcmask 130112
    %126 = vst.msk [vmem:[#allocation0] sm:$0x1] %vm125, %v124
    %s128 = smul.u32 1, 2
    %s129 = sshll.u32 1, %s128
    %s130 = ssub.s32 %s129, 1
    %s131 = sshrl.u32 %s128, 1
    %v132 = vld [vmem:[#allocation0] sm:%s130]
    %v133 = vpack.c.bf16 0.0, %v132
    %s134 = sshll.u32 1, %s131
    %s135 = ssub.s32 %s134, 1
    %136 = vst [vmem:[%s1] sm:%s135] %v133

// kernel: tile.18
$region0: #{tile.18}
  #allocation0 [shape = 's32[1]{0}', space=sflag, size = 0x4, scoped, tag = 'scoped memory for tile.18']
  %s0 = inlined_call_operand.vmem [shape: f32[16], index: 0, kind: input, shape index: {}]
  %s1 = inlined_call_operand.vmem [shape: f32[8,16], index: 1, kind: output, shape index: {}]
  // Predicated region
  $region2: #{tile.18} parent=0 // pred_check
    _
  $region3: #{tile.18} parent=0 // pred_check_branch
    %3 = sbr.rel (0) target = $region5
  $region4: #{tile.18} parent=0 // pred_region
    _
  $region5: #{tile.18} parent=0 // pred_fallthru
    _
  %v4 = vld [vmem:[%s0] ss:$0 sm:$0xff]
  %5 = vst [vmem:[%s1] sm:$0xff] %v4

// kernel: tile.19
$region0: #{tile.19}
  %s0 = inlined_call_operand.vmem [shape: f32[8,16], index: 0, kind: input, shape index: {}]
  %s1 = inlined_call_operand.vmem [shape: f32[1,128], index: 1, kind: output, shape index: {}]
  $region1: #{tile.19} parent=0
    #allocation0 [shape = 'u8[4096]{0}', space=vmem, size = 0x1000, scoped, tag = 'scoped mem for output reshape']
    %v2 = vld [vmem:[%s0] sm:$0x1]
    %vm3 = vcmask 130048
    %4 = vst.msk [vmem:[#allocation0] sm:$0x1] %vm3, %v2
    %s5 = scalar_lea.vmem %s0, 7
    %v6 = vld [vmem:[%s5] sm:$0x1]
    %7 = vrot.lane.b32.xlu0 %v6, 112
    %v8 = vpop.permute.xlu0 %7
    %vm9 = vcmask 1048448
    %10 = vst.msk [vmem:[#allocation0] sm:$0x1] %vm9, %v8
    %s11 = scalar_lea.vmem %s0, 6
    %v12 = vld [vmem:[%s11] sm:$0x1]
    %13 = vrot.lane.b32.xlu0 %v12, 96
    %v14 = vpop.permute.xlu0 %13
    %vm15 = vcmask 917248
    %16 = vst.msk [vmem:[#allocation0] sm:$0x1] %vm15, %v14
    %s17 = scalar_lea.vmem %s0, 5
    %v18 = vld [vmem:[%s17] sm:$0x1]
    %19 = vrot.lane.b32.xlu0 %v18, 80
    %v20 = vpop.permute.xlu0 %19
    %vm21 = vcmask 786048
    %22 = vst.msk [vmem:[#allocation0] sm:$0x1] %vm21, %v20
    %s23 = scalar_lea.vmem %s0, 4
    %v24 = vld [vmem:[%s23] sm:$0x1]
    %25 = vrot.lane.b32.xlu0 %v24, 64
    %v26 = vpop.permute.xlu0 %25
    %vm27 = vcmask 654848
    %28 = vst.msk [vmem:[#allocation0] sm:$0x1] %vm27, %v26
    %s29 = scalar_lea.vmem %s0, 3
    %v30 = vld [vmem:[%s29] sm:$0x1]
    %31 = vrot.lane.b32.xlu0 %v30, 48
    %v32 = vpop.permute.xlu0 %31
    %vm33 = vcmask 523648
    %34 = vst.msk [vmem:[#allocation0] sm:$0x1] %vm33, %v32
    %s35 = scalar_lea.vmem %s0, 2
    %v36 = vld [vmem:[%s35] sm:$0x1]
    %37 = vrot.lane.b32.xlu0 %v36, 32
    %v38 = vpop.permute.xlu0 %37
    %vm39 = vcmask 392448
    %40 = vst.msk [vmem:[#allocation0] sm:$0x1] %vm39, %v38
    %s41 = scalar_lea.vmem %s0, 1
    %v42 = vld [vmem:[%s41] sm:$0x1]
    %43 = vrot.lane.b32.xlu0 %v42, 16
    %v44 = vpop.permute.xlu0 %43
    %vm45 = vcmask 261248
    %46 = vst.msk [vmem:[#allocation0] sm:$0x1] %vm45, %v44
    %s48 = sshll.u32 1, 1
    %s49 = ssub.s32 %s48, 1
    %v51 = vld [vmem:[#allocation0] sm:%s49]
    %s52 = sshll.u32 1, 1
    %s53 = ssub.s32 %s52, 1
    %54 = vst [vmem:[%s1] sm:%s53] %v51

// kernel: spatial_stream_forward.1
$region0: #{spatial_stream_forward.1}
  #allocation0 [shape = 'u32[]', space=smem, size = 0x4, offset = 0x4, fixed_abs, tag = 'smem constant byte address 0x4 - core index']
  #allocation1 [shape = 'u32[144,128]{1,0:T(1,128)}', space=vmem, size = 0x12000, scoped, tag = 'internal scratch']
  %s0 = inlined_call_operand.vmem [shape: bf16[256,256], index: 0, kind: input, shape index: {}]
  %s1 = inlined_call_operand.vmem [shape: bf16[256,128], index: 1, kind: input, shape index: {}]
  %s2 = inlined_call_operand.vmem [shape: bf16[9,128,128], index: 2, kind: input, shape index: {}]
  %s3 = inlined_call_operand.vmem [shape: f32[1,128], index: 3, kind: input, shape index: {}]
  %s4 = inlined_call_operand.vmem [shape: bf16[16,104], index: 4, kind: input, shape index: {}]
  %s5 = inlined_call_operand.vmem [shape: bf16[128,128], index: 5, kind: input, shape index: {}]
  %s6 = inlined_call_operand.vmem [shape: f32[16,128], index: 6, kind: output, shape index: {}]
  %s7 = sld [smem:[#allocation0]]
  $region34: #{spatial_stream_forward.1} parent=0
    _
  %s9 = ssub.s32 1, %s7
  %s10 = scalar_select 0, %s9, %s7
  // Predicated region
  $region2: #{spatial_stream_forward.1} parent=0 // pred_check
    _
  $region3: #{spatial_stream_forward.1} parent=0 // pred_check_branch
    %12 = sbr.rel (0) target = $region5
  $region4: #{spatial_stream_forward.1} parent=0 // pred_region
    _
  $region5: #{spatial_stream_forward.1} parent=0 // pred_fallthru
    _
  // Predicated region
  $region6: #{spatial_stream_forward.1} parent=0 // pred_check
    _
  $region7: #{spatial_stream_forward.1} parent=0 // pred_check_branch
    %14 = sbr.rel (0) target = $region9
  $region8: #{spatial_stream_forward.1} parent=0 // pred_region
    _
  $region9: #{spatial_stream_forward.1} parent=0 // pred_fallthru
    _
  // Predicated region
  $region10: #{spatial_stream_forward.1} parent=0 // pred_check
    _
  $region11: #{spatial_stream_forward.1} parent=0 // pred_check_branch
    %16 = sbr.rel (0) target = $region13
  $region12: #{spatial_stream_forward.1} parent=0 // pred_region
    _
  $region13: #{spatial_stream_forward.1} parent=0 // pred_fallthru
    _
  // Predicated region
  $region14: #{spatial_stream_forward.1} parent=0 // pred_check
    _
  $region15: #{spatial_stream_forward.1} parent=0 // pred_check_branch
    %18 = sbr.rel (0) target = $region17
  $region16: #{spatial_stream_forward.1} parent=0 // pred_region
    _
  $region17: #{spatial_stream_forward.1} parent=0 // pred_fallthru
    _
  // Predicated region
  $region18: #{spatial_stream_forward.1} parent=0 // pred_check
    _
  $region19: #{spatial_stream_forward.1} parent=0 // pred_check_branch
    %20 = sbr.rel (0) target = $region21
  $region20: #{spatial_stream_forward.1} parent=0 // pred_region
    _
  $region21: #{spatial_stream_forward.1} parent=0 // pred_fallthru
    _
  // Predicated region
  $region22: #{spatial_stream_forward.1} parent=0 // pred_check
    _
  $region23: #{spatial_stream_forward.1} parent=0 // pred_check_branch
    %22 = sbr.rel (0) target = $region25
  $region24: #{spatial_stream_forward.1} parent=0 // pred_region
    _
  $region25: #{spatial_stream_forward.1} parent=0 // pred_fallthru
    _
  %v24 = vld [vmem:[%s0] sm:$0xff]
  %v25 = vld [vmem:[%s0 + $0x8] sm:$0xff]
  %v26 = vld [vmem:[%s0 + $0x10] sm:$0xff]
  %v27 = vld [vmem:[%s0 + $0x18] sm:$0xff]
  %v28 = vld [vmem:[%s0 + $0x20] sm:$0xff]
  %v29 = vld [vmem:[%s0 + $0x28] sm:$0xff]
  %v30 = vld [vmem:[%s0 + $0x30] sm:$0xff]
  %v31 = vld [vmem:[%s0 + $0x38] sm:$0xff]
  %v32 = vld [vmem:[%s0 + $0x40] sm:$0xff]
  %v33 = vld [vmem:[%s0 + $0x48] sm:$0xff]
  %v34 = vld [vmem:[%s0 + $0x50] sm:$0xff]
  %v35 = vld [vmem:[%s0 + $0x58] sm:$0xff]
  %v36 = vld [vmem:[%s0 + $0x60] sm:$0xff]
  %v37 = vld [vmem:[%s0 + $0x68] sm:$0xff]
  %v38 = vld [vmem:[%s0 + $0x70] sm:$0xff]
  %v39 = vld [vmem:[%s0 + $0x78] sm:$0xff]
  %v40 = vld [vmem:[%s0 + $0x80] sm:$0xff]
  %v41 = vld [vmem:[%s0 + $0x88] sm:$0xff]
  %v42 = vld [vmem:[%s0 + $0x90] sm:$0xff]
  %v43 = vld [vmem:[%s0 + $0x98] sm:$0xff]
  %v44 = vld [vmem:[%s0 + $0xa0] sm:$0xff]
  %v45 = vld [vmem:[%s0 + $0xa8] sm:$0xff]
  %v46 = vld [vmem:[%s0 + $0xb0] sm:$0xff]
  %v47 = vld [vmem:[%s0 + $0xb8] sm:$0xff]
  %v48 = vld [vmem:[%s0 + $0xc0] sm:$0xff]
  %v49 = vld [vmem:[%s0 + $0xc8] sm:$0xff]
  %v50 = vld [vmem:[%s0 + $0xd0] sm:$0xff]
  %v51 = vld [vmem:[%s0 + $0xd8] sm:$0xff]
  %v52 = vld [vmem:[%s0 + $0xe0] sm:$0xff]
  %v53 = vld [vmem:[%s0 + $0xe8] sm:$0xff]
  %v54 = vld [vmem:[%s0 + $0xf0] sm:$0xff]
  %v55 = vld [vmem:[%s0 + $0xf8] sm:$0xff]
  %v56 = vld [vmem:[%s1] sm:$0xf]
  %v57 = vld [vmem:[%s1 + $0x4] sm:$0xf]
  %v58 = vld [vmem:[%s1 + $0x8] sm:$0xf]
  %v59 = vld [vmem:[%s1 + $0xc] sm:$0xf]
  %v60 = vld [vmem:[%s1 + $0x10] sm:$0xf]
  %v61 = vld [vmem:[%s1 + $0x14] sm:$0xf]
  %v62 = vld [vmem:[%s1 + $0x18] sm:$0xf]
  %v63 = vld [vmem:[%s1 + $0x1c] sm:$0xf]
  %v64 = vld [vmem:[%s1 + $0x20] sm:$0xf]
  %v65 = vld [vmem:[%s1 + $0x24] sm:$0xf]
  %v66 = vld [vmem:[%s1 + $0x28] sm:$0xf]
  %v67 = vld [vmem:[%s1 + $0x2c] sm:$0xf]
  %v68 = vld [vmem:[%s1 + $0x30] sm:$0xf]
  %v69 = vld [vmem:[%s1 + $0x34] sm:$0xf]
  %v70 = vld [vmem:[%s1 + $0x38] sm:$0xf]
  %v71 = vld [vmem:[%s1 + $0x3c] sm:$0xf]
  %v72 = vld [vmem:[%s1 + $0x40] sm:$0xf]
  %v73 = vld [vmem:[%s1 + $0x44] sm:$0xf]
  %v74 = vld [vmem:[%s1 + $0x48] sm:$0xf]
  %v75 = vld [vmem:[%s1 + $0x4c] sm:$0xf]
  %v76 = vld [vmem:[%s1 + $0x50] sm:$0xf]
  %v77 = vld [vmem:[%s1 + $0x54] sm:$0xf]
  %v78 = vld [vmem:[%s1 + $0x58] sm:$0xf]
  %v79 = vld [vmem:[%s1 + $0x5c] sm:$0xf]
  %v80 = vld [vmem:[%s1 + $0x60] sm:$0xf]
  %v81 = vld [vmem:[%s1 + $0x64] sm:$0xf]
  %v82 = vld [vmem:[%s1 + $0x68] sm:$0xf]
  %v83 = vld [vmem:[%s1 + $0x6c] sm:$0xf]
  %v84 = vld [vmem:[%s1 + $0x70] sm:$0xf]
  %v85 = vld [vmem:[%s1 + $0x74] sm:$0xf]
  %v86 = vld [vmem:[%s1 + $0x78] sm:$0xf]
  %v87 = vld [vmem:[%s1 + $0x7c] sm:$0xf]
  %v120 = vunpack.c.l.b16 %v24
  %v121 = vunpack.c.h.b16 %v24
  %v122 = vunpack.c.l.b16 %v25
  %v123 = vunpack.c.h.b16 %v25
  %v124 = vunpack.c.l.b16 %v26
  %v125 = vunpack.c.h.b16 %v26
  %v126 = vunpack.c.l.b16 %v27
  %v127 = vunpack.c.h.b16 %v27
  %v128 = vunpack.c.l.b16 %v28
  %v129 = vunpack.c.h.b16 %v28
  %v130 = vunpack.c.l.b16 %v29
  %v131 = vunpack.c.h.b16 %v29
  %v132 = vunpack.c.l.b16 %v30
  %v133 = vunpack.c.h.b16 %v30
  %v134 = vunpack.c.l.b16 %v31
  %v135 = vunpack.c.h.b16 %v31
  %v136 = vunpack.c.l.b16 %v32
  %v137 = vunpack.c.h.b16 %v32
  %v138 = vunpack.c.l.b16 %v33
  %v139 = vunpack.c.h.b16 %v33
  %v140 = vunpack.c.l.b16 %v34
  %v141 = vunpack.c.h.b16 %v34
  %v142 = vunpack.c.l.b16 %v35
  %v143 = vunpack.c.h.b16 %v35
  %v144 = vunpack.c.l.b16 %v36
  %v145 = vunpack.c.h.b16 %v36
  %v146 = vunpack.c.l.b16 %v37
  %v147 = vunpack.c.h.b16 %v37
  %v148 = vunpack.c.l.b16 %v38
  %v149 = vunpack.c.h.b16 %v38
  %v150 = vunpack.c.l.b16 %v39
  %v151 = vunpack.c.h.b16 %v39
  %v152 = vunpack.c.l.b16 %v40
  %v153 = vunpack.c.h.b16 %v40
  %v154 = vunpack.c.l.b16 %v41
  %v155 = vunpack.c.h.b16 %v41
  %v156 = vunpack.c.l.b16 %v42
  %v157 = vunpack.c.h.b16 %v42
  %v158 = vunpack.c.l.b16 %v43
  %v159 = vunpack.c.h.b16 %v43
  %v160 = vunpack.c.l.b16 %v44
  %v161 = vunpack.c.h.b16 %v44
  %v162 = vunpack.c.l.b16 %v45
  %v163 = vunpack.c.h.b16 %v45
  %v164 = vunpack.c.l.b16 %v46
  %v165 = vunpack.c.h.b16 %v46
  %v166 = vunpack.c.l.b16 %v47
  %v167 = vunpack.c.h.b16 %v47
  %v168 = vunpack.c.l.b16 %v48
  %v169 = vunpack.c.h.b16 %v48
  %v170 = vunpack.c.l.b16 %v49
  %v171 = vunpack.c.h.b16 %v49
  %v172 = vunpack.c.l.b16 %v50
  %v173 = vunpack.c.h.b16 %v50
  %v174 = vunpack.c.l.b16 %v51
  %v175 = vunpack.c.h.b16 %v51
  %v176 = vunpack.c.l.b16 %v52
  %v177 = vunpack.c.h.b16 %v52
  %v178 = vunpack.c.l.b16 %v53
  %v179 = vunpack.c.h.b16 %v53
  %v180 = vunpack.c.l.b16 %v54
  %v181 = vunpack.c.h.b16 %v54
  %v182 = vunpack.c.l.b16 %v55
  %v183 = vunpack.c.h.b16 %v55
  %v184 = vpack.c.b16 %v122, %v120
  %v185 = vpack.c.b16 %v123, %v121
  %v186 = vpack.c.b16 %v126, %v124
  %v187 = vpack.c.b16 %v127, %v125
  %v188 = vpack.c.b16 %v130, %v128
  %v189 = vpack.c.b16 %v131, %v129
  %v190 = vpack.c.b16 %v134, %v132
  %v191 = vpack.c.b16 %v135, %v133
  %v192 = vpack.c.b16 %v138, %v136
  %v193 = vpack.c.b16 %v139, %v137
  %v194 = vpack.c.b16 %v142, %v140
  %v195 = vpack.c.b16 %v143, %v141
  %v196 = vpack.c.b16 %v146, %v144
  %v197 = vpack.c.b16 %v147, %v145
  %v198 = vpack.c.b16 %v150, %v148
  %v199 = vpack.c.b16 %v151, %v149
  %v200 = vpack.c.b16 %v154, %v152
  %v201 = vpack.c.b16 %v155, %v153
  %v202 = vpack.c.b16 %v158, %v156
  %v203 = vpack.c.b16 %v159, %v157
  %v204 = vpack.c.b16 %v162, %v160
  %v205 = vpack.c.b16 %v163, %v161
  %v206 = vpack.c.b16 %v166, %v164
  %v207 = vpack.c.b16 %v167, %v165
  %v208 = vpack.c.b16 %v170, %v168
  %v209 = vpack.c.b16 %v171, %v169
  %v210 = vpack.c.b16 %v174, %v172
  %v211 = vpack.c.b16 %v175, %v173
  %v212 = vpack.c.b16 %v178, %v176
  %v213 = vpack.c.b16 %v179, %v177
  %v214 = vpack.c.b16 %v182, %v180
  %v215 = vpack.c.b16 %v183, %v181
  %v280 = vunpack.c.l.b16 %v56
  %v281 = vunpack.c.l.b16 %v57
  %v282 = vunpack.c.l.b16 %v58
  %v283 = vunpack.c.l.b16 %v59
  %v284 = vunpack.c.l.b16 %v60
  %v285 = vunpack.c.l.b16 %v61
  %v286 = vunpack.c.l.b16 %v62
  %v287 = vunpack.c.l.b16 %v63
  %v288 = vunpack.c.l.b16 %v64
  %v289 = vunpack.c.l.b16 %v65
  %v290 = vunpack.c.l.b16 %v66
  %v291 = vunpack.c.l.b16 %v67
  %v292 = vunpack.c.l.b16 %v68
  %v293 = vunpack.c.l.b16 %v69
  %v294 = vunpack.c.l.b16 %v70
  %v295 = vunpack.c.l.b16 %v71
  %v296 = vunpack.c.l.b16 %v72
  %v297 = vunpack.c.l.b16 %v73
  %v298 = vunpack.c.l.b16 %v74
  %v299 = vunpack.c.l.b16 %v75
  %v300 = vunpack.c.l.b16 %v76
  %v301 = vunpack.c.l.b16 %v77
  %v302 = vunpack.c.l.b16 %v78
  %v303 = vunpack.c.l.b16 %v79
  %v304 = vunpack.c.l.b16 %v80
  %v305 = vunpack.c.l.b16 %v81
  %v306 = vunpack.c.l.b16 %v82
  %v307 = vunpack.c.l.b16 %v83
  %v308 = vunpack.c.l.b16 %v84
  %v309 = vunpack.c.l.b16 %v85
  %v310 = vunpack.c.l.b16 %v86
  %v311 = vunpack.c.l.b16 %v87
  %v312 = vpack.c.b16 %v281, %v280
  %v313 = vpack.c.b16 %v283, %v282
  %v314 = vpack.c.b16 %v285, %v284
  %v315 = vpack.c.b16 %v287, %v286
  %v316 = vpack.c.b16 %v289, %v288
  %v317 = vpack.c.b16 %v291, %v290
  %v318 = vpack.c.b16 %v293, %v292
  %v319 = vpack.c.b16 %v295, %v294
  %v320 = vpack.c.b16 %v297, %v296
  %v321 = vpack.c.b16 %v299, %v298
  %v322 = vpack.c.b16 %v301, %v300
  %v323 = vpack.c.b16 %v303, %v302
  %v324 = vpack.c.b16 %v305, %v304
  %v325 = vpack.c.b16 %v307, %v306
  %v326 = vpack.c.b16 %v309, %v308
  %v327 = vpack.c.b16 %v311, %v310
  %344 = vmatprep.subr.bf16.mxu0 0
  %345 = vmatpush1.bf16.msra.mxu0 %v319
  %346 = vmatprep.subr.bf16.mxu0 0
  %347 = vmatpush1.bf16.msra.mxu0 %v318
  %348 = vmatprep.subr.bf16.mxu0 0
  %349 = vmatpush1.bf16.msra.mxu0 %v317
  %350 = vmatprep.subr.bf16.mxu0 0
  %351 = vmatpush1.bf16.msra.mxu0 %v316
  %352 = vmatprep.subr.bf16.mxu0 0
  %353 = vmatpush1.bf16.msra.mxu0 %v315
  %354 = vmatprep.subr.bf16.mxu0 0
  %355 = vmatpush1.bf16.msra.mxu0 %v314
  %356 = vmatprep.subr.bf16.mxu0 0
  %357 = vmatpush1.bf16.msra.mxu0 %v313
  %358 = vmatprep.subr.bf16.mxu0 0
  %359 = vmatpush1.bf16.msra.mxu0 %v312
  %360 = vmatprep.subr.bf16.mxu0 0
  %361 = vmatpush2.bf16.msra.mxu0 %v327
  %362 = vmatprep.subr.bf16.mxu0 0
  %363 = vmatpush2.bf16.msra.mxu0 %v326
  %364 = vmatprep.subr.bf16.mxu0 0
  %365 = vmatpush2.bf16.msra.mxu0 %v325
  %366 = vmatprep.subr.bf16.mxu0 0
  %367 = vmatpush2.bf16.msra.mxu0 %v324
  %368 = vmatprep.subr.bf16.mxu0 0
  %369 = vmatpush2.bf16.msra.mxu0 %v323
  %370 = vmatprep.subr.bf16.mxu0 0
  %371 = vmatpush2.bf16.msra.mxu0 %v322
  %372 = vmatprep.subr.bf16.mxu0 0
  %373 = vmatpush2.bf16.msra.mxu0 %v321
  %374 = vmatprep.subr.bf16.mxu0 0
  %375 = vmatpush2.bf16.msra.mxu0 %v320
  %376 = vmatprep.mubr.bf16.mxu0 %v185
  %377 = vmatmul.mubr.bf16.gmra.mxu0 %v184
  %v378 = vpop.f32.mrf.mxu0
  %v379 = vadd.f32 0.0, %v378
  %v380 = vpop.f32.mrf.mxu0
  %v381 = vpop.f32.mrf.mxu0
  %v382 = vadd.f32 0.0, %v381
  %v383 = vpop.f32.mrf.mxu0
  %384 = vmatprep.mubr.bf16.mxu0 %v187
  %385 = vmatmul.mubr.bf16.gmra.mxu0 %v186
  %v386 = vpop.f32.mrf.mxu0
  %v387 = vadd.f32 0.0, %v386
  %v388 = vpop.f32.mrf.mxu0
  %v389 = vpop.f32.mrf.mxu0
  %v390 = vadd.f32 0.0, %v389
  %v391 = vpop.f32.mrf.mxu0
  %392 = vmatprep.mubr.bf16.mxu0 %v189
  %393 = vmatmul.mubr.bf16.gmra.mxu0 %v188
  %v394 = vpop.f32.mrf.mxu0
  %v395 = vadd.f32 0.0, %v394
  %v396 = vpop.f32.mrf.mxu0
  %v397 = vpop.f32.mrf.mxu0
  %v398 = vadd.f32 0.0, %v397
  %v399 = vpop.f32.mrf.mxu0
  %400 = vmatprep.mubr.bf16.mxu0 %v191
  %401 = vmatmul.mubr.bf16.gmra.mxu0 %v190
  %v402 = vpop.f32.mrf.mxu0
  %v403 = vadd.f32 0.0, %v402
  %v404 = vpop.f32.mrf.mxu0
  %v405 = vpop.f32.mrf.mxu0
  %v406 = vadd.f32 0.0, %v405
  %v407 = vpop.f32.mrf.mxu0
  %408 = vmatprep.mubr.bf16.mxu0 %v193
  %409 = vmatmul.mubr.bf16.gmra.mxu0 %v192
  %v410 = vpop.f32.mrf.mxu0
  %v411 = vadd.f32 0.0, %v410
  %v412 = vpop.f32.mrf.mxu0
  %v413 = vpop.f32.mrf.mxu0
  %v414 = vadd.f32 0.0, %v413
  %v415 = vpop.f32.mrf.mxu0
  %416 = vmatprep.mubr.bf16.mxu0 %v195
  %417 = vmatmul.mubr.bf16.gmra.mxu0 %v194
  %v418 = vpop.f32.mrf.mxu0
  %v419 = vadd.f32 0.0, %v418
  %v420 = vpop.f32.mrf.mxu0
  %v421 = vpop.f32.mrf.mxu0
  %v422 = vadd.f32 0.0, %v421
  %v423 = vpop.f32.mrf.mxu0
  %424 = vmatprep.mubr.bf16.mxu0 %v197
  %425 = vmatmul.mubr.bf16.gmra.mxu0 %v196
  %v426 = vpop.f32.mrf.mxu0
  %v427 = vadd.f32 0.0, %v426
  %v428 = vpop.f32.mrf.mxu0
  %v429 = vpop.f32.mrf.mxu0
  %v430 = vadd.f32 0.0, %v429
  %v431 = vpop.f32.mrf.mxu0
  %432 = vmatprep.mubr.bf16.mxu0 %v199
  %433 = vmatmul.mubr.bf16.gmra.mxu0 %v198
  %v434 = vpop.f32.mrf.mxu0
  %v435 = vadd.f32 0.0, %v434
  %v436 = vpop.f32.mrf.mxu0
  %v437 = vpop.f32.mrf.mxu0
  %v438 = vadd.f32 0.0, %v437
  %v439 = vpop.f32.mrf.mxu0
  %440 = vmatprep.mubr.bf16.mxu0 %v201
  %441 = vmatmul.mubr.bf16.gmra.mxu0 %v200
  %v442 = vpop.f32.mrf.mxu0
  %v443 = vadd.f32 0.0, %v442
  %v444 = vpop.f32.mrf.mxu0
  %v445 = vpop.f32.mrf.mxu0
  %v446 = vadd.f32 0.0, %v445
  %v447 = vpop.f32.mrf.mxu0
  %448 = vmatprep.mubr.bf16.mxu0 %v203
  %449 = vmatmul.mubr.bf16.gmra.mxu0 %v202
  %v450 = vpop.f32.mrf.mxu0
  %v451 = vadd.f32 0.0, %v450
  %v452 = vpop.f32.mrf.mxu0
  %v453 = vpop.f32.mrf.mxu0
  %v454 = vadd.f32 0.0, %v453
  %v455 = vpop.f32.mrf.mxu0
  %456 = vmatprep.mubr.bf16.mxu0 %v205
  %457 = vmatmul.mubr.bf16.gmra.mxu0 %v204
  %v458 = vpop.f32.mrf.mxu0
  %v459 = vadd.f32 0.0, %v458
  %v460 = vpop.f32.mrf.mxu0
  %v461 = vpop.f32.mrf.mxu0
  %v462 = vadd.f32 0.0, %v461
  %v463 = vpop.f32.mrf.mxu0
  %464 = vmatprep.mubr.bf16.mxu0 %v207
  %465 = vmatmul.mubr.bf16.gmra.mxu0 %v206
  %v466 = vpop.f32.mrf.mxu0
  %v467 = vadd.f32 0.0, %v466
  %v468 = vpop.f32.mrf.mxu0
  %v469 = vpop.f32.mrf.mxu0
  %v470 = vadd.f32 0.0, %v469
  %v471 = vpop.f32.mrf.mxu0
  %472 = vmatprep.mubr.bf16.mxu0 %v209
  %473 = vmatmul.mubr.bf16.gmra.mxu0 %v208
  %v474 = vpop.f32.mrf.mxu0
  %v475 = vadd.f32 0.0, %v474
  %v476 = vpop.f32.mrf.mxu0
  %v477 = vpop.f32.mrf.mxu0
  %v478 = vadd.f32 0.0, %v477
  %v479 = vpop.f32.mrf.mxu0
  %480 = vmatprep.mubr.bf16.mxu0 %v211
  %481 = vmatmul.mubr.bf16.gmra.mxu0 %v210
  %v482 = vpop.f32.mrf.mxu0
  %v483 = vadd.f32 0.0, %v482
  %v484 = vpop.f32.mrf.mxu0
  %v485 = vpop.f32.mrf.mxu0
  %v486 = vadd.f32 0.0, %v485
  %v487 = vpop.f32.mrf.mxu0
  %488 = vmatprep.mubr.bf16.mxu0 %v213
  %489 = vmatmul.mubr.bf16.gmra.mxu0 %v212
  %v490 = vpop.f32.mrf.mxu0
  %v491 = vadd.f32 0.0, %v490
  %v492 = vpop.f32.mrf.mxu0
  %v493 = vpop.f32.mrf.mxu0
  %v494 = vadd.f32 0.0, %v493
  %v495 = vpop.f32.mrf.mxu0
  %496 = vmatprep.mubr.bf16.mxu0 %v215
  %497 = vmatmul.mubr.bf16.gmra.mxu0 %v214
  %v498 = vpop.f32.mrf.mxu0
  %v499 = vadd.f32 0.0, %v498
  %v500 = vpop.f32.mrf.mxu0
  %v501 = vpop.f32.mrf.mxu0
  %v502 = vadd.f32 0.0, %v501
  %v503 = vpop.f32.mrf.mxu0
  %504 = vdwg.mxu0
  %v505 = vmul.f32 %v379, 0.5
  %v506 = vmul.f32 %v382, 0.5
  %v507 = vmul.f32 %v387, 0.5
  %v508 = vmul.f32 %v390, 0.5
  %v509 = vmul.f32 %v395, 0.5
  %v510 = vmul.f32 %v398, 0.5
  %v511 = vmul.f32 %v403, 0.5
  %v512 = vmul.f32 %v406, 0.5
  %v513 = vmul.f32 %v411, 0.5
  %v514 = vmul.f32 %v414, 0.5
  %v515 = vmul.f32 %v419, 0.5
  %v516 = vmul.f32 %v422, 0.5
  %v517 = vmul.f32 %v427, 0.5
  %v518 = vmul.f32 %v430, 0.5
  %v519 = vmul.f32 %v435, 0.5
  %v520 = vmul.f32 %v438, 0.5
  %v521 = vmul.f32 %v443, 0.5
  %v522 = vmul.f32 %v446, 0.5
  %v523 = vmul.f32 %v451, 0.5
  %v524 = vmul.f32 %v454, 0.5
  %v525 = vmul.f32 %v459, 0.5
  %v526 = vmul.f32 %v462, 0.5
  %v527 = vmul.f32 %v467, 0.5
  %v528 = vmul.f32 %v470, 0.5
  %v529 = vmul.f32 %v475, 0.5
  %v530 = vmul.f32 %v478, 0.5
  %v531 = vmul.f32 %v483, 0.5
  %v532 = vmul.f32 %v486, 0.5
  %v533 = vmul.f32 %v491, 0.5
  %v534 = vmul.f32 %v494, 0.5
  %v535 = vmul.f32 %v499, 0.5
  %v536 = vmul.f32 %v502, 0.5
  %v537 = vmul.f32 %v379, 0.044715
  %v538 = vmul.f32 %v382, 0.044715
  %v539 = vmul.f32 %v387, 0.044715
  %v540 = vmul.f32 %v390, 0.044715
  %v541 = vmul.f32 %v395, 0.044715
  %v542 = vmul.f32 %v398, 0.044715
  %v543 = vmul.f32 %v403, 0.044715
  %v544 = vmul.f32 %v406, 0.044715
  %v545 = vmul.f32 %v411, 0.044715
  %v546 = vmul.f32 %v414, 0.044715
  %v547 = vmul.f32 %v419, 0.044715
  %v548 = vmul.f32 %v422, 0.044715
  %v549 = vmul.f32 %v427, 0.044715
  %v550 = vmul.f32 %v430, 0.044715
  %v551 = vmul.f32 %v435, 0.044715
  %v552 = vmul.f32 %v438, 0.044715
  %v553 = vmul.f32 %v443, 0.044715
  %v554 = vmul.f32 %v446, 0.044715
  %v555 = vmul.f32 %v451, 0.044715
  %v556 = vmul.f32 %v454, 0.044715
  %v557 = vmul.f32 %v459, 0.044715
  %v558 = vmul.f32 %v462, 0.044715
  %v559 = vmul.f32 %v467, 0.044715
  %v560 = vmul.f32 %v470, 0.044715
  %v561 = vmul.f32 %v475, 0.044715
  %v562 = vmul.f32 %v478, 0.044715
  %v563 = vmul.f32 %v483, 0.044715
  %v564 = vmul.f32 %v486, 0.044715
  %v565 = vmul.f32 %v491, 0.044715
  %v566 = vmul.f32 %v494, 0.044715
  %v567 = vmul.f32 %v499, 0.044715
  %v568 = vmul.f32 %v502, 0.044715
  %v569 = vmul.f32 %v537, %v379
  %v570 = vmul.f32 %v538, %v382
  %v571 = vmul.f32 %v539, %v387
  %v572 = vmul.f32 %v540, %v390
  %v573 = vmul.f32 %v541, %v395
  %v574 = vmul.f32 %v542, %v398
  %v575 = vmul.f32 %v543, %v403
  %v576 = vmul.f32 %v544, %v406
  %v577 = vmul.f32 %v545, %v411
  %v578 = vmul.f32 %v546, %v414
  %v579 = vmul.f32 %v547, %v419
  %v580 = vmul.f32 %v548, %v422
  %v581 = vmul.f32 %v549, %v427
  %v582 = vmul.f32 %v550, %v430
  %v583 = vmul.f32 %v551, %v435
  %v584 = vmul.f32 %v552, %v438
  %v585 = vmul.f32 %v553, %v443
  %v586 = vmul.f32 %v554, %v446
  %v587 = vmul.f32 %v555, %v451
  %v588 = vmul.f32 %v556, %v454
  %v589 = vmul.f32 %v557, %v459
  %v590 = vmul.f32 %v558, %v462
  %v591 = vmul.f32 %v559, %v467
  %v592 = vmul.f32 %v560, %v470
  %v593 = vmul.f32 %v561, %v475
  %v594 = vmul.f32 %v562, %v478
  %v595 = vmul.f32 %v563, %v483
  %v596 = vmul.f32 %v564, %v486
  %v597 = vmul.f32 %v565, %v491
  %v598 = vmul.f32 %v566, %v494
  %v599 = vmul.f32 %v567, %v499
  %v600 = vmul.f32 %v568, %v502
  %v601 = vmul.f32 %v569, %v379
  %v602 = vmul.f32 %v570, %v382
  %v603 = vmul.f32 %v571, %v387
  %v604 = vmul.f32 %v572, %v390
  %v605 = vmul.f32 %v573, %v395
  %v606 = vmul.f32 %v574, %v398
  %v607 = vmul.f32 %v575, %v403
  %v608 = vmul.f32 %v576, %v406
  %v609 = vmul.f32 %v577, %v411
  %v610 = vmul.f32 %v578, %v414
  %v611 = vmul.f32 %v579, %v419
  %v612 = vmul.f32 %v580, %v422
  %v613 = vmul.f32 %v581, %v427
  %v614 = vmul.f32 %v582, %v430
  %v615 = vmul.f32 %v583, %v435
  %v616 = vmul.f32 %v584, %v438
  %v617 = vmul.f32 %v585, %v443
  %v618 = vmul.f32 %v586, %v446
  %v619 = vmul.f32 %v587, %v451
  %v620 = vmul.f32 %v588, %v454
  %v621 = vmul.f32 %v589, %v459
  %v622 = vmul.f32 %v590, %v462
  %v623 = vmul.f32 %v591, %v467
  %v624 = vmul.f32 %v592, %v470
  %v625 = vmul.f32 %v593, %v475
  %v626 = vmul.f32 %v594, %v478
  %v627 = vmul.f32 %v595, %v483
  %v628 = vmul.f32 %v596, %v486
  %v629 = vmul.f32 %v597, %v491
  %v630 = vmul.f32 %v598, %v494
  %v631 = vmul.f32 %v599, %v499
  %v632 = vmul.f32 %v600, %v502
  %v633 = vadd.f32 %v379, %v601
  %v634 = vadd.f32 %v382, %v602
  %v635 = vadd.f32 %v387, %v603
  %v636 = vadd.f32 %v390, %v604
  %v637 = vadd.f32 %v395, %v605
  %v638 = vadd.f32 %v398, %v606
  %v639 = vadd.f32 %v403, %v607
  %v640 = vadd.f32 %v406, %v608
  %v641 = vadd.f32 %v411, %v609
  %v642 = vadd.f32 %v414, %v610
  %v643 = vadd.f32 %v419, %v611
  %v644 = vadd.f32 %v422, %v612
  %v645 = vadd.f32 %v427, %v613
  %v646 = vadd.f32 %v430, %v614
  %v647 = vadd.f32 %v435, %v615
  %v648 = vadd.f32 %v438, %v616
  %v649 = vadd.f32 %v443, %v617
  %v650 = vadd.f32 %v446, %v618
  %v651 = vadd.f32 %v451, %v619
  %v652 = vadd.f32 %v454, %v620
  %v653 = vadd.f32 %v459, %v621
  %v654 = vadd.f32 %v462, %v622
  %v655 = vadd.f32 %v467, %v623
  %v656 = vadd.f32 %v470, %v624
  %v657 = vadd.f32 %v475, %v625
  %v658 = vadd.f32 %v478, %v626
  %v659 = vadd.f32 %v483, %v627
  %v660 = vadd.f32 %v486, %v628
  %v661 = vadd.f32 %v491, %v629
  %v662 = vadd.f32 %v494, %v630
  %v663 = vadd.f32 %v499, %v631
  %v664 = vadd.f32 %v502, %v632
  %v665 = vmul.f32 %v633, 0.7978846
  %v666 = vmul.f32 %v634, 0.7978846
  %v667 = vmul.f32 %v635, 0.7978846
  %v668 = vmul.f32 %v636, 0.7978846
  %v669 = vmul.f32 %v637, 0.7978846
  %v670 = vmul.f32 %v638, 0.7978846
  %v671 = vmul.f32 %v639, 0.7978846
  %v672 = vmul.f32 %v640, 0.7978846
  %v673 = vmul.f32 %v641, 0.7978846
  %v674 = vmul.f32 %v642, 0.7978846
  %v675 = vmul.f32 %v643, 0.7978846
  %v676 = vmul.f32 %v644, 0.7978846
  %v677 = vmul.f32 %v645, 0.7978846
  %v678 = vmul.f32 %v646, 0.7978846
  %v679 = vmul.f32 %v647, 0.7978846
  %v680 = vmul.f32 %v648, 0.7978846
  %v681 = vmul.f32 %v649, 0.7978846
  %v682 = vmul.f32 %v650, 0.7978846
  %v683 = vmul.f32 %v651, 0.7978846
  %v684 = vmul.f32 %v652, 0.7978846
  %v685 = vmul.f32 %v653, 0.7978846
  %v686 = vmul.f32 %v654, 0.7978846
  %v687 = vmul.f32 %v655, 0.7978846
  %v688 = vmul.f32 %v656, 0.7978846
  %v689 = vmul.f32 %v657, 0.7978846
  %v690 = vmul.f32 %v658, 0.7978846
  %v691 = vmul.f32 %v659, 0.7978846
  %v692 = vmul.f32 %v660, 0.7978846
  %v693 = vmul.f32 %v661, 0.7978846
  %v694 = vmul.f32 %v662, 0.7978846
  %v695 = vmul.f32 %v663, 0.7978846
  %v696 = vmul.f32 %v664, 0.7978846
  %v697 = vtanh.pop %v665
  %v698 = vtanh.pop %v666
  %v699 = vtanh.pop %v667
  %v700 = vtanh.pop %v668
  %v701 = vtanh.pop %v669
  %v702 = vtanh.pop %v670
  %v703 = vtanh.pop %v671
  %v704 = vtanh.pop %v672
  %v705 = vtanh.pop %v673
  %v706 = vtanh.pop %v674
  %v707 = vtanh.pop %v675
  %v708 = vtanh.pop %v676
  %v709 = vtanh.pop %v677
  %v710 = vtanh.pop %v678
  %v711 = vtanh.pop %v679
  %v712 = vtanh.pop %v680
  %v713 = vtanh.pop %v681
  %v714 = vtanh.pop %v682
  %v715 = vtanh.pop %v683
  %v716 = vtanh.pop %v684
  %v717 = vtanh.pop %v685
  %v718 = vtanh.pop %v686
  %v719 = vtanh.pop %v687
  %v720 = vtanh.pop %v688
  %v721 = vtanh.pop %v689
  %v722 = vtanh.pop %v690
  %v723 = vtanh.pop %v691
  %v724 = vtanh.pop %v692
  %v725 = vtanh.pop %v693
  %v726 = vtanh.pop %v694
  %v727 = vtanh.pop %v695
  %v728 = vtanh.pop %v696
  %v729 = vadd.f32 %v697, 1.0
  %v730 = vadd.f32 %v698, 1.0
  %v731 = vadd.f32 %v699, 1.0
  %v732 = vadd.f32 %v700, 1.0
  %v733 = vadd.f32 %v701, 1.0
  %v734 = vadd.f32 %v702, 1.0
  %v735 = vadd.f32 %v703, 1.0
  %v736 = vadd.f32 %v704, 1.0
  %v737 = vadd.f32 %v705, 1.0
  %v738 = vadd.f32 %v706, 1.0
  %v739 = vadd.f32 %v707, 1.0
  %v740 = vadd.f32 %v708, 1.0
  %v741 = vadd.f32 %v709, 1.0
  %v742 = vadd.f32 %v710, 1.0
  %v743 = vadd.f32 %v711, 1.0
  %v744 = vadd.f32 %v712, 1.0
  %v745 = vadd.f32 %v713, 1.0
  %v746 = vadd.f32 %v714, 1.0
  %v747 = vadd.f32 %v715, 1.0
  %v748 = vadd.f32 %v716, 1.0
  %v749 = vadd.f32 %v717, 1.0
  %v750 = vadd.f32 %v718, 1.0
  %v751 = vadd.f32 %v719, 1.0
  %v752 = vadd.f32 %v720, 1.0
  %v753 = vadd.f32 %v721, 1.0
  %v754 = vadd.f32 %v722, 1.0
  %v755 = vadd.f32 %v723, 1.0
  %v756 = vadd.f32 %v724, 1.0
  %v757 = vadd.f32 %v725, 1.0
  %v758 = vadd.f32 %v726, 1.0
  %v759 = vadd.f32 %v727, 1.0
  %v760 = vadd.f32 %v728, 1.0
  %v761 = vmul.f32 %v505, %v729
  %v762 = vmul.f32 %v506, %v730
  %v763 = vmul.f32 %v507, %v731
  %v764 = vmul.f32 %v508, %v732
  %v765 = vmul.f32 %v509, %v733
  %v766 = vmul.f32 %v510, %v734
  %v767 = vmul.f32 %v511, %v735
  %v768 = vmul.f32 %v512, %v736
  %v769 = vmul.f32 %v513, %v737
  %v770 = vmul.f32 %v514, %v738
  %v771 = vmul.f32 %v515, %v739
  %v772 = vmul.f32 %v516, %v740
  %v773 = vmul.f32 %v517, %v741
  %v774 = vmul.f32 %v518, %v742
  %v775 = vmul.f32 %v519, %v743
  %v776 = vmul.f32 %v520, %v744
  %v777 = vmul.f32 %v521, %v745
  %v778 = vmul.f32 %v522, %v746
  %v779 = vmul.f32 %v523, %v747
  %v780 = vmul.f32 %v524, %v748
  %v781 = vmul.f32 %v525, %v749
  %v782 = vmul.f32 %v526, %v750
  %v783 = vmul.f32 %v527, %v751
  %v784 = vmul.f32 %v528, %v752
  %v785 = vmul.f32 %v529, %v753
  %v786 = vmul.f32 %v530, %v754
  %v787 = vmul.f32 %v531, %v755
  %v788 = vmul.f32 %v532, %v756
  %v789 = vmul.f32 %v533, %v757
  %v790 = vmul.f32 %v534, %v758
  %v791 = vmul.f32 %v535, %v759
  %v792 = vmul.f32 %v536, %v760
  %793 = vrot.lane.b32.xlu0 %v761, 64
  %v794 = vpop.permute.xlu0 %793
  %795 = vrot.lane.b32.xlu0 %v762, 64
  %v796 = vpop.permute.xlu0 %795
  %797 = vrot.lane.b32.xlu0 %v763, 64
  %v798 = vpop.permute.xlu0 %797
  %799 = vrot.lane.b32.xlu0 %v764, 64
  %v800 = vpop.permute.xlu0 %799
  %801 = vrot.lane.b32.xlu0 %v765, 64
  %v802 = vpop.permute.xlu0 %801
  %803 = vrot.lane.b32.xlu0 %v766, 64
  %v804 = vpop.permute.xlu0 %803
  %805 = vrot.lane.b32.xlu0 %v767, 64
  %v806 = vpop.permute.xlu0 %805
  %807 = vrot.lane.b32.xlu0 %v768, 64
  %v808 = vpop.permute.xlu0 %807
  %809 = vrot.lane.b32.xlu0 %v769, 64
  %v810 = vpop.permute.xlu0 %809
  %811 = vrot.lane.b32.xlu0 %v770, 64
  %v812 = vpop.permute.xlu0 %811
  %813 = vrot.lane.b32.xlu0 %v771, 64
  %v814 = vpop.permute.xlu0 %813
  %815 = vrot.lane.b32.xlu0 %v772, 64
  %v816 = vpop.permute.xlu0 %815
  %817 = vrot.lane.b32.xlu0 %v773, 64
  %v818 = vpop.permute.xlu0 %817
  %819 = vrot.lane.b32.xlu0 %v774, 64
  %v820 = vpop.permute.xlu0 %819
  %821 = vrot.lane.b32.xlu0 %v775, 64
  %v822 = vpop.permute.xlu0 %821
  %823 = vrot.lane.b32.xlu0 %v776, 64
  %v824 = vpop.permute.xlu0 %823
  %825 = vrot.lane.b32.xlu0 %v777, 64
  %v826 = vpop.permute.xlu0 %825
  %827 = vrot.lane.b32.xlu0 %v778, 64
  %v828 = vpop.permute.xlu0 %827
  %829 = vrot.lane.b32.xlu0 %v779, 64
  %v830 = vpop.permute.xlu0 %829
  %831 = vrot.lane.b32.xlu0 %v780, 64
  %v832 = vpop.permute.xlu0 %831
  %833 = vrot.lane.b32.xlu0 %v781, 64
  %v834 = vpop.permute.xlu0 %833
  %835 = vrot.lane.b32.xlu0 %v782, 64
  %v836 = vpop.permute.xlu0 %835
  %837 = vrot.lane.b32.xlu0 %v783, 64
  %v838 = vpop.permute.xlu0 %837
  %839 = vrot.lane.b32.xlu0 %v784, 64
  %v840 = vpop.permute.xlu0 %839
  %841 = vrot.lane.b32.xlu0 %v785, 64
  %v842 = vpop.permute.xlu0 %841
  %843 = vrot.lane.b32.xlu0 %v786, 64
  %v844 = vpop.permute.xlu0 %843
  %845 = vrot.lane.b32.xlu0 %v787, 64
  %v846 = vpop.permute.xlu0 %845
  %847 = vrot.lane.b32.xlu0 %v788, 64
  %v848 = vpop.permute.xlu0 %847
  %849 = vrot.lane.b32.xlu0 %v789, 64
  %v850 = vpop.permute.xlu0 %849
  %851 = vrot.lane.b32.xlu0 %v790, 64
  %v852 = vpop.permute.xlu0 %851
  %853 = vrot.lane.b32.xlu0 %v791, 64
  %v854 = vpop.permute.xlu0 %853
  %855 = vrot.lane.b32.xlu0 %v792, 64
  %v856 = vpop.permute.xlu0 %855
  %v857 = vmax.f32 %v761, %v794
  %v858 = vmax.f32 %v762, %v796
  %v859 = vmax.f32 %v763, %v798
  %v860 = vmax.f32 %v764, %v800
  %v861 = vmax.f32 %v765, %v802
  %v862 = vmax.f32 %v766, %v804
  %v863 = vmax.f32 %v767, %v806
  %v864 = vmax.f32 %v768, %v808
  %v865 = vmax.f32 %v769, %v810
  %v866 = vmax.f32 %v770, %v812
  %v867 = vmax.f32 %v771, %v814
  %v868 = vmax.f32 %v772, %v816
  %v869 = vmax.f32 %v773, %v818
  %v870 = vmax.f32 %v774, %v820
  %v871 = vmax.f32 %v775, %v822
  %v872 = vmax.f32 %v776, %v824
  %v873 = vmax.f32 %v777, %v826
  %v874 = vmax.f32 %v778, %v828
  %v875 = vmax.f32 %v779, %v830
  %v876 = vmax.f32 %v780, %v832
  %v877 = vmax.f32 %v781, %v834
  %v878 = vmax.f32 %v782, %v836
  %v879 = vmax.f32 %v783, %v838
  %v880 = vmax.f32 %v784, %v840
  %v881 = vmax.f32 %v785, %v842
  %v882 = vmax.f32 %v786, %v844
  %v883 = vmax.f32 %v787, %v846
  %v884 = vmax.f32 %v788, %v848
  %v885 = vmax.f32 %v789, %v850
  %v886 = vmax.f32 %v790, %v852
  %v887 = vmax.f32 %v791, %v854
  %v888 = vmax.f32 %v792, %v856
  %v889 = vmax.f32 %v857, %v873
  %v890 = vmax.f32 %v858, %v874
  %v891 = vmax.f32 %v859, %v875
  %v892 = vmax.f32 %v860, %v876
  %v893 = vmax.f32 %v861, %v877
  %v894 = vmax.f32 %v862, %v878
  %v895 = vmax.f32 %v863, %v879
  %v896 = vmax.f32 %v864, %v880
  %v897 = vmax.f32 %v865, %v881
  %v898 = vmax.f32 %v866, %v882
  %v899 = vmax.f32 %v867, %v883
  %v900 = vmax.f32 %v868, %v884
  %v901 = vmax.f32 %v869, %v885
  %v902 = vmax.f32 %v870, %v886
  %v903 = vmax.f32 %v871, %v887
  %v904 = vmax.f32 %v872, %v888
  %v905 = vpack.c.bf16 %v890, %v889
  %v906 = vpack.c.bf16 %v892, %v891
  %v907 = vpack.c.bf16 %v894, %v893
  %v908 = vpack.c.bf16 %v896, %v895
  %v909 = vpack.c.bf16 %v898, %v897
  %v910 = vpack.c.bf16 %v900, %v899
  %v911 = vpack.c.bf16 %v901, %v901
  %v912 = vld [vmem:[%s2] sm:$0xf]
  %v913 = vld [vmem:[%s2 + $0x4] sm:$0xf]
  %v914 = vld [vmem:[%s2 + $0x8] sm:$0xf]
  %v915 = vld [vmem:[%s2 + $0xc] sm:$0xf]
  %v916 = vld [vmem:[%s2 + $0x10] sm:$0xf]
  %v917 = vld [vmem:[%s2 + $0x14] sm:$0xf]
  %v918 = vld [vmem:[%s2 + $0x18] sm:$0xf]
  %v919 = vld [vmem:[%s2 + $0x1c] sm:$0xf]
  %v920 = vld [vmem:[%s2 + $0x20] sm:$0xf]
  %v921 = vld [vmem:[%s2 + $0x24] sm:$0xf]
  %v922 = vld [vmem:[%s2 + $0x28] sm:$0xf]
  %v923 = vld [vmem:[%s2 + $0x2c] sm:$0xf]
  %v924 = vld [vmem:[%s2 + $0x30] sm:$0xf]
  %v925 = vld [vmem:[%s2 + $0x34] sm:$0xf]
  %v926 = vld [vmem:[%s2 + $0x38] sm:$0xf]
  %v927 = vld [vmem:[%s2 + $0x3c] sm:$0xf]
  %v928 = vpack.c.bf16 %v902, %v901
  %s929 = scalar_lea.vmem %s2, 64
  %v930 = vld [vmem:[%s929] sm:$0xf]
  %v931 = vld [vmem:[%s929 + $0x4] sm:$0xf]
  %v932 = vld [vmem:[%s929 + $0x8] sm:$0xf]
  %v933 = vld [vmem:[%s929 + $0xc] sm:$0xf]
  %v934 = vld [vmem:[%s929 + $0x10] sm:$0xf]
  %v935 = vld [vmem:[%s929 + $0x14] sm:$0xf]
  %v936 = vld [vmem:[%s929 + $0x18] sm:$0xf]
  %v937 = vld [vmem:[%s929 + $0x1c] sm:$0xf]
  %v938 = vld [vmem:[%s929 + $0x20] sm:$0xf]
  %v939 = vld [vmem:[%s929 + $0x24] sm:$0xf]
  %v940 = vld [vmem:[%s929 + $0x28] sm:$0xf]
  %v941 = vld [vmem:[%s929 + $0x2c] sm:$0xf]
  %v942 = vld [vmem:[%s929 + $0x30] sm:$0xf]
  %v943 = vld [vmem:[%s929 + $0x34] sm:$0xf]
  %v944 = vld [vmem:[%s929 + $0x38] sm:$0xf]
  %v945 = vld [vmem:[%s929 + $0x3c] sm:$0xf]
  %vm946 = vsmask.f32 7424
  %v948 = vshrl.u32 %v905, 16
  %v950 = vshll.u32 %v905, 16
  %v952 = vrot.slane %v950, 1
  %v953 = vor.u32 %v948, %v952
  %v955 = vshll.u32 %v906, 16
  %v957 = vrot.slane %v955, 1
  %v958 = vsel %vm946, %v953, %v957
  %v959 = vshrl.u32 %v906, 16
  %v961 = vor.u32 %v959, %v957
  %v963 = vshll.u32 %v907, 16
  %v965 = vrot.slane %v963, 1
  %v966 = vsel %vm946, %v961, %v965
  %v967 = vshrl.u32 %v907, 16
  %v969 = vor.u32 %v967, %v965
  %v971 = vshll.u32 %v908, 16
  %v973 = vrot.slane %v971, 1
  %v974 = vsel %vm946, %v969, %v973
  %v975 = vshrl.u32 %v908, 16
  %v977 = vor.u32 %v975, %v973
  %v979 = vshll.u32 %v909, 16
  %v981 = vrot.slane %v979, 1
  %v982 = vsel %vm946, %v977, %v981
  %v983 = vshrl.u32 %v909, 16
  %v985 = vor.u32 %v983, %v981
  %v987 = vshll.u32 %v910, 16
  %v989 = vrot.slane %v987, 1
  %v990 = vsel %vm946, %v985, %v989
  %v991 = vshrl.u32 %v910, 16
  %v993 = vor.u32 %v991, %v989
  %v995 = vshll.u32 %v928, 16
  %v997 = vrot.slane %v995, 1
  %v998 = vsel %vm946, %v993, %v997
  %v999 = vshrl.u32 %v928, 16
  %v1001 = vor.u32 %v999, %v997
  %v1025 = vunpack.c.l.b16 %v930
  %v1026 = vunpack.c.l.b16 %v931
  %v1027 = vunpack.c.l.b16 %v932
  %v1028 = vunpack.c.l.b16 %v933
  %v1029 = vunpack.c.l.b16 %v934
  %v1030 = vunpack.c.l.b16 %v935
  %v1031 = vunpack.c.l.b16 %v936
  %v1032 = vunpack.c.l.b16 %v937
  %v1033 = vunpack.c.l.b16 %v938
  %v1034 = vunpack.c.l.b16 %v939
  %v1035 = vunpack.c.l.b16 %v940
  %v1036 = vunpack.c.l.b16 %v941
  %v1037 = vunpack.c.l.b16 %v942
  %v1038 = vunpack.c.l.b16 %v943
  %v1039 = vunpack.c.l.b16 %v944
  %v1040 = vunpack.c.l.b16 %v945
  %v1041 = vpack.c.b16 %v1026, %v1025
  %v1042 = vpack.c.b16 %v1028, %v1027
  %v1043 = vpack.c.b16 %v1030, %v1029
  %v1044 = vpack.c.b16 %v1032, %v1031
  %v1045 = vpack.c.b16 %v1034, %v1033
  %v1046 = vpack.c.b16 %v1036, %v1035
  %v1047 = vpack.c.b16 %v1038, %v1037
  %v1048 = vpack.c.b16 %v1040, %v1039
  %1057 = vmatprep.subr.bf16.mxu0 0
  %1058 = vmatpush1.bf16.msra.mxu0 %v1048
  %1059 = vmatprep.subr.bf16.mxu0 0
  %1060 = vmatpush1.bf16.msra.mxu0 %v1047
  %1061 = vmatprep.subr.bf16.mxu0 0
  %1062 = vmatpush1.bf16.msra.mxu0 %v1046
  %1063 = vmatprep.subr.bf16.mxu0 0
  %1064 = vmatpush1.bf16.msra.mxu0 %v1045
  %1065 = vmatprep.subr.bf16.mxu0 0
  %1066 = vmatpush1.bf16.msra.mxu0 %v1044
  %1067 = vmatprep.subr.bf16.mxu0 0
  %1068 = vmatpush1.bf16.msra.mxu0 %v1043
  %1069 = vmatprep.subr.bf16.mxu0 0
  %1070 = vmatpush1.bf16.msra.mxu0 %v1042
  %1071 = vmatprep.subr.bf16.mxu0 0
  %1072 = vmatpush1.bf16.msra.mxu0 %v1041
  %1073 = vmatprep.subr.bf16.mxu0 0
  %1074 = vmatpush2.bf16.msra.mxu0 0
  %1075 = vmatprep.subr.bf16.mxu0 0
  %1076 = vmatpush2.bf16.msra.mxu0 0
  %1077 = vmatprep.subr.bf16.mxu0 0
  %1078 = vmatpush2.bf16.msra.mxu0 0
  %1079 = vmatprep.subr.bf16.mxu0 0
  %1080 = vmatpush2.bf16.msra.mxu0 0
  %1081 = vmatprep.subr.bf16.mxu0 0
  %1082 = vmatpush2.bf16.msra.mxu0 0
  %1083 = vmatprep.subr.bf16.mxu0 0
  %1084 = vmatpush2.bf16.msra.mxu0 0
  %1085 = vmatprep.subr.bf16.mxu0 0
  %1086 = vmatpush2.bf16.msra.mxu0 0
  %1087 = vmatprep.subr.bf16.mxu0 0
  %1088 = vmatpush2.bf16.msra.mxu0 0
  %1089 = vmatprep.mubr.bf16.mxu0 0
  %1090 = vmatmul.mubr.bf16.gmra.mxu0 %v958
  %v1091 = vpop.f32.mrf.mxu0
  %v1092 = vadd.f32 0.0, %v1091
  %v1093 = vpop.f32.mrf.mxu0
  %v1094 = vpop.f32.mrf.mxu0
  %v1095 = vadd.f32 0.0, %v1094
  %v1096 = vpop.f32.mrf.mxu0
  %1097 = vmatprep.mubr.bf16.mxu0 0
  %1098 = vmatmul.mubr.bf16.gmra.mxu0 %v966
  %v1099 = vpop.f32.mrf.mxu0
  %v1100 = vadd.f32 0.0, %v1099
  %v1101 = vpop.f32.mrf.mxu0
  %v1102 = vpop.f32.mrf.mxu0
  %v1103 = vadd.f32 0.0, %v1102
  %v1104 = vpop.f32.mrf.mxu0
  %1105 = vmatprep.mubr.bf16.mxu0 0
  %1106 = vmatmul.mubr.bf16.gmra.mxu0 %v974
  %v1107 = vpop.f32.mrf.mxu0
  %v1108 = vadd.f32 0.0, %v1107
  %v1109 = vpop.f32.mrf.mxu0
  %v1110 = vpop.f32.mrf.mxu0
  %v1111 = vadd.f32 0.0, %v1110
  %v1112 = vpop.f32.mrf.mxu0
  %1113 = vmatprep.mubr.bf16.mxu0 0
  %1114 = vmatmul.mubr.bf16.gmra.mxu0 %v982
  %v1115 = vpop.f32.mrf.mxu0
  %v1116 = vadd.f32 0.0, %v1115
  %v1117 = vpop.f32.mrf.mxu0
  %v1118 = vpop.f32.mrf.mxu0
  %v1119 = vadd.f32 0.0, %v1118
  %v1120 = vpop.f32.mrf.mxu0
  %1121 = vmatprep.mubr.bf16.mxu0 0
  %1122 = vmatmul.mubr.bf16.gmra.mxu0 %v990
  %v1123 = vpop.f32.mrf.mxu0
  %v1124 = vadd.f32 0.0, %v1123
  %v1125 = vpop.f32.mrf.mxu0
  %v1126 = vpop.f32.mrf.mxu0
  %v1127 = vadd.f32 0.0, %v1126
  %v1128 = vpop.f32.mrf.mxu0
  %1129 = vmatprep.mubr.bf16.mxu0 0
  %1130 = vmatmul.mubr.bf16.gmra.mxu0 %v998
  %v1131 = vpop.f32.mrf.mxu0
  %v1132 = vadd.f32 0.0, %v1131
  %v1133 = vpop.f32.mrf.mxu0
  %v1134 = vpop.f32.mrf.mxu0
  %v1135 = vadd.f32 0.0, %v1134
  %v1136 = vpop.f32.mrf.mxu0
  %1137 = vmatprep.mubr.bf16.mxu0 0
  %1138 = vmatmul.mubr.bf16.gmra.mxu0 %v1001
  %v1139 = vpop.f32.mrf.mxu0
  %v1140 = vadd.f32 0.0, %v1139
  %v1141 = vpop.f32.mrf.mxu0
  %v1142 = vpop.f32.mrf.mxu0
  %v1143 = vpop.f32.mrf.mxu0
  %1144 = vdwg.mxu0
  %v1161 = vunpack.c.l.b16 %v912
  %v1162 = vunpack.c.l.b16 %v913
  %v1163 = vunpack.c.l.b16 %v914
  %v1164 = vunpack.c.l.b16 %v915
  %v1165 = vunpack.c.l.b16 %v916
  %v1166 = vunpack.c.l.b16 %v917
  %v1167 = vunpack.c.l.b16 %v918
  %v1168 = vunpack.c.l.b16 %v919
  %v1169 = vunpack.c.l.b16 %v920
  %v1170 = vunpack.c.l.b16 %v921
  %v1171 = vunpack.c.l.b16 %v922
  %v1172 = vunpack.c.l.b16 %v923
  %v1173 = vunpack.c.l.b16 %v924
  %v1174 = vunpack.c.l.b16 %v925
  %v1175 = vunpack.c.l.b16 %v926
  %v1176 = vunpack.c.l.b16 %v927
  %v1177 = vpack.c.b16 %v1162, %v1161
  %v1178 = vpack.c.b16 %v1164, %v1163
  %v1179 = vpack.c.b16 %v1166, %v1165
  %v1180 = vpack.c.b16 %v1168, %v1167
  %v1181 = vpack.c.b16 %v1170, %v1169
  %v1182 = vpack.c.b16 %v1172, %v1171
  %v1183 = vpack.c.b16 %v1174, %v1173
  %v1184 = vpack.c.b16 %v1176, %v1175
  %1193 = vmatprep.subr.bf16.mxu0 0
  %1194 = vmatpush1.bf16.msra.mxu0 %v1184
  %1195 = vmatprep.subr.bf16.mxu0 0
  %1196 = vmatpush1.bf16.msra.mxu0 %v1183
  %1197 = vmatprep.subr.bf16.mxu0 0
  %1198 = vmatpush1.bf16.msra.mxu0 %v1182
  %1199 = vmatprep.subr.bf16.mxu0 0
  %1200 = vmatpush1.bf16.msra.mxu0 %v1181
  %1201 = vmatprep.subr.bf16.mxu0 0
  %1202 = vmatpush1.bf16.msra.mxu0 %v1180
  %1203 = vmatprep.subr.bf16.mxu0 0
  %1204 = vmatpush1.bf16.msra.mxu0 %v1179
  %1205 = vmatprep.subr.bf16.mxu0 0
  %1206 = vmatpush1.bf16.msra.mxu0 %v1178
  %1207 = vmatprep.subr.bf16.mxu0 0
  %1208 = vmatpush1.bf16.msra.mxu0 %v1177
  %1209 = vmatprep.subr.bf16.mxu0 0
  %1210 = vmatpush2.bf16.msra.mxu0 0
  %1211 = vmatprep.subr.bf16.mxu0 0
  %1212 = vmatpush2.bf16.msra.mxu0 0
  %1213 = vmatprep.subr.bf16.mxu0 0
  %1214 = vmatpush2.bf16.msra.mxu0 0
  %1215 = vmatprep.subr.bf16.mxu0 0
  %1216 = vmatpush2.bf16.msra.mxu0 0
  %1217 = vmatprep.subr.bf16.mxu0 0
  %1218 = vmatpush2.bf16.msra.mxu0 0
  %1219 = vmatprep.subr.bf16.mxu0 0
  %1220 = vmatpush2.bf16.msra.mxu0 0
  %1221 = vmatprep.subr.bf16.mxu0 0
  %1222 = vmatpush2.bf16.msra.mxu0 0
  %1223 = vmatprep.subr.bf16.mxu0 0
  %1224 = vmatpush2.bf16.msra.mxu0 0
  %1225 = vmatprep.mubr.bf16.mxu0 0
  %1226 = vmatmul.mubr.bf16.gmra.mxu0 %v905
  %v1227 = vpop.f32.mrf.mxu0
  %v1228 = vadd.f32 %v1092, %v1227
  %v1229 = vpop.f32.mrf.mxu0
  %v1230 = vpop.f32.mrf.mxu0
  %v1231 = vadd.f32 %v1095, %v1230
  %v1232 = vpop.f32.mrf.mxu0
  %1233 = vmatprep.mubr.bf16.mxu0 0
  %1234 = vmatmul.mubr.bf16.gmra.mxu0 %v906
  %v1235 = vpop.f32.mrf.mxu0
  %v1236 = vadd.f32 %v1100, %v1235
  %v1237 = vpop.f32.mrf.mxu0
  %v1238 = vpop.f32.mrf.mxu0
  %v1239 = vadd.f32 %v1103, %v1238
  %v1240 = vpop.f32.mrf.mxu0
  %1241 = vmatprep.mubr.bf16.mxu0 0
  %1242 = vmatmul.mubr.bf16.gmra.mxu0 %v907
  %v1243 = vpop.f32.mrf.mxu0
  %v1244 = vadd.f32 %v1108, %v1243
  %v1245 = vpop.f32.mrf.mxu0
  %v1246 = vpop.f32.mrf.mxu0
  %v1247 = vadd.f32 %v1111, %v1246
  %v1248 = vpop.f32.mrf.mxu0
  %1249 = vmatprep.mubr.bf16.mxu0 0
  %1250 = vmatmul.mubr.bf16.gmra.mxu0 %v908
  %v1251 = vpop.f32.mrf.mxu0
  %v1252 = vadd.f32 %v1116, %v1251
  %v1253 = vpop.f32.mrf.mxu0
  %v1254 = vpop.f32.mrf.mxu0
  %v1255 = vadd.f32 %v1119, %v1254
  %v1256 = vpop.f32.mrf.mxu0
  %1257 = vmatprep.mubr.bf16.mxu0 0
  %1258 = vmatmul.mubr.bf16.gmra.mxu0 %v909
  %v1259 = vpop.f32.mrf.mxu0
  %v1260 = vadd.f32 %v1124, %v1259
  %v1261 = vpop.f32.mrf.mxu0
  %v1262 = vpop.f32.mrf.mxu0
  %v1263 = vadd.f32 %v1127, %v1262
  %v1264 = vpop.f32.mrf.mxu0
  %1265 = vmatprep.mubr.bf16.mxu0 0
  %1266 = vmatmul.mubr.bf16.gmra.mxu0 %v910
  %v1267 = vpop.f32.mrf.mxu0
  %v1268 = vadd.f32 %v1132, %v1267
  %v1269 = vpop.f32.mrf.mxu0
  %v1270 = vpop.f32.mrf.mxu0
  %v1271 = vadd.f32 %v1135, %v1270
  %v1272 = vpop.f32.mrf.mxu0
  %1273 = vmatprep.mubr.bf16.mxu0 0
  %1274 = vmatmul.mubr.bf16.gmra.mxu0 %v911
  %v1275 = vpop.f32.mrf.mxu0
  %v1276 = vadd.f32 %v1140, %v1275
  %v1277 = vpop.f32.mrf.mxu0
  %v1278 = vpop.f32.mrf.mxu0
  %v1279 = vpop.f32.mrf.mxu0
  %1280 = vdwg.mxu0
  %s1281 = scalar_lea.vmem %s2, 128
  %v1282 = vld [vmem:[%s1281] sm:$0xf]
  %v1283 = vld [vmem:[%s1281 + $0x4] sm:$0xf]
  %v1284 = vld [vmem:[%s1281 + $0x8] sm:$0xf]
  %v1285 = vld [vmem:[%s1281 + $0xc] sm:$0xf]
  %v1286 = vld [vmem:[%s1281 + $0x10] sm:$0xf]
  %v1287 = vld [vmem:[%s1281 + $0x14] sm:$0xf]
  %v1288 = vld [vmem:[%s1281 + $0x18] sm:$0xf]
  %v1289 = vld [vmem:[%s1281 + $0x1c] sm:$0xf]
  %v1290 = vld [vmem:[%s1281 + $0x20] sm:$0xf]
  %v1291 = vld [vmem:[%s1281 + $0x24] sm:$0xf]
  %v1292 = vld [vmem:[%s1281 + $0x28] sm:$0xf]
  %v1293 = vld [vmem:[%s1281 + $0x2c] sm:$0xf]
  %v1294 = vld [vmem:[%s1281 + $0x30] sm:$0xf]
  %v1295 = vld [vmem:[%s1281 + $0x34] sm:$0xf]
  %v1296 = vld [vmem:[%s1281 + $0x38] sm:$0xf]
  %v1297 = vld [vmem:[%s1281 + $0x3c] sm:$0xf]
  %vm1305 = vcmask 1046528
  %v1306 = vrot.slane %v905, 1
  %v1307 = vrot.slane %v906, 1
  %v1308 = vsel %vm1305, %v1306, %v1307
  %v1309 = vrot.slane %v907, 1
  %v1310 = vsel %vm1305, %v1307, %v1309
  %v1311 = vrot.slane %v908, 1
  %v1312 = vsel %vm1305, %v1309, %v1311
  %v1313 = vrot.slane %v909, 1
  %v1314 = vsel %vm1305, %v1311, %v1313
  %v1315 = vrot.slane %v910, 1
  %v1316 = vsel %vm1305, %v1313, %v1315
  %v1317 = vrot.slane %v928, 1
  %v1318 = vsel %vm1305, %v1315, %v1317
  %v1342 = vunpack.c.l.b16 %v1282
  %v1343 = vunpack.c.l.b16 %v1283
  %v1344 = vunpack.c.l.b16 %v1284
  %v1345 = vunpack.c.l.b16 %v1285
  %v1346 = vunpack.c.l.b16 %v1286
  %v1347 = vunpack.c.l.b16 %v1287
  %v1348 = vunpack.c.l.b16 %v1288
  %v1349 = vunpack.c.l.b16 %v1289
  %v1350 = vunpack.c.l.b16 %v1290
  %v1351 = vunpack.c.l.b16 %v1291
  %v1352 = vunpack.c.l.b16 %v1292
  %v1353 = vunpack.c.l.b16 %v1293
  %v1354 = vunpack.c.l.b16 %v1294
  %v1355 = vunpack.c.l.b16 %v1295
  %v1356 = vunpack.c.l.b16 %v1296
  %v1357 = vunpack.c.l.b16 %v1297
  %v1358 = vpack.c.b16 %v1343, %v1342
  %v1359 = vpack.c.b16 %v1345, %v1344
  %v1360 = vpack.c.b16 %v1347, %v1346
  %v1361 = vpack.c.b16 %v1349, %v1348
  %v1362 = vpack.c.b16 %v1351, %v1350
  %v1363 = vpack.c.b16 %v1353, %v1352
  %v1364 = vpack.c.b16 %v1355, %v1354
  %v1365 = vpack.c.b16 %v1357, %v1356
  %1374 = vmatprep.subr.bf16.mxu0 0
  %1375 = vmatpush1.bf16.msra.mxu0 %v1365
  %1376 = vmatprep.subr.bf16.mxu0 0
  %1377 = vmatpush1.bf16.msra.mxu0 %v1364
  %1378 = vmatprep.subr.bf16.mxu0 0
  %1379 = vmatpush1.bf16.msra.mxu0 %v1363
  %1380 = vmatprep.subr.bf16.mxu0 0
  %1381 = vmatpush1.bf16.msra.mxu0 %v1362
  %1382 = vmatprep.subr.bf16.mxu0 0
  %1383 = vmatpush1.bf16.msra.mxu0 %v1361
  %1384 = vmatprep.subr.bf16.mxu0 0
  %1385 = vmatpush1.bf16.msra.mxu0 %v1360
  %1386 = vmatprep.subr.bf16.mxu0 0
  %1387 = vmatpush1.bf16.msra.mxu0 %v1359
  %1388 = vmatprep.subr.bf16.mxu0 0
  %1389 = vmatpush1.bf16.msra.mxu0 %v1358
  %1390 = vmatprep.subr.bf16.mxu0 0
  %1391 = vmatpush2.bf16.msra.mxu0 0
  %1392 = vmatprep.subr.bf16.mxu0 0
  %1393 = vmatpush2.bf16.msra.mxu0 0
  %1394 = vmatprep.subr.bf16.mxu0 0
  %1395 = vmatpush2.bf16.msra.mxu0 0
  %1396 = vmatprep.subr.bf16.mxu0 0
  %1397 = vmatpush2.bf16.msra.mxu0 0
  %1398 = vmatprep.subr.bf16.mxu0 0
  %1399 = vmatpush2.bf16.msra.mxu0 0
  %1400 = vmatprep.subr.bf16.mxu0 0
  %1401 = vmatpush2.bf16.msra.mxu0 0
  %1402 = vmatprep.subr.bf16.mxu0 0
  %1403 = vmatpush2.bf16.msra.mxu0 0
  %1404 = vmatprep.subr.bf16.mxu0 0
  %1405 = vmatpush2.bf16.msra.mxu0 0
  %1406 = vmatprep.mubr.bf16.mxu0 0
  %1407 = vmatmul.mubr.bf16.gmra.mxu0 %v1308
  %v1408 = vpop.f32.mrf.mxu0
  %v1409 = vadd.f32 0.0, %v1408
  %v1410 = vpop.f32.mrf.mxu0
  %v1411 = vpop.f32.mrf.mxu0
  %v1412 = vadd.f32 0.0, %v1411
  %v1413 = vpop.f32.mrf.mxu0
  %1414 = vmatprep.mubr.bf16.mxu0 0
  %1415 = vmatmul.mubr.bf16.gmra.mxu0 %v1310
  %v1416 = vpop.f32.mrf.mxu0
  %v1417 = vadd.f32 0.0, %v1416
  %v1418 = vpop.f32.mrf.mxu0
  %v1419 = vpop.f32.mrf.mxu0
  %v1420 = vadd.f32 0.0, %v1419
  %v1421 = vpop.f32.mrf.mxu0
  %1422 = vmatprep.mubr.bf16.mxu0 0
  %1423 = vmatmul.mubr.bf16.gmra.mxu0 %v1312
  %v1424 = vpop.f32.mrf.mxu0
  %v1425 = vadd.f32 0.0, %v1424
  %v1426 = vpop.f32.mrf.mxu0
  %v1427 = vpop.f32.mrf.mxu0
  %v1428 = vadd.f32 0.0, %v1427
  %v1429 = vpop.f32.mrf.mxu0
  %1430 = vmatprep.mubr.bf16.mxu0 0
  %1431 = vmatmul.mubr.bf16.gmra.mxu0 %v1314
  %v1432 = vpop.f32.mrf.mxu0
  %v1433 = vadd.f32 0.0, %v1432
  %v1434 = vpop.f32.mrf.mxu0
  %v1435 = vpop.f32.mrf.mxu0
  %v1436 = vadd.f32 0.0, %v1435
  %v1437 = vpop.f32.mrf.mxu0
  %1438 = vmatprep.mubr.bf16.mxu0 0
  %1439 = vmatmul.mubr.bf16.gmra.mxu0 %v1316
  %v1440 = vpop.f32.mrf.mxu0
  %v1441 = vadd.f32 0.0, %v1440
  %v1442 = vpop.f32.mrf.mxu0
  %v1443 = vpop.f32.mrf.mxu0
  %v1444 = vadd.f32 0.0, %v1443
  %v1445 = vpop.f32.mrf.mxu0
  %1446 = vmatprep.mubr.bf16.mxu0 0
  %1447 = vmatmul.mubr.bf16.gmra.mxu0 %v1318
  %v1448 = vpop.f32.mrf.mxu0
  %v1449 = vadd.f32 0.0, %v1448
  %v1450 = vpop.f32.mrf.mxu0
  %v1451 = vpop.f32.mrf.mxu0
  %v1452 = vadd.f32 0.0, %v1451
  %v1453 = vpop.f32.mrf.mxu0
  %1454 = vmatprep.mubr.bf16.mxu0 0
  %1455 = vmatmul.mubr.bf16.gmra.mxu0 %v1317
  %v1456 = vpop.f32.mrf.mxu0
  %v1457 = vadd.f32 0.0, %v1456
  %v1458 = vpop.f32.mrf.mxu0
  %v1459 = vpop.f32.mrf.mxu0
  %v1460 = vpop.f32.mrf.mxu0
  %1461 = vdwg.mxu0
  %v1462 = vadd.f32 %v1228, %v1409
  %v1463 = vadd.f32 %v1231, %v1412
  %v1464 = vadd.f32 %v1236, %v1417
  %v1465 = vadd.f32 %v1239, %v1420
  %v1466 = vadd.f32 %v1244, %v1425
  %v1467 = vadd.f32 %v1247, %v1428
  %v1468 = vadd.f32 %v1252, %v1433
  %v1469 = vadd.f32 %v1255, %v1436
  %v1470 = vadd.f32 %v1260, %v1441
  %v1471 = vadd.f32 %v1263, %v1444
  %v1472 = vadd.f32 %v1268, %v1449
  %v1473 = vadd.f32 %v1271, %v1452
  %v1474 = vadd.f32 %v1276, %v1457
  %v1475 = vpack.c.bf16 %v891, %v890
  %v1476 = vpack.c.bf16 %v893, %v892
  %v1477 = vpack.c.bf16 %v895, %v894
  %v1478 = vpack.c.bf16 %v897, %v896
  %v1479 = vpack.c.bf16 %v899, %v898
  %v1480 = vpack.c.bf16 %v901, %v900
  %v1481 = vpack.c.bf16 %v903, %v902
  %s1482 = scalar_lea.vmem %s2, 192
  %v1483 = vld [vmem:[%s1482] sm:$0xf]
  %v1484 = vld [vmem:[%s1482 + $0x4] sm:$0xf]
  %v1485 = vld [vmem:[%s1482 + $0x8] sm:$0xf]
  %v1486 = vld [vmem:[%s1482 + $0xc] sm:$0xf]
  %v1487 = vld [vmem:[%s1482 + $0x10] sm:$0xf]
  %v1488 = vld [vmem:[%s1482 + $0x14] sm:$0xf]
  %v1489 = vld [vmem:[%s1482 + $0x18] sm:$0xf]
  %v1490 = vld [vmem:[%s1482 + $0x1c] sm:$0xf]
  %v1491 = vld [vmem:[%s1482 + $0x20] sm:$0xf]
  %v1492 = vld [vmem:[%s1482 + $0x24] sm:$0xf]
  %v1493 = vld [vmem:[%s1482 + $0x28] sm:$0xf]
  %v1494 = vld [vmem:[%s1482 + $0x2c] sm:$0xf]
  %v1495 = vld [vmem:[%s1482 + $0x30] sm:$0xf]
  %v1496 = vld [vmem:[%s1482 + $0x34] sm:$0xf]
  %v1497 = vld [vmem:[%s1482 + $0x38] sm:$0xf]
  %v1498 = vld [vmem:[%s1482 + $0x3c] sm:$0xf]
  %v1506 = vrot.slane %v1475, 1
  %v1507 = vrot.slane %v1476, 1
  %v1508 = vsel %vm1305, %v1506, %v1507
  %v1509 = vrot.slane %v1477, 1
  %v1510 = vsel %vm1305, %v1507, %v1509
  %v1511 = vrot.slane %v1478, 1
  %v1512 = vsel %vm1305, %v1509, %v1511
  %v1513 = vrot.slane %v1479, 1
  %v1514 = vsel %vm1305, %v1511, %v1513
  %v1515 = vrot.slane %v1480, 1
  %v1516 = vsel %vm1305, %v1513, %v1515
  %v1517 = vrot.slane %v1481, 1
  %v1518 = vsel %vm1305, %v1515, %v1517
  %v1542 = vunpack.c.l.b16 %v1483
  %v1543 = vunpack.c.l.b16 %v1484
  %v1544 = vunpack.c.l.b16 %v1485
  %v1545 = vunpack.c.l.b16 %v1486
  %v1546 = vunpack.c.l.b16 %v1487
  %v1547 = vunpack.c.l.b16 %v1488
  %v1548 = vunpack.c.l.b16 %v1489
  %v1549 = vunpack.c.l.b16 %v1490
  %v1550 = vunpack.c.l.b16 %v1491
  %v1551 = vunpack.c.l.b16 %v1492
  %v1552 = vunpack.c.l.b16 %v1493
  %v1553 = vunpack.c.l.b16 %v1494
  %v1554 = vunpack.c.l.b16 %v1495
  %v1555 = vunpack.c.l.b16 %v1496
  %v1556 = vunpack.c.l.b16 %v1497
  %v1557 = vunpack.c.l.b16 %v1498
  %v1558 = vpack.c.b16 %v1543, %v1542
  %v1559 = vpack.c.b16 %v1545, %v1544
  %v1560 = vpack.c.b16 %v1547, %v1546
  %v1561 = vpack.c.b16 %v1549, %v1548
  %v1562 = vpack.c.b16 %v1551, %v1550
  %v1563 = vpack.c.b16 %v1553, %v1552
  %v1564 = vpack.c.b16 %v1555, %v1554
  %v1565 = vpack.c.b16 %v1557, %v1556
  %1574 = vmatprep.subr.bf16.mxu0 0
  %1575 = vmatpush1.bf16.msra.mxu0 %v1565
  %1576 = vmatprep.subr.bf16.mxu0 0
  %1577 = vmatpush1.bf16.msra.mxu0 %v1564
  %1578 = vmatprep.subr.bf16.mxu0 0
  %1579 = vmatpush1.bf16.msra.mxu0 %v1563
  %1580 = vmatprep.subr.bf16.mxu0 0
  %1581 = vmatpush1.bf16.msra.mxu0 %v1562
  %1582 = vmatprep.subr.bf16.mxu0 0
  %1583 = vmatpush1.bf16.msra.mxu0 %v1561
  %1584 = vmatprep.subr.bf16.mxu0 0
  %1585 = vmatpush1.bf16.msra.mxu0 %v1560
  %1586 = vmatprep.subr.bf16.mxu0 0
  %1587 = vmatpush1.bf16.msra.mxu0 %v1559
  %1588 = vmatprep.subr.bf16.mxu0 0
  %1589 = vmatpush1.bf16.msra.mxu0 %v1558
  %1590 = vmatprep.subr.bf16.mxu0 0
  %1591 = vmatpush2.bf16.msra.mxu0 0
  %1592 = vmatprep.subr.bf16.mxu0 0
  %1593 = vmatpush2.bf16.msra.mxu0 0
  %1594 = vmatprep.subr.bf16.mxu0 0
  %1595 = vmatpush2.bf16.msra.mxu0 0
  %1596 = vmatprep.subr.bf16.mxu0 0
  %1597 = vmatpush2.bf16.msra.mxu0 0
  %1598 = vmatprep.subr.bf16.mxu0 0
  %1599 = vmatpush2.bf16.msra.mxu0 0
  %1600 = vmatprep.subr.bf16.mxu0 0
  %1601 = vmatpush2.bf16.msra.mxu0 0
  %1602 = vmatprep.subr.bf16.mxu0 0
  %1603 = vmatpush2.bf16.msra.mxu0 0
  %1604 = vmatprep.subr.bf16.mxu0 0
  %1605 = vmatpush2.bf16.msra.mxu0 0
  %1606 = vmatprep.mubr.bf16.mxu0 0
  %1607 = vmatmul.mubr.bf16.gmra.mxu0 %v1508
  %v1608 = vpop.f32.mrf.mxu0
  %v1609 = vadd.f32 0.0, %v1608
  %v1610 = vpop.f32.mrf.mxu0
  %v1611 = vpop.f32.mrf.mxu0
  %v1612 = vadd.f32 0.0, %v1611
  %v1613 = vpop.f32.mrf.mxu0
  %1614 = vmatprep.mubr.bf16.mxu0 0
  %1615 = vmatmul.mubr.bf16.gmra.mxu0 %v1510
  %v1616 = vpop.f32.mrf.mxu0
  %v1617 = vadd.f32 0.0, %v1616
  %v1618 = vpop.f32.mrf.mxu0
  %v1619 = vpop.f32.mrf.mxu0
  %v1620 = vadd.f32 0.0, %v1619
  %v1621 = vpop.f32.mrf.mxu0
  %1622 = vmatprep.mubr.bf16.mxu0 0
  %1623 = vmatmul.mubr.bf16.gmra.mxu0 %v1512
  %v1624 = vpop.f32.mrf.mxu0
  %v1625 = vadd.f32 0.0, %v1624
  %v1626 = vpop.f32.mrf.mxu0
  %v1627 = vpop.f32.mrf.mxu0
  %v1628 = vadd.f32 0.0, %v1627
  %v1629 = vpop.f32.mrf.mxu0
  %1630 = vmatprep.mubr.bf16.mxu0 0
  %1631 = vmatmul.mubr.bf16.gmra.mxu0 %v1514
  %v1632 = vpop.f32.mrf.mxu0
  %v1633 = vadd.f32 0.0, %v1632
  %v1634 = vpop.f32.mrf.mxu0
  %v1635 = vpop.f32.mrf.mxu0
  %v1636 = vadd.f32 0.0, %v1635
  %v1637 = vpop.f32.mrf.mxu0
  %1638 = vmatprep.mubr.bf16.mxu0 0
  %1639 = vmatmul.mubr.bf16.gmra.mxu0 %v1516
  %v1640 = vpop.f32.mrf.mxu0
  %v1641 = vadd.f32 0.0, %v1640
  %v1642 = vpop.f32.mrf.mxu0
  %v1643 = vpop.f32.mrf.mxu0
  %v1644 = vadd.f32 0.0, %v1643
  %v1645 = vpop.f32.mrf.mxu0
  %1646 = vmatprep.mubr.bf16.mxu0 0
  %1647 = vmatmul.mubr.bf16.gmra.mxu0 %v1518
  %v1648 = vpop.f32.mrf.mxu0
  %v1649 = vadd.f32 0.0, %v1648
  %v1650 = vpop.f32.mrf.mxu0
  %v1651 = vpop.f32.mrf.mxu0
  %v1652 = vadd.f32 0.0, %v1651
  %v1653 = vpop.f32.mrf.mxu0
  %1654 = vmatprep.mubr.bf16.mxu0 0
  %1655 = vmatmul.mubr.bf16.gmra.mxu0 %v1517
  %v1656 = vpop.f32.mrf.mxu0
  %v1657 = vadd.f32 0.0, %v1656
  %v1658 = vpop.f32.mrf.mxu0
  %v1659 = vpop.f32.mrf.mxu0
  %v1660 = vpop.f32.mrf.mxu0
  %1661 = vdwg.mxu0
  %v1662 = vadd.f32 %v1462, %v1609
  %v1663 = vadd.f32 %v1463, %v1612
  %v1664 = vadd.f32 %v1464, %v1617
  %v1665 = vadd.f32 %v1465, %v1620
  %v1666 = vadd.f32 %v1466, %v1625
  %v1667 = vadd.f32 %v1467, %v1628
  %v1668 = vadd.f32 %v1468, %v1633
  %v1669 = vadd.f32 %v1469, %v1636
  %v1670 = vadd.f32 %v1470, %v1641
  %v1671 = vadd.f32 %v1471, %v1644
  %v1672 = vadd.f32 %v1472, %v1649
  %v1673 = vadd.f32 %v1473, %v1652
  %v1674 = vadd.f32 %v1474, %v1657
  %s1675 = scalar_lea.vmem %s2, 256
  %v1676 = vld [vmem:[%s1675] sm:$0xf]
  %v1677 = vld [vmem:[%s1675 + $0x4] sm:$0xf]
  %v1678 = vld [vmem:[%s1675 + $0x8] sm:$0xf]
  %v1679 = vld [vmem:[%s1675 + $0xc] sm:$0xf]
  %v1680 = vld [vmem:[%s1675 + $0x10] sm:$0xf]
  %v1681 = vld [vmem:[%s1675 + $0x14] sm:$0xf]
  %v1682 = vld [vmem:[%s1675 + $0x18] sm:$0xf]
  %v1683 = vld [vmem:[%s1675 + $0x1c] sm:$0xf]
  %v1684 = vld [vmem:[%s1675 + $0x20] sm:$0xf]
  %v1685 = vld [vmem:[%s1675 + $0x24] sm:$0xf]
  %v1686 = vld [vmem:[%s1675 + $0x28] sm:$0xf]
  %v1687 = vld [vmem:[%s1675 + $0x2c] sm:$0xf]
  %v1688 = vld [vmem:[%s1675 + $0x30] sm:$0xf]
  %v1689 = vld [vmem:[%s1675 + $0x34] sm:$0xf]
  %v1690 = vld [vmem:[%s1675 + $0x38] sm:$0xf]
  %v1691 = vld [vmem:[%s1675 + $0x3c] sm:$0xf]
  %vm1692 = vsmask.f32 6400
  %v1694 = vshrl.u32 %v1475, 16
  %v1696 = vrot.slane %v1694, 1
  %v1697 = vshll.u32 %v1475, 16
  %v1699 = vrot.slane %v1697, 2
  %v1700 = vor.u32 %v1696, %v1699
  %v1702 = vshrl.u32 %v1476, 16
  %v1704 = vrot.slane %v1702, 1
  %v1705 = vshll.u32 %v1476, 16
  %v1707 = vrot.slane %v1705, 2
  %v1708 = vor.u32 %v1704, %v1707
  %v1709 = vsel %vm1692, %v1700, %v1708
  %v1711 = vshrl.u32 %v1477, 16
  %v1713 = vrot.slane %v1711, 1
  %v1714 = vshll.u32 %v1477, 16
  %v1716 = vrot.slane %v1714, 2
  %v1717 = vor.u32 %v1713, %v1716
  %v1718 = vsel %vm1692, %v1708, %v1717
  %v1720 = vshrl.u32 %v1478, 16
  %v1722 = vrot.slane %v1720, 1
  %v1723 = vshll.u32 %v1478, 16
  %v1725 = vrot.slane %v1723, 2
  %v1726 = vor.u32 %v1722, %v1725
  %v1727 = vsel %vm1692, %v1717, %v1726
  %v1729 = vshrl.u32 %v1479, 16
  %v1731 = vrot.slane %v1729, 1
  %v1732 = vshll.u32 %v1479, 16
  %v1734 = vrot.slane %v1732, 2
  %v1735 = vor.u32 %v1731, %v1734
  %v1736 = vsel %vm1692, %v1726, %v1735
  %v1738 = vshrl.u32 %v1480, 16
  %v1740 = vrot.slane %v1738, 1
  %v1741 = vshll.u32 %v1480, 16
  %v1743 = vrot.slane %v1741, 2
  %v1744 = vor.u32 %v1740, %v1743
  %v1745 = vsel %vm1692, %v1735, %v1744
  %v1747 = vshrl.u32 %v1481, 16
  %v1749 = vrot.slane %v1747, 1
  %v1750 = vshll.u32 %v1481, 16
  %v1752 = vrot.slane %v1750, 2
  %v1753 = vor.u32 %v1749, %v1752
  %v1754 = vsel %vm1692, %v1744, %v1753
  %v1778 = vunpack.c.l.b16 %v1676
  %v1779 = vunpack.c.l.b16 %v1677
  %v1780 = vunpack.c.l.b16 %v1678
  %v1781 = vunpack.c.l.b16 %v1679
  %v1782 = vunpack.c.l.b16 %v1680
  %v1783 = vunpack.c.l.b16 %v1681
  %v1784 = vunpack.c.l.b16 %v1682
  %v1785 = vunpack.c.l.b16 %v1683
  %v1786 = vunpack.c.l.b16 %v1684
  %v1787 = vunpack.c.l.b16 %v1685
  %v1788 = vunpack.c.l.b16 %v1686
  %v1789 = vunpack.c.l.b16 %v1687
  %v1790 = vunpack.c.l.b16 %v1688
  %v1791 = vunpack.c.l.b16 %v1689
  %v1792 = vunpack.c.l.b16 %v1690
  %v1793 = vunpack.c.l.b16 %v1691
  %v1794 = vpack.c.b16 %v1779, %v1778
  %v1795 = vpack.c.b16 %v1781, %v1780
  %v1796 = vpack.c.b16 %v1783, %v1782
  %v1797 = vpack.c.b16 %v1785, %v1784
  %v1798 = vpack.c.b16 %v1787, %v1786
  %v1799 = vpack.c.b16 %v1789, %v1788
  %v1800 = vpack.c.b16 %v1791, %v1790
  %v1801 = vpack.c.b16 %v1793, %v1792
  %1810 = vmatprep.subr.bf16.mxu0 0
  %1811 = vmatpush1.bf16.msra.mxu0 %v1801
  %1812 = vmatprep.subr.bf16.mxu0 0
  %1813 = vmatpush1.bf16.msra.mxu0 %v1800
  %1814 = vmatprep.subr.bf16.mxu0 0
  %1815 = vmatpush1.bf16.msra.mxu0 %v1799
  %1816 = vmatprep.subr.bf16.mxu0 0
  %1817 = vmatpush1.bf16.msra.mxu0 %v1798
  %1818 = vmatprep.subr.bf16.mxu0 0
  %1819 = vmatpush1.bf16.msra.mxu0 %v1797
  %1820 = vmatprep.subr.bf16.mxu0 0
  %1821 = vmatpush1.bf16.msra.mxu0 %v1796
  %1822 = vmatprep.subr.bf16.mxu0 0
  %1823 = vmatpush1.bf16.msra.mxu0 %v1795
  %1824 = vmatprep.subr.bf16.mxu0 0
  %1825 = vmatpush1.bf16.msra.mxu0 %v1794
  %1826 = vmatprep.subr.bf16.mxu0 0
  %1827 = vmatpush2.bf16.msra.mxu0 0
  %1828 = vmatprep.subr.bf16.mxu0 0
  %1829 = vmatpush2.bf16.msra.mxu0 0
  %1830 = vmatprep.subr.bf16.mxu0 0
  %1831 = vmatpush2.bf16.msra.mxu0 0
  %1832 = vmatprep.subr.bf16.mxu0 0
  %1833 = vmatpush2.bf16.msra.mxu0 0
  %1834 = vmatprep.subr.bf16.mxu0 0
  %1835 = vmatpush2.bf16.msra.mxu0 0
  %1836 = vmatprep.subr.bf16.mxu0 0
  %1837 = vmatpush2.bf16.msra.mxu0 0
  %1838 = vmatprep.subr.bf16.mxu0 0
  %1839 = vmatpush2.bf16.msra.mxu0 0
  %1840 = vmatprep.subr.bf16.mxu0 0
  %1841 = vmatpush2.bf16.msra.mxu0 0
  %1842 = vmatprep.mubr.bf16.mxu0 0
  %1843 = vmatmul.mubr.bf16.gmra.mxu0 %v1709
  %v1844 = vpop.f32.mrf.mxu0
  %v1845 = vadd.f32 0.0, %v1844
  %v1846 = vpop.f32.mrf.mxu0
  %v1847 = vpop.f32.mrf.mxu0
  %v1848 = vadd.f32 0.0, %v1847
  %v1849 = vpop.f32.mrf.mxu0
  %1850 = vmatprep.mubr.bf16.mxu0 0
  %1851 = vmatmul.mubr.bf16.gmra.mxu0 %v1718
  %v1852 = vpop.f32.mrf.mxu0
  %v1853 = vadd.f32 0.0, %v1852
  %v1854 = vpop.f32.mrf.mxu0
  %v1855 = vpop.f32.mrf.mxu0
  %v1856 = vadd.f32 0.0, %v1855
  %v1857 = vpop.f32.mrf.mxu0
  %1858 = vmatprep.mubr.bf16.mxu0 0
  %1859 = vmatmul.mubr.bf16.gmra.mxu0 %v1727
  %v1860 = vpop.f32.mrf.mxu0
  %v1861 = vadd.f32 0.0, %v1860
  %v1862 = vpop.f32.mrf.mxu0
  %v1863 = vpop.f32.mrf.mxu0
  %v1864 = vadd.f32 0.0, %v1863
  %v1865 = vpop.f32.mrf.mxu0
  %1866 = vmatprep.mubr.bf16.mxu0 0
  %1867 = vmatmul.mubr.bf16.gmra.mxu0 %v1736
  %v1868 = vpop.f32.mrf.mxu0
  %v1869 = vadd.f32 0.0, %v1868
  %v1870 = vpop.f32.mrf.mxu0
  %v1871 = vpop.f32.mrf.mxu0
  %v1872 = vadd.f32 0.0, %v1871
  %v1873 = vpop.f32.mrf.mxu0
  %1874 = vmatprep.mubr.bf16.mxu0 0
  %1875 = vmatmul.mubr.bf16.gmra.mxu0 %v1745
  %v1876 = vpop.f32.mrf.mxu0
  %v1877 = vadd.f32 0.0, %v1876
  %v1878 = vpop.f32.mrf.mxu0
  %v1879 = vpop.f32.mrf.mxu0
  %v1880 = vadd.f32 0.0, %v1879
  %v1881 = vpop.f32.mrf.mxu0
  %1882 = vmatprep.mubr.bf16.mxu0 0
  %1883 = vmatmul.mubr.bf16.gmra.mxu0 %v1754
  %v1884 = vpop.f32.mrf.mxu0
  %v1885 = vadd.f32 0.0, %v1884
  %v1886 = vpop.f32.mrf.mxu0
  %v1887 = vpop.f32.mrf.mxu0
  %v1888 = vadd.f32 0.0, %v1887
  %v1889 = vpop.f32.mrf.mxu0
  %1890 = vmatprep.mubr.bf16.mxu0 0
  %1891 = vmatmul.mubr.bf16.gmra.mxu0 %v1753
  %v1892 = vpop.f32.mrf.mxu0
  %v1893 = vadd.f32 0.0, %v1892
  %v1894 = vpop.f32.mrf.mxu0
  %v1895 = vpop.f32.mrf.mxu0
  %v1896 = vpop.f32.mrf.mxu0
  %1897 = vdwg.mxu0
  %v1898 = vadd.f32 %v1662, %v1845
  %v1899 = vadd.f32 %v1663, %v1848
  %v1900 = vadd.f32 %v1664, %v1853
  %v1901 = vadd.f32 %v1665, %v1856
  %v1902 = vadd.f32 %v1666, %v1861
  %v1903 = vadd.f32 %v1667, %v1864
  %v1904 = vadd.f32 %v1668, %v1869
  %v1905 = vadd.f32 %v1669, %v1872
  %v1906 = vadd.f32 %v1670, %v1877
  %v1907 = vadd.f32 %v1671, %v1880
  %v1908 = vadd.f32 %v1672, %v1885
  %v1909 = vadd.f32 %v1673, %v1888
  %v1910 = vadd.f32 %v1674, %v1893
  %s1911 = scalar_lea.vmem %s2, 320
  %v1912 = vld [vmem:[%s1911] sm:$0xf]
  %v1913 = vld [vmem:[%s1911 + $0x4] sm:$0xf]
  %v1914 = vld [vmem:[%s1911 + $0x8] sm:$0xf]
  %v1915 = vld [vmem:[%s1911 + $0xc] sm:$0xf]
  %v1916 = vld [vmem:[%s1911 + $0x10] sm:$0xf]
  %v1917 = vld [vmem:[%s1911 + $0x14] sm:$0xf]
  %v1918 = vld [vmem:[%s1911 + $0x18] sm:$0xf]
  %v1919 = vld [vmem:[%s1911 + $0x1c] sm:$0xf]
  %v1920 = vld [vmem:[%s1911 + $0x20] sm:$0xf]
  %v1921 = vld [vmem:[%s1911 + $0x24] sm:$0xf]
  %v1922 = vld [vmem:[%s1911 + $0x28] sm:$0xf]
  %v1923 = vld [vmem:[%s1911 + $0x2c] sm:$0xf]
  %v1924 = vld [vmem:[%s1911 + $0x30] sm:$0xf]
  %v1925 = vld [vmem:[%s1911 + $0x34] sm:$0xf]
  %v1926 = vld [vmem:[%s1911 + $0x38] sm:$0xf]
  %v1927 = vld [vmem:[%s1911 + $0x3c] sm:$0xf]
  %vm1928 = vcmask 1045504
  %v1929 = vrot.slane %v1475, 2
  %v1930 = vrot.slane %v1476, 2
  %v1931 = vsel %vm1928, %v1929, %v1930
  %v1932 = vrot.slane %v1477, 2
  %v1933 = vsel %vm1928, %v1930, %v1932
  %v1934 = vrot.slane %v1478, 2
  %v1935 = vsel %vm1928, %v1932, %v1934
  %v1936 = vrot.slane %v1479, 2
  %v1937 = vsel %vm1928, %v1934, %v1936
  %v1938 = vrot.slane %v1480, 2
  %v1939 = vsel %vm1928, %v1936, %v1938
  %v1940 = vrot.slane %v1481, 2
  %v1941 = vsel %vm1928, %v1938, %v1940
  %v1965 = vunpack.c.l.b16 %v1912
  %v1966 = vunpack.c.l.b16 %v1913
  %v1967 = vunpack.c.l.b16 %v1914
  %v1968 = vunpack.c.l.b16 %v1915
  %v1969 = vunpack.c.l.b16 %v1916
  %v1970 = vunpack.c.l.b16 %v1917
  %v1971 = vunpack.c.l.b16 %v1918
  %v1972 = vunpack.c.l.b16 %v1919
  %v1973 = vunpack.c.l.b16 %v1920
  %v1974 = vunpack.c.l.b16 %v1921
  %v1975 = vunpack.c.l.b16 %v1922
  %v1976 = vunpack.c.l.b16 %v1923
  %v1977 = vunpack.c.l.b16 %v1924
  %v1978 = vunpack.c.l.b16 %v1925
  %v1979 = vunpack.c.l.b16 %v1926
  %v1980 = vunpack.c.l.b16 %v1927
  %v1981 = vpack.c.b16 %v1966, %v1965
  %v1982 = vpack.c.b16 %v1968, %v1967
  %v1983 = vpack.c.b16 %v1970, %v1969
  %v1984 = vpack.c.b16 %v1972, %v1971
  %v1985 = vpack.c.b16 %v1974, %v1973
  %v1986 = vpack.c.b16 %v1976, %v1975
  %v1987 = vpack.c.b16 %v1978, %v1977
  %v1988 = vpack.c.b16 %v1980, %v1979
  %1997 = vmatprep.subr.bf16.mxu0 0
  %1998 = vmatpush1.bf16.msra.mxu0 %v1988
  %1999 = vmatprep.subr.bf16.mxu0 0
  %2000 = vmatpush1.bf16.msra.mxu0 %v1987
  %2001 = vmatprep.subr.bf16.mxu0 0
  %2002 = vmatpush1.bf16.msra.mxu0 %v1986
  %2003 = vmatprep.subr.bf16.mxu0 0
  %2004 = vmatpush1.bf16.msra.mxu0 %v1985
  %2005 = vmatprep.subr.bf16.mxu0 0
  %2006 = vmatpush1.bf16.msra.mxu0 %v1984
  %2007 = vmatprep.subr.bf16.mxu0 0
  %2008 = vmatpush1.bf16.msra.mxu0 %v1983
  %2009 = vmatprep.subr.bf16.mxu0 0
  %2010 = vmatpush1.bf16.msra.mxu0 %v1982
  %2011 = vmatprep.subr.bf16.mxu0 0
  %2012 = vmatpush1.bf16.msra.mxu0 %v1981
  %2013 = vmatprep.subr.bf16.mxu0 0
  %2014 = vmatpush2.bf16.msra.mxu0 0
  %2015 = vmatprep.subr.bf16.mxu0 0
  %2016 = vmatpush2.bf16.msra.mxu0 0
  %2017 = vmatprep.subr.bf16.mxu0 0
  %2018 = vmatpush2.bf16.msra.mxu0 0
  %2019 = vmatprep.subr.bf16.mxu0 0
  %2020 = vmatpush2.bf16.msra.mxu0 0
  %2021 = vmatprep.subr.bf16.mxu0 0
  %2022 = vmatpush2.bf16.msra.mxu0 0
  %2023 = vmatprep.subr.bf16.mxu0 0
  %2024 = vmatpush2.bf16.msra.mxu0 0
  %2025 = vmatprep.subr.bf16.mxu0 0
  %2026 = vmatpush2.bf16.msra.mxu0 0
  %2027 = vmatprep.subr.bf16.mxu0 0
  %2028 = vmatpush2.bf16.msra.mxu0 0
  %2029 = vmatprep.mubr.bf16.mxu0 0
  %2030 = vmatmul.mubr.bf16.gmra.mxu0 %v1931
  %v2031 = vpop.f32.mrf.mxu0
  %v2032 = vadd.f32 0.0, %v2031
  %v2033 = vpop.f32.mrf.mxu0
  %v2034 = vpop.f32.mrf.mxu0
  %v2035 = vadd.f32 0.0, %v2034
  %v2036 = vpop.f32.mrf.mxu0
  %2037 = vmatprep.mubr.bf16.mxu0 0
  %2038 = vmatmul.mubr.bf16.gmra.mxu0 %v1933
  %v2039 = vpop.f32.mrf.mxu0
  %v2040 = vadd.f32 0.0, %v2039
  %v2041 = vpop.f32.mrf.mxu0
  %v2042 = vpop.f32.mrf.mxu0
  %v2043 = vadd.f32 0.0, %v2042
  %v2044 = vpop.f32.mrf.mxu0
  %2045 = vmatprep.mubr.bf16.mxu0 0
  %2046 = vmatmul.mubr.bf16.gmra.mxu0 %v1935
  %v2047 = vpop.f32.mrf.mxu0
  %v2048 = vadd.f32 0.0, %v2047
  %v2049 = vpop.f32.mrf.mxu0
  %v2050 = vpop.f32.mrf.mxu0
  %v2051 = vadd.f32 0.0, %v2050
  %v2052 = vpop.f32.mrf.mxu0
  %2053 = vmatprep.mubr.bf16.mxu0 0
  %2054 = vmatmul.mubr.bf16.gmra.mxu0 %v1937
  %v2055 = vpop.f32.mrf.mxu0
  %v2056 = vadd.f32 0.0, %v2055
  %v2057 = vpop.f32.mrf.mxu0
  %v2058 = vpop.f32.mrf.mxu0
  %v2059 = vadd.f32 0.0, %v2058
  %v2060 = vpop.f32.mrf.mxu0
  %2061 = vmatprep.mubr.bf16.mxu0 0
  %2062 = vmatmul.mubr.bf16.gmra.mxu0 %v1939
  %v2063 = vpop.f32.mrf.mxu0
  %v2064 = vadd.f32 0.0, %v2063
  %v2065 = vpop.f32.mrf.mxu0
  %v2066 = vpop.f32.mrf.mxu0
  %v2067 = vadd.f32 0.0, %v2066
  %v2068 = vpop.f32.mrf.mxu0
  %2069 = vmatprep.mubr.bf16.mxu0 0
  %2070 = vmatmul.mubr.bf16.gmra.mxu0 %v1941
  %v2071 = vpop.f32.mrf.mxu0
  %v2072 = vadd.f32 0.0, %v2071
  %v2073 = vpop.f32.mrf.mxu0
  %v2074 = vpop.f32.mrf.mxu0
  %v2075 = vadd.f32 0.0, %v2074
  %v2076 = vpop.f32.mrf.mxu0
  %2077 = vmatprep.mubr.bf16.mxu0 0
  %2078 = vmatmul.mubr.bf16.gmra.mxu0 %v1940
  %v2079 = vpop.f32.mrf.mxu0
  %v2080 = vadd.f32 0.0, %v2079
  %v2081 = vpop.f32.mrf.mxu0
  %v2082 = vpop.f32.mrf.mxu0
  %v2083 = vpop.f32.mrf.mxu0
  %2084 = vdwg.mxu0
  %v2085 = vadd.f32 %v1898, %v2032
  %v2086 = vadd.f32 %v1899, %v2035
  %v2087 = vadd.f32 %v1900, %v2040
  %v2088 = vadd.f32 %v1901, %v2043
  %v2089 = vadd.f32 %v1902, %v2048
  %v2090 = vadd.f32 %v1903, %v2051
  %v2091 = vadd.f32 %v1904, %v2056
  %v2092 = vadd.f32 %v1905, %v2059
  %v2093 = vadd.f32 %v1906, %v2064
  %v2094 = vadd.f32 %v1907, %v2067
  %v2095 = vadd.f32 %v1908, %v2072
  %v2096 = vadd.f32 %v1909, %v2075
  %v2097 = vadd.f32 %v1910, %v2080
  %v2098 = vpack.c.bf16 %v904, %v903
  %s2099 = scalar_lea.vmem %s2, 384
  %v2100 = vld [vmem:[%s2099] sm:$0xf]
  %v2101 = vld [vmem:[%s2099 + $0x4] sm:$0xf]
  %v2102 = vld [vmem:[%s2099 + $0x8] sm:$0xf]
  %v2103 = vld [vmem:[%s2099 + $0xc] sm:$0xf]
  %v2104 = vld [vmem:[%s2099 + $0x10] sm:$0xf]
  %v2105 = vld [vmem:[%s2099 + $0x14] sm:$0xf]
  %v2106 = vld [vmem:[%s2099 + $0x18] sm:$0xf]
  %v2107 = vld [vmem:[%s2099 + $0x1c] sm:$0xf]
  %v2108 = vld [vmem:[%s2099 + $0x20] sm:$0xf]
  %v2109 = vld [vmem:[%s2099 + $0x24] sm:$0xf]
  %v2110 = vld [vmem:[%s2099 + $0x28] sm:$0xf]
  %v2111 = vld [vmem:[%s2099 + $0x2c] sm:$0xf]
  %v2112 = vld [vmem:[%s2099 + $0x30] sm:$0xf]
  %v2113 = vld [vmem:[%s2099 + $0x34] sm:$0xf]
  %v2114 = vld [vmem:[%s2099 + $0x38] sm:$0xf]
  %v2115 = vld [vmem:[%s2099 + $0x3c] sm:$0xf]
  %v2117 = vrot.slane %v906, 2
  %v2118 = vrot.slane %v907, 2
  %v2119 = vsel %vm1928, %v2117, %v2118
  %v2120 = vrot.slane %v908, 2
  %v2121 = vsel %vm1928, %v2118, %v2120
  %v2122 = vrot.slane %v909, 2
  %v2123 = vsel %vm1928, %v2120, %v2122
  %v2124 = vrot.slane %v910, 2
  %v2125 = vsel %vm1928, %v2122, %v2124
  %v2126 = vrot.slane %v928, 2
  %v2127 = vsel %vm1928, %v2124, %v2126
  %v2128 = vrot.slane %v2098, 2
  %v2129 = vsel %vm1928, %v2126, %v2128
  %v2153 = vunpack.c.l.b16 %v2100
  %v2154 = vunpack.c.l.b16 %v2101
  %v2155 = vunpack.c.l.b16 %v2102
  %v2156 = vunpack.c.l.b16 %v2103
  %v2157 = vunpack.c.l.b16 %v2104
  %v2158 = vunpack.c.l.b16 %v2105
  %v2159 = vunpack.c.l.b16 %v2106
  %v2160 = vunpack.c.l.b16 %v2107
  %v2161 = vunpack.c.l.b16 %v2108
  %v2162 = vunpack.c.l.b16 %v2109
  %v2163 = vunpack.c.l.b16 %v2110
  %v2164 = vunpack.c.l.b16 %v2111
  %v2165 = vunpack.c.l.b16 %v2112
  %v2166 = vunpack.c.l.b16 %v2113
  %v2167 = vunpack.c.l.b16 %v2114
  %v2168 = vunpack.c.l.b16 %v2115
  %v2169 = vpack.c.b16 %v2154, %v2153
  %v2170 = vpack.c.b16 %v2156, %v2155
  %v2171 = vpack.c.b16 %v2158, %v2157
  %v2172 = vpack.c.b16 %v2160, %v2159
  %v2173 = vpack.c.b16 %v2162, %v2161
  %v2174 = vpack.c.b16 %v2164, %v2163
  %v2175 = vpack.c.b16 %v2166, %v2165
  %v2176 = vpack.c.b16 %v2168, %v2167
  %2185 = vmatprep.subr.bf16.mxu0 0
  %2186 = vmatpush1.bf16.msra.mxu0 %v2176
  %2187 = vmatprep.subr.bf16.mxu0 0
  %2188 = vmatpush1.bf16.msra.mxu0 %v2175
  %2189 = vmatprep.subr.bf16.mxu0 0
  %2190 = vmatpush1.bf16.msra.mxu0 %v2174
  %2191 = vmatprep.subr.bf16.mxu0 0
  %2192 = vmatpush1.bf16.msra.mxu0 %v2173
  %2193 = vmatprep.subr.bf16.mxu0 0
  %2194 = vmatpush1.bf16.msra.mxu0 %v2172
  %2195 = vmatprep.subr.bf16.mxu0 0
  %2196 = vmatpush1.bf16.msra.mxu0 %v2171
  %2197 = vmatprep.subr.bf16.mxu0 0
  %2198 = vmatpush1.bf16.msra.mxu0 %v2170
  %2199 = vmatprep.subr.bf16.mxu0 0
  %2200 = vmatpush1.bf16.msra.mxu0 %v2169
  %2201 = vmatprep.subr.bf16.mxu0 0
  %2202 = vmatpush2.bf16.msra.mxu0 0
  %2203 = vmatprep.subr.bf16.mxu0 0
  %2204 = vmatpush2.bf16.msra.mxu0 0
  %2205 = vmatprep.subr.bf16.mxu0 0
  %2206 = vmatpush2.bf16.msra.mxu0 0
  %2207 = vmatprep.subr.bf16.mxu0 0
  %2208 = vmatpush2.bf16.msra.mxu0 0
  %2209 = vmatprep.subr.bf16.mxu0 0
  %2210 = vmatpush2.bf16.msra.mxu0 0
  %2211 = vmatprep.subr.bf16.mxu0 0
  %2212 = vmatpush2.bf16.msra.mxu0 0
  %2213 = vmatprep.subr.bf16.mxu0 0
  %2214 = vmatpush2.bf16.msra.mxu0 0
  %2215 = vmatprep.subr.bf16.mxu0 0
  %2216 = vmatpush2.bf16.msra.mxu0 0
  %2217 = vmatprep.mubr.bf16.mxu0 0
  %2218 = vmatmul.mubr.bf16.gmra.mxu0 %v2119
  %v2219 = vpop.f32.mrf.mxu0
  %v2220 = vadd.f32 0.0, %v2219
  %v2221 = vpop.f32.mrf.mxu0
  %v2222 = vpop.f32.mrf.mxu0
  %v2223 = vadd.f32 0.0, %v2222
  %v2224 = vpop.f32.mrf.mxu0
  %2225 = vmatprep.mubr.bf16.mxu0 0
  %2226 = vmatmul.mubr.bf16.gmra.mxu0 %v2121
  %v2227 = vpop.f32.mrf.mxu0
  %v2228 = vadd.f32 0.0, %v2227
  %v2229 = vpop.f32.mrf.mxu0
  %v2230 = vpop.f32.mrf.mxu0
  %v2231 = vadd.f32 0.0, %v2230
  %v2232 = vpop.f32.mrf.mxu0
  %2233 = vmatprep.mubr.bf16.mxu0 0
  %2234 = vmatmul.mubr.bf16.gmra.mxu0 %v2123
  %v2235 = vpop.f32.mrf.mxu0
  %v2236 = vadd.f32 0.0, %v2235
  %v2237 = vpop.f32.mrf.mxu0
  %v2238 = vpop.f32.mrf.mxu0
  %v2239 = vadd.f32 0.0, %v2238
  %v2240 = vpop.f32.mrf.mxu0
  %2241 = vmatprep.mubr.bf16.mxu0 0
  %2242 = vmatmul.mubr.bf16.gmra.mxu0 %v2125
  %v2243 = vpop.f32.mrf.mxu0
  %v2244 = vadd.f32 0.0, %v2243
  %v2245 = vpop.f32.mrf.mxu0
  %v2246 = vpop.f32.mrf.mxu0
  %v2247 = vadd.f32 0.0, %v2246
  %v2248 = vpop.f32.mrf.mxu0
  %2249 = vmatprep.mubr.bf16.mxu0 0
  %2250 = vmatmul.mubr.bf16.gmra.mxu0 %v2127
  %v2251 = vpop.f32.mrf.mxu0
  %v2252 = vadd.f32 0.0, %v2251
  %v2253 = vpop.f32.mrf.mxu0
  %v2254 = vpop.f32.mrf.mxu0
  %v2255 = vadd.f32 0.0, %v2254
  %v2256 = vpop.f32.mrf.mxu0
  %2257 = vmatprep.mubr.bf16.mxu0 0
  %2258 = vmatmul.mubr.bf16.gmra.mxu0 %v2129
  %v2259 = vpop.f32.mrf.mxu0
  %v2260 = vadd.f32 0.0, %v2259
  %v2261 = vpop.f32.mrf.mxu0
  %v2262 = vpop.f32.mrf.mxu0
  %v2263 = vadd.f32 0.0, %v2262
  %v2264 = vpop.f32.mrf.mxu0
  %2265 = vmatprep.mubr.bf16.mxu0 0
  %2266 = vmatmul.mubr.bf16.gmra.mxu0 %v2128
  %v2267 = vpop.f32.mrf.mxu0
  %v2268 = vadd.f32 0.0, %v2267
  %v2269 = vpop.f32.mrf.mxu0
  %v2270 = vpop.f32.mrf.mxu0
  %v2271 = vpop.f32.mrf.mxu0
  %2272 = vdwg.mxu0
  %v2273 = vadd.f32 %v2085, %v2220
  %v2274 = vadd.f32 %v2086, %v2223
  %v2275 = vadd.f32 %v2087, %v2228
  %v2276 = vadd.f32 %v2088, %v2231
  %v2277 = vadd.f32 %v2089, %v2236
  %v2278 = vadd.f32 %v2090, %v2239
  %v2279 = vadd.f32 %v2091, %v2244
  %v2280 = vadd.f32 %v2092, %v2247
  %v2281 = vadd.f32 %v2093, %v2252
  %v2282 = vadd.f32 %v2094, %v2255
  %v2283 = vadd.f32 %v2095, %v2260
  %v2284 = vadd.f32 %v2096, %v2263
  %v2285 = vadd.f32 %v2097, %v2268
  %s2286 = scalar_lea.vmem %s2, 448
  %v2287 = vld [vmem:[%s2286] sm:$0xf]
  %v2288 = vld [vmem:[%s2286 + $0x4] sm:$0xf]
  %v2289 = vld [vmem:[%s2286 + $0x8] sm:$0xf]
  %v2290 = vld [vmem:[%s2286 + $0xc] sm:$0xf]
  %v2291 = vld [vmem:[%s2286 + $0x10] sm:$0xf]
  %v2292 = vld [vmem:[%s2286 + $0x14] sm:$0xf]
  %v2293 = vld [vmem:[%s2286 + $0x18] sm:$0xf]
  %v2294 = vld [vmem:[%s2286 + $0x1c] sm:$0xf]
  %v2295 = vld [vmem:[%s2286 + $0x20] sm:$0xf]
  %v2296 = vld [vmem:[%s2286 + $0x24] sm:$0xf]
  %v2297 = vld [vmem:[%s2286 + $0x28] sm:$0xf]
  %v2298 = vld [vmem:[%s2286 + $0x2c] sm:$0xf]
  %v2299 = vld [vmem:[%s2286 + $0x30] sm:$0xf]
  %v2300 = vld [vmem:[%s2286 + $0x34] sm:$0xf]
  %v2301 = vld [vmem:[%s2286 + $0x38] sm:$0xf]
  %v2302 = vld [vmem:[%s2286 + $0x3c] sm:$0xf]
  %vm2303 = vsmask.f32 5376
  %v2304 = vrot.slane %v959, 2
  %v2305 = vrot.slane %v955, 3
  %v2306 = vor.u32 %v2304, %v2305
  %v2307 = vrot.slane %v967, 2
  %v2308 = vrot.slane %v963, 3
  %v2309 = vor.u32 %v2307, %v2308
  %v2310 = vsel %vm2303, %v2306, %v2309
  %v2311 = vrot.slane %v975, 2
  %v2312 = vrot.slane %v971, 3
  %v2313 = vor.u32 %v2311, %v2312
  %v2314 = vsel %vm2303, %v2309, %v2313
  %v2315 = vrot.slane %v983, 2
  %v2316 = vrot.slane %v979, 3
  %v2317 = vor.u32 %v2315, %v2316
  %v2318 = vsel %vm2303, %v2313, %v2317
  %v2319 = vrot.slane %v991, 2
  %v2320 = vrot.slane %v987, 3
  %v2321 = vor.u32 %v2319, %v2320
  %v2322 = vsel %vm2303, %v2317, %v2321
  %v2323 = vrot.slane %v999, 2
  %v2324 = vrot.slane %v995, 3
  %v2325 = vor.u32 %v2323, %v2324
  %v2326 = vsel %vm2303, %v2321, %v2325
  %v2328 = vshrl.u32 %v2098, 16
  %v2330 = vrot.slane %v2328, 2
  %v2331 = vshll.u32 %v2098, 16
  %v2333 = vrot.slane %v2331, 3
  %v2334 = vor.u32 %v2330, %v2333
  %v2335 = vsel %vm2303, %v2325, %v2334
  %v2359 = vunpack.c.l.b16 %v2287
  %v2360 = vunpack.c.l.b16 %v2288
  %v2361 = vunpack.c.l.b16 %v2289
  %v2362 = vunpack.c.l.b16 %v2290
  %v2363 = vunpack.c.l.b16 %v2291
  %v2364 = vunpack.c.l.b16 %v2292
  %v2365 = vunpack.c.l.b16 %v2293
  %v2366 = vunpack.c.l.b16 %v2294
  %v2367 = vunpack.c.l.b16 %v2295
  %v2368 = vunpack.c.l.b16 %v2296
  %v2369 = vunpack.c.l.b16 %v2297
  %v2370 = vunpack.c.l.b16 %v2298
  %v2371 = vunpack.c.l.b16 %v2299
  %v2372 = vunpack.c.l.b16 %v2300
  %v2373 = vunpack.c.l.b16 %v2301
  %v2374 = vunpack.c.l.b16 %v2302
  %v2375 = vpack.c.b16 %v2360, %v2359
  %v2376 = vpack.c.b16 %v2362, %v2361
  %v2377 = vpack.c.b16 %v2364, %v2363
  %v2378 = vpack.c.b16 %v2366, %v2365
  %v2379 = vpack.c.b16 %v2368, %v2367
  %v2380 = vpack.c.b16 %v2370, %v2369
  %v2381 = vpack.c.b16 %v2372, %v2371
  %v2382 = vpack.c.b16 %v2374, %v2373
  %2391 = vmatprep.subr.bf16.mxu0 0
  %2392 = vmatpush1.bf16.msra.mxu0 %v2382
  %2393 = vmatprep.subr.bf16.mxu0 0
  %2394 = vmatpush1.bf16.msra.mxu0 %v2381
  %2395 = vmatprep.subr.bf16.mxu0 0
  %2396 = vmatpush1.bf16.msra.mxu0 %v2380
  %2397 = vmatprep.subr.bf16.mxu0 0
  %2398 = vmatpush1.bf16.msra.mxu0 %v2379
  %2399 = vmatprep.subr.bf16.mxu0 0
  %2400 = vmatpush1.bf16.msra.mxu0 %v2378
  %2401 = vmatprep.subr.bf16.mxu0 0
  %2402 = vmatpush1.bf16.msra.mxu0 %v2377
  %2403 = vmatprep.subr.bf16.mxu0 0
  %2404 = vmatpush1.bf16.msra.mxu0 %v2376
  %2405 = vmatprep.subr.bf16.mxu0 0
  %2406 = vmatpush1.bf16.msra.mxu0 %v2375
  %2407 = vmatprep.subr.bf16.mxu0 0
  %2408 = vmatpush2.bf16.msra.mxu0 0
  %2409 = vmatprep.subr.bf16.mxu0 0
  %2410 = vmatpush2.bf16.msra.mxu0 0
  %2411 = vmatprep.subr.bf16.mxu0 0
  %2412 = vmatpush2.bf16.msra.mxu0 0
  %2413 = vmatprep.subr.bf16.mxu0 0
  %2414 = vmatpush2.bf16.msra.mxu0 0
  %2415 = vmatprep.subr.bf16.mxu0 0
  %2416 = vmatpush2.bf16.msra.mxu0 0
  %2417 = vmatprep.subr.bf16.mxu0 0
  %2418 = vmatpush2.bf16.msra.mxu0 0
  %2419 = vmatprep.subr.bf16.mxu0 0
  %2420 = vmatpush2.bf16.msra.mxu0 0
  %2421 = vmatprep.subr.bf16.mxu0 0
  %2422 = vmatpush2.bf16.msra.mxu0 0
  %2423 = vmatprep.mubr.bf16.mxu0 0
  %2424 = vmatmul.mubr.bf16.gmra.mxu0 %v2310
  %v2425 = vpop.f32.mrf.mxu0
  %v2426 = vadd.f32 0.0, %v2425
  %v2427 = vpop.f32.mrf.mxu0
  %v2428 = vpop.f32.mrf.mxu0
  %v2429 = vadd.f32 0.0, %v2428
  %v2430 = vpop.f32.mrf.mxu0
  %2431 = vmatprep.mubr.bf16.mxu0 0
  %2432 = vmatmul.mubr.bf16.gmra.mxu0 %v2314
  %v2433 = vpop.f32.mrf.mxu0
  %v2434 = vadd.f32 0.0, %v2433
  %v2435 = vpop.f32.mrf.mxu0
  %v2436 = vpop.f32.mrf.mxu0
  %v2437 = vadd.f32 0.0, %v2436
  %v2438 = vpop.f32.mrf.mxu0
  %2439 = vmatprep.mubr.bf16.mxu0 0
  %2440 = vmatmul.mubr.bf16.gmra.mxu0 %v2318
  %v2441 = vpop.f32.mrf.mxu0
  %v2442 = vadd.f32 0.0, %v2441
  %v2443 = vpop.f32.mrf.mxu0
  %v2444 = vpop.f32.mrf.mxu0
  %v2445 = vadd.f32 0.0, %v2444
  %v2446 = vpop.f32.mrf.mxu0
  %2447 = vmatprep.mubr.bf16.mxu0 0
  %2448 = vmatmul.mubr.bf16.gmra.mxu0 %v2322
  %v2449 = vpop.f32.mrf.mxu0
  %v2450 = vadd.f32 0.0, %v2449
  %v2451 = vpop.f32.mrf.mxu0
  %v2452 = vpop.f32.mrf.mxu0
  %v2453 = vadd.f32 0.0, %v2452
  %v2454 = vpop.f32.mrf.mxu0
  %2455 = vmatprep.mubr.bf16.mxu0 0
  %2456 = vmatmul.mubr.bf16.gmra.mxu0 %v2326
  %v2457 = vpop.f32.mrf.mxu0
  %v2458 = vadd.f32 0.0, %v2457
  %v2459 = vpop.f32.mrf.mxu0
  %v2460 = vpop.f32.mrf.mxu0
  %v2461 = vadd.f32 0.0, %v2460
  %v2462 = vpop.f32.mrf.mxu0
  %2463 = vmatprep.mubr.bf16.mxu0 0
  %2464 = vmatmul.mubr.bf16.gmra.mxu0 %v2335
  %v2465 = vpop.f32.mrf.mxu0
  %v2466 = vadd.f32 0.0, %v2465
  %v2467 = vpop.f32.mrf.mxu0
  %v2468 = vpop.f32.mrf.mxu0
  %v2469 = vadd.f32 0.0, %v2468
  %v2470 = vpop.f32.mrf.mxu0
  %2471 = vmatprep.mubr.bf16.mxu0 0
  %2472 = vmatmul.mubr.bf16.gmra.mxu0 %v2334
  %v2473 = vpop.f32.mrf.mxu0
  %v2474 = vadd.f32 0.0, %v2473
  %v2475 = vpop.f32.mrf.mxu0
  %v2476 = vpop.f32.mrf.mxu0
  %v2477 = vpop.f32.mrf.mxu0
  %2478 = vdwg.mxu0
  %v2479 = vadd.f32 %v2273, %v2426
  %v2480 = vadd.f32 %v2274, %v2429
  %v2481 = vadd.f32 %v2275, %v2434
  %v2482 = vadd.f32 %v2276, %v2437
  %v2483 = vadd.f32 %v2277, %v2442
  %v2484 = vadd.f32 %v2278, %v2445
  %v2485 = vadd.f32 %v2279, %v2450
  %v2486 = vadd.f32 %v2280, %v2453
  %v2487 = vadd.f32 %v2281, %v2458
  %v2488 = vadd.f32 %v2282, %v2461
  %v2489 = vadd.f32 %v2283, %v2466
  %v2490 = vadd.f32 %v2284, %v2469
  %v2491 = vadd.f32 %v2285, %v2474
  %s2492 = scalar_lea.vmem %s2, 512
  %v2493 = vld [vmem:[%s2492] sm:$0xf]
  %v2494 = vld [vmem:[%s2492 + $0x4] sm:$0xf]
  %v2495 = vld [vmem:[%s2492 + $0x8] sm:$0xf]
  %v2496 = vld [vmem:[%s2492 + $0xc] sm:$0xf]
  %v2497 = vld [vmem:[%s2492 + $0x10] sm:$0xf]
  %v2498 = vld [vmem:[%s2492 + $0x14] sm:$0xf]
  %v2499 = vld [vmem:[%s2492 + $0x18] sm:$0xf]
  %v2500 = vld [vmem:[%s2492 + $0x1c] sm:$0xf]
  %v2501 = vld [vmem:[%s2492 + $0x20] sm:$0xf]
  %v2502 = vld [vmem:[%s2492 + $0x24] sm:$0xf]
  %v2503 = vld [vmem:[%s2492 + $0x28] sm:$0xf]
  %v2504 = vld [vmem:[%s2492 + $0x2c] sm:$0xf]
  %v2505 = vld [vmem:[%s2492 + $0x30] sm:$0xf]
  %v2506 = vld [vmem:[%s2492 + $0x34] sm:$0xf]
  %v2507 = vld [vmem:[%s2492 + $0x38] sm:$0xf]
  %v2508 = vld [vmem:[%s2492 + $0x3c] sm:$0xf]
  %vm2509 = vcmask 1044480
  %v2510 = vrot.slane %v906, 3
  %v2511 = vrot.slane %v907, 3
  %v2512 = vsel %vm2509, %v2510, %v2511
  %v2513 = vrot.slane %v908, 3
  %v2514 = vsel %vm2509, %v2511, %v2513
  %v2515 = vrot.slane %v909, 3
  %v2516 = vsel %vm2509, %v2513, %v2515
  %v2517 = vrot.slane %v910, 3
  %v2518 = vsel %vm2509, %v2515, %v2517
  %v2519 = vrot.slane %v928, 3
  %v2520 = vsel %vm2509, %v2517, %v2519
  %v2521 = vrot.slane %v2098, 3
  %v2522 = vsel %vm2509, %v2519, %v2521
  %v2546 = vunpack.c.l.b16 %v2493
  %v2547 = vunpack.c.l.b16 %v2494
  %v2548 = vunpack.c.l.b16 %v2495
  %v2549 = vunpack.c.l.b16 %v2496
  %v2550 = vunpack.c.l.b16 %v2497
  %v2551 = vunpack.c.l.b16 %v2498
  %v2552 = vunpack.c.l.b16 %v2499
  %v2553 = vunpack.c.l.b16 %v2500
  %v2554 = vunpack.c.l.b16 %v2501
  %v2555 = vunpack.c.l.b16 %v2502
  %v2556 = vunpack.c.l.b16 %v2503
  %v2557 = vunpack.c.l.b16 %v2504
  %v2558 = vunpack.c.l.b16 %v2505
  %v2559 = vunpack.c.l.b16 %v2506
  %v2560 = vunpack.c.l.b16 %v2507
  %v2561 = vunpack.c.l.b16 %v2508
  %v2562 = vpack.c.b16 %v2547, %v2546
  %v2563 = vpack.c.b16 %v2549, %v2548
  %v2564 = vpack.c.b16 %v2551, %v2550
  %v2565 = vpack.c.b16 %v2553, %v2552
  %v2566 = vpack.c.b16 %v2555, %v2554
  %v2567 = vpack.c.b16 %v2557, %v2556
  %v2568 = vpack.c.b16 %v2559, %v2558
  %v2569 = vpack.c.b16 %v2561, %v2560
  %2578 = vmatprep.subr.bf16.mxu0 0
  %2579 = vmatpush1.bf16.msra.mxu0 %v2569
  %2580 = vmatprep.subr.bf16.mxu0 0
  %2581 = vmatpush1.bf16.msra.mxu0 %v2568
  %2582 = vmatprep.subr.bf16.mxu0 0
  %2583 = vmatpush1.bf16.msra.mxu0 %v2567
  %2584 = vmatprep.subr.bf16.mxu0 0
  %2585 = vmatpush1.bf16.msra.mxu0 %v2566
  %2586 = vmatprep.subr.bf16.mxu0 0
  %2587 = vmatpush1.bf16.msra.mxu0 %v2565
  %2588 = vmatprep.subr.bf16.mxu0 0
  %2589 = vmatpush1.bf16.msra.mxu0 %v2564
  %2590 = vmatprep.subr.bf16.mxu0 0
  %2591 = vmatpush1.bf16.msra.mxu0 %v2563
  %2592 = vmatprep.subr.bf16.mxu0 0
  %2593 = vmatpush1.bf16.msra.mxu0 %v2562
  %2594 = vmatprep.subr.bf16.mxu0 0
  %2595 = vmatpush2.bf16.msra.mxu0 0
  %2596 = vmatprep.subr.bf16.mxu0 0
  %2597 = vmatpush2.bf16.msra.mxu0 0
  %2598 = vmatprep.subr.bf16.mxu0 0
  %2599 = vmatpush2.bf16.msra.mxu0 0
  %2600 = vmatprep.subr.bf16.mxu0 0
  %2601 = vmatpush2.bf16.msra.mxu0 0
  %2602 = vmatprep.subr.bf16.mxu0 0
  %2603 = vmatpush2.bf16.msra.mxu0 0
  %2604 = vmatprep.subr.bf16.mxu0 0
  %2605 = vmatpush2.bf16.msra.mxu0 0
  %2606 = vmatprep.subr.bf16.mxu0 0
  %2607 = vmatpush2.bf16.msra.mxu0 0
  %2608 = vmatprep.subr.bf16.mxu0 0
  %2609 = vmatpush2.bf16.msra.mxu0 0
  %2610 = vmatprep.mubr.bf16.mxu0 0
  %2611 = vmatmul.mubr.bf16.gmra.mxu0 %v2512
  %v2612 = vpop.f32.mrf.mxu0
  %v2613 = vadd.f32 0.0, %v2612
  %v2614 = vpop.f32.mrf.mxu0
  %v2615 = vpop.f32.mrf.mxu0
  %v2616 = vadd.f32 0.0, %v2615
  %v2617 = vpop.f32.mrf.mxu0
  %2618 = vmatprep.mubr.bf16.mxu0 0
  %2619 = vmatmul.mubr.bf16.gmra.mxu0 %v2514
  %v2620 = vpop.f32.mrf.mxu0
  %v2621 = vadd.f32 0.0, %v2620
  %v2622 = vpop.f32.mrf.mxu0
  %v2623 = vpop.f32.mrf.mxu0
  %v2624 = vadd.f32 0.0, %v2623
  %v2625 = vpop.f32.mrf.mxu0
  %2626 = vmatprep.mubr.bf16.mxu0 0
  %2627 = vmatmul.mubr.bf16.gmra.mxu0 %v2516
  %v2628 = vpop.f32.mrf.mxu0
  %v2629 = vadd.f32 0.0, %v2628
  %v2630 = vpop.f32.mrf.mxu0
  %v2631 = vpop.f32.mrf.mxu0
  %v2632 = vadd.f32 0.0, %v2631
  %v2633 = vpop.f32.mrf.mxu0
  %2634 = vmatprep.mubr.bf16.mxu0 0
  %2635 = vmatmul.mubr.bf16.gmra.mxu0 %v2518
  %v2636 = vpop.f32.mrf.mxu0
  %v2637 = vadd.f32 0.0, %v2636
  %v2638 = vpop.f32.mrf.mxu0
  %v2639 = vpop.f32.mrf.mxu0
  %v2640 = vadd.f32 0.0, %v2639
  %v2641 = vpop.f32.mrf.mxu0
  %2642 = vmatprep.mubr.bf16.mxu0 0
  %2643 = vmatmul.mubr.bf16.gmra.mxu0 %v2520
  %v2644 = vpop.f32.mrf.mxu0
  %v2645 = vadd.f32 0.0, %v2644
  %v2646 = vpop.f32.mrf.mxu0
  %v2647 = vpop.f32.mrf.mxu0
  %v2648 = vadd.f32 0.0, %v2647
  %v2649 = vpop.f32.mrf.mxu0
  %2650 = vmatprep.mubr.bf16.mxu0 0
  %2651 = vmatmul.mubr.bf16.gmra.mxu0 %v2522
  %v2652 = vpop.f32.mrf.mxu0
  %v2653 = vadd.f32 0.0, %v2652
  %v2654 = vpop.f32.mrf.mxu0
  %v2655 = vpop.f32.mrf.mxu0
  %v2656 = vadd.f32 0.0, %v2655
  %v2657 = vpop.f32.mrf.mxu0
  %2658 = vmatprep.mubr.bf16.mxu0 0
  %2659 = vmatmul.mubr.bf16.gmra.mxu0 %v2521
  %v2660 = vpop.f32.mrf.mxu0
  %v2661 = vadd.f32 0.0, %v2660
  %v2662 = vpop.f32.mrf.mxu0
  %v2663 = vpop.f32.mrf.mxu0
  %v2664 = vpop.f32.mrf.mxu0
  %2665 = vdwg.mxu0
  %v2666 = vadd.f32 %v2479, %v2613
  %v2667 = vadd.f32 %v2480, %v2616
  %v2668 = vadd.f32 %v2481, %v2621
  %v2669 = vadd.f32 %v2482, %v2624
  %v2670 = vadd.f32 %v2483, %v2629
  %v2671 = vadd.f32 %v2484, %v2632
  %v2672 = vadd.f32 %v2485, %v2637
  %v2673 = vadd.f32 %v2486, %v2640
  %v2674 = vadd.f32 %v2487, %v2645
  %v2675 = vadd.f32 %v2488, %v2648
  %v2676 = vadd.f32 %v2489, %v2653
  %v2677 = vadd.f32 %v2490, %v2656
  %v2678 = vadd.f32 %v2491, %v2661
  %v2679 = vld [vmem:[%s3] sm:$0x1]
  %v2681 = vlaneseq
  %v2682 = vshrl.u32 %v2681, 7
  %v2683 = vsub.s32 0, %v2682
  %v2684 = vrot.slane %v2679, %v2683
  %v2686 = vadd.f32 %v2666, %v2684
  %v2687 = vadd.f32 %v2667, %v2684
  %v2688 = vadd.f32 %v2668, %v2684
  %v2689 = vadd.f32 %v2669, %v2684
  %v2690 = vadd.f32 %v2670, %v2684
  %v2691 = vadd.f32 %v2671, %v2684
  %v2692 = vadd.f32 %v2672, %v2684
  %v2693 = vadd.f32 %v2673, %v2684
  %v2694 = vadd.f32 %v2674, %v2684
  %v2695 = vadd.f32 %v2675, %v2684
  %v2696 = vadd.f32 %v2676, %v2684
  %v2697 = vadd.f32 %v2677, %v2684
  %v2698 = vadd.f32 %v2678, %v2684
  %v2699 = vmul.f32 %v2686, 0.5
  %v2700 = vmul.f32 %v2687, 0.5
  %v2701 = vmul.f32 %v2688, 0.5
  %v2702 = vmul.f32 %v2689, 0.5
  %v2703 = vmul.f32 %v2690, 0.5
  %v2704 = vmul.f32 %v2691, 0.5
  %v2705 = vmul.f32 %v2692, 0.5
  %v2706 = vmul.f32 %v2693, 0.5
  %v2707 = vmul.f32 %v2694, 0.5
  %v2708 = vmul.f32 %v2695, 0.5
  %v2709 = vmul.f32 %v2696, 0.5
  %v2710 = vmul.f32 %v2697, 0.5
  %v2711 = vmul.f32 %v2698, 0.5
  %v2712 = vmul.f32 %v2686, 0.044715
  %v2713 = vmul.f32 %v2687, 0.044715
  %v2714 = vmul.f32 %v2688, 0.044715
  %v2715 = vmul.f32 %v2689, 0.044715
  %v2716 = vmul.f32 %v2690, 0.044715
  %v2717 = vmul.f32 %v2691, 0.044715
  %v2718 = vmul.f32 %v2692, 0.044715
  %v2719 = vmul.f32 %v2693, 0.044715
  %v2720 = vmul.f32 %v2694, 0.044715
  %v2721 = vmul.f32 %v2695, 0.044715
  %v2722 = vmul.f32 %v2696, 0.044715
  %v2723 = vmul.f32 %v2697, 0.044715
  %v2724 = vmul.f32 %v2698, 0.044715
  %v2725 = vmul.f32 %v2712, %v2686
  %v2726 = vmul.f32 %v2713, %v2687
  %v2727 = vmul.f32 %v2714, %v2688
  %v2728 = vmul.f32 %v2715, %v2689
  %v2729 = vmul.f32 %v2716, %v2690
  %v2730 = vmul.f32 %v2717, %v2691
  %v2731 = vmul.f32 %v2718, %v2692
  %v2732 = vmul.f32 %v2719, %v2693
  %v2733 = vmul.f32 %v2720, %v2694
  %v2734 = vmul.f32 %v2721, %v2695
  %v2735 = vmul.f32 %v2722, %v2696
  %v2736 = vmul.f32 %v2723, %v2697
  %v2737 = vmul.f32 %v2724, %v2698
  %v2738 = vmul.f32 %v2725, %v2686
  %v2739 = vmul.f32 %v2726, %v2687
  %v2740 = vmul.f32 %v2727, %v2688
  %v2741 = vmul.f32 %v2728, %v2689
  %v2742 = vmul.f32 %v2729, %v2690
  %v2743 = vmul.f32 %v2730, %v2691
  %v2744 = vmul.f32 %v2731, %v2692
  %v2745 = vmul.f32 %v2732, %v2693
  %v2746 = vmul.f32 %v2733, %v2694
  %v2747 = vmul.f32 %v2734, %v2695
  %v2748 = vmul.f32 %v2735, %v2696
  %v2749 = vmul.f32 %v2736, %v2697
  %v2750 = vmul.f32 %v2737, %v2698
  %v2751 = vadd.f32 %v2686, %v2738
  %v2752 = vadd.f32 %v2687, %v2739
  %v2753 = vadd.f32 %v2688, %v2740
  %v2754 = vadd.f32 %v2689, %v2741
  %v2755 = vadd.f32 %v2690, %v2742
  %v2756 = vadd.f32 %v2691, %v2743
  %v2757 = vadd.f32 %v2692, %v2744
  %v2758 = vadd.f32 %v2693, %v2745
  %v2759 = vadd.f32 %v2694, %v2746
  %v2760 = vadd.f32 %v2695, %v2747
  %v2761 = vadd.f32 %v2696, %v2748
  %v2762 = vadd.f32 %v2697, %v2749
  %v2763 = vadd.f32 %v2698, %v2750
  %v2764 = vmul.f32 %v2751, 0.7978846
  %v2765 = vmul.f32 %v2752, 0.7978846
  %v2766 = vmul.f32 %v2753, 0.7978846
  %v2767 = vmul.f32 %v2754, 0.7978846
  %v2768 = vmul.f32 %v2755, 0.7978846
  %v2769 = vmul.f32 %v2756, 0.7978846
  %v2770 = vmul.f32 %v2757, 0.7978846
  %v2771 = vmul.f32 %v2758, 0.7978846
  %v2772 = vmul.f32 %v2759, 0.7978846
  %v2773 = vmul.f32 %v2760, 0.7978846
  %v2774 = vmul.f32 %v2761, 0.7978846
  %v2775 = vmul.f32 %v2762, 0.7978846
  %v2776 = vmul.f32 %v2763, 0.7978846
  %v2777 = vtanh.pop %v2764
  %v2778 = vtanh.pop %v2765
  %v2779 = vtanh.pop %v2766
  %v2780 = vtanh.pop %v2767
  %v2781 = vtanh.pop %v2768
  %v2782 = vtanh.pop %v2769
  %v2783 = vtanh.pop %v2770
  %v2784 = vtanh.pop %v2771
  %v2785 = vtanh.pop %v2772
  %v2786 = vtanh.pop %v2773
  %v2787 = vtanh.pop %v2774
  %v2788 = vtanh.pop %v2775
  %v2789 = vtanh.pop %v2776
  %v2790 = vadd.f32 %v2777, 1.0
  %v2791 = vadd.f32 %v2778, 1.0
  %v2792 = vadd.f32 %v2779, 1.0
  %v2793 = vadd.f32 %v2780, 1.0
  %v2794 = vadd.f32 %v2781, 1.0
  %v2795 = vadd.f32 %v2782, 1.0
  %v2796 = vadd.f32 %v2783, 1.0
  %v2797 = vadd.f32 %v2784, 1.0
  %v2798 = vadd.f32 %v2785, 1.0
  %v2799 = vadd.f32 %v2786, 1.0
  %v2800 = vadd.f32 %v2787, 1.0
  %v2801 = vadd.f32 %v2788, 1.0
  %v2802 = vadd.f32 %v2789, 1.0
  %v2803 = vmul.f32 %v2699, %v2790
  %v2804 = vmul.f32 %v2700, %v2791
  %v2805 = vmul.f32 %v2701, %v2792
  %v2806 = vmul.f32 %v2702, %v2793
  %v2807 = vmul.f32 %v2703, %v2794
  %v2808 = vmul.f32 %v2704, %v2795
  %v2809 = vmul.f32 %v2705, %v2796
  %v2810 = vmul.f32 %v2706, %v2797
  %v2811 = vmul.f32 %v2707, %v2798
  %v2812 = vmul.f32 %v2708, %v2799
  %v2813 = vmul.f32 %v2709, %v2800
  %v2814 = vmul.f32 %v2710, %v2801
  %v2815 = vmul.f32 %v2711, %v2802
  %v2816 = vld [vmem:[%s4] sm:$0xf]
  %v2817 = vld [vmem:[%s4 + $0x4] sm:$0xf]
  %v2818 = vpack.c.bf16 %v2804, %v2803
  %v2819 = vpack.c.bf16 %v2806, %v2805
  %v2820 = vpack.c.bf16 %v2808, %v2807
  %v2821 = vpack.c.bf16 %v2810, %v2809
  %v2822 = vpack.c.bf16 %v2812, %v2811
  %v2823 = vpack.c.bf16 %v2814, %v2813
  %v2824 = vpack.c.bf16 %v2815, %v2815
  %v2827 = vunpack.c.l.b16 %v2816
  %v2828 = vunpack.c.l.b16 %v2817
  %v2829 = vpack.c.b16 %v2828, %v2827
  %vm2830 = vcmask 850944
  %v2832 = vsel %vm2830, %v2829, 0
  %vm2834 = vcmask 1043456
  %v2836 = vsel %vm2834, %v2824, 0
  %2838 = vmatprep.subr.bf16.mxu0 0
  %2839 = vmatpush1.bf16.msra.mxu0 0
  %2840 = vmatprep.subr.bf16.mxu0 0
  %2841 = vmatpush1.bf16.msra.mxu0 %v2836
  %2842 = vmatprep.subr.bf16.mxu0 0
  %2843 = vmatpush1.bf16.msra.mxu0 %v2823
  %2844 = vmatprep.subr.bf16.mxu0 0
  %2845 = vmatpush1.bf16.msra.mxu0 %v2822
  %2846 = vmatprep.subr.bf16.mxu0 0
  %2847 = vmatpush1.bf16.msra.mxu0 %v2821
  %2848 = vmatprep.subr.bf16.mxu0 0
  %2849 = vmatpush1.bf16.msra.mxu0 %v2820
  %2850 = vmatprep.subr.bf16.mxu0 0
  %2851 = vmatpush1.bf16.msra.mxu0 %v2819
  %2852 = vmatprep.subr.bf16.mxu0 0
  %2853 = vmatpush1.bf16.msra.mxu0 %v2818
  %2854 = vmatprep.subr.bf16.mxu0 0
  %2855 = vmatpush2.bf16.msra.mxu0 0
  %2856 = vmatprep.subr.bf16.mxu0 0
  %2857 = vmatpush2.bf16.msra.mxu0 0
  %2858 = vmatprep.subr.bf16.mxu0 0
  %2859 = vmatpush2.bf16.msra.mxu0 0
  %2860 = vmatprep.subr.bf16.mxu0 0
  %2861 = vmatpush2.bf16.msra.mxu0 0
  %2862 = vmatprep.subr.bf16.mxu0 0
  %2863 = vmatpush2.bf16.msra.mxu0 0
  %2864 = vmatprep.subr.bf16.mxu0 0
  %2865 = vmatpush2.bf16.msra.mxu0 0
  %2866 = vmatprep.subr.bf16.mxu0 0
  %2867 = vmatpush2.bf16.msra.mxu0 0
  %2868 = vmatprep.subr.bf16.mxu0 0
  %2869 = vmatpush2.bf16.msra.mxu0 0
  %2870 = vmatprep.mubr.bf16.mxu0 0
  %2871 = vmatmul.mubr.bf16.gmra.mxu0 %v2832
  %v2872 = vpop.f32.mrf.mxu0
  %v2873 = vadd.f32 0.0, %v2872
  %v2874 = vpop.f32.mrf.mxu0
  %v2875 = vpop.f32.mrf.mxu0
  %v2876 = vadd.f32 0.0, %v2875
  %v2877 = vpop.f32.mrf.mxu0
  %2878 = vdwg.mxu0
  %v2879 = vpack.c.bf16 %v2876, %v2873
  %v2880 = vld [vmem:[%s5] sm:$0xf]
  %v2881 = vld [vmem:[%s5 + $0x4] sm:$0xf]
  %v2882 = vld [vmem:[%s5 + $0x8] sm:$0xf]
  %v2883 = vld [vmem:[%s5 + $0xc] sm:$0xf]
  %v2884 = vld [vmem:[%s5 + $0x10] sm:$0xf]
  %v2885 = vld [vmem:[%s5 + $0x14] sm:$0xf]
  %v2886 = vld [vmem:[%s5 + $0x18] sm:$0xf]
  %v2887 = vld [vmem:[%s5 + $0x1c] sm:$0xf]
  %v2888 = vld [vmem:[%s5 + $0x20] sm:$0xf]
  %v2889 = vld [vmem:[%s5 + $0x24] sm:$0xf]
  %v2890 = vld [vmem:[%s5 + $0x28] sm:$0xf]
  %v2891 = vld [vmem:[%s5 + $0x2c] sm:$0xf]
  %v2892 = vld [vmem:[%s5 + $0x30] sm:$0xf]
  %v2893 = vld [vmem:[%s5 + $0x34] sm:$0xf]
  %v2894 = vld [vmem:[%s5 + $0x38] sm:$0xf]
  %v2895 = vld [vmem:[%s5 + $0x3c] sm:$0xf]
  %v2912 = vunpack.c.l.b16 %v2880
  %v2913 = vunpack.c.l.b16 %v2881
  %v2914 = vunpack.c.l.b16 %v2882
  %v2915 = vunpack.c.l.b16 %v2883
  %v2916 = vunpack.c.l.b16 %v2884
  %v2917 = vunpack.c.l.b16 %v2885
  %v2918 = vunpack.c.l.b16 %v2886
  %v2919 = vunpack.c.l.b16 %v2887
  %v2920 = vunpack.c.l.b16 %v2888
  %v2921 = vunpack.c.l.b16 %v2889
  %v2922 = vunpack.c.l.b16 %v2890
  %v2923 = vunpack.c.l.b16 %v2891
  %v2924 = vunpack.c.l.b16 %v2892
  %v2925 = vunpack.c.l.b16 %v2893
  %v2926 = vunpack.c.l.b16 %v2894
  %v2927 = vunpack.c.l.b16 %v2895
  %v2928 = vpack.c.b16 %v2913, %v2912
  %v2929 = vpack.c.b16 %v2915, %v2914
  %v2930 = vpack.c.b16 %v2917, %v2916
  %v2931 = vpack.c.b16 %v2919, %v2918
  %v2932 = vpack.c.b16 %v2921, %v2920
  %v2933 = vpack.c.b16 %v2923, %v2922
  %v2934 = vpack.c.b16 %v2925, %v2924
  %v2935 = vpack.c.b16 %v2927, %v2926
  %2944 = vmatprep.subr.bf16.mxu0 0
  %2945 = vmatpush1.bf16.msra.mxu0 %v2935
  %2946 = vmatprep.subr.bf16.mxu0 0
  %2947 = vmatpush1.bf16.msra.mxu0 %v2934
  %2948 = vmatprep.subr.bf16.mxu0 0
  %2949 = vmatpush1.bf16.msra.mxu0 %v2933
  %2950 = vmatprep.subr.bf16.mxu0 0
  %2951 = vmatpush1.bf16.msra.mxu0 %v2932
  %2952 = vmatprep.subr.bf16.mxu0 0
  %2953 = vmatpush1.bf16.msra.mxu0 %v2931
  %2954 = vmatprep.subr.bf16.mxu0 0
  %2955 = vmatpush1.bf16.msra.mxu0 %v2930
  %2956 = vmatprep.subr.bf16.mxu0 0
  %2957 = vmatpush1.bf16.msra.mxu0 %v2929
  %2958 = vmatprep.subr.bf16.mxu0 0
  %2959 = vmatpush1.bf16.msra.mxu0 %v2928
  %2960 = vmatprep.subr.bf16.mxu0 0
  %2961 = vmatpush2.bf16.msra.mxu0 0
  %2962 = vmatprep.subr.bf16.mxu0 0
  %2963 = vmatpush2.bf16.msra.mxu0 0
  %2964 = vmatprep.subr.bf16.mxu0 0
  %2965 = vmatpush2.bf16.msra.mxu0 0
  %2966 = vmatprep.subr.bf16.mxu0 0
  %2967 = vmatpush2.bf16.msra.mxu0 0
  %2968 = vmatprep.subr.bf16.mxu0 0
  %2969 = vmatpush2.bf16.msra.mxu0 0
  %2970 = vmatprep.subr.bf16.mxu0 0
  %2971 = vmatpush2.bf16.msra.mxu0 0
  %2972 = vmatprep.subr.bf16.mxu0 0
  %2973 = vmatpush2.bf16.msra.mxu0 0
  %2974 = vmatprep.subr.bf16.mxu0 0
  %2975 = vmatpush2.bf16.msra.mxu0 0
  %2976 = vmatprep.mubr.bf16.mxu0 0
  %2977 = vmatmul.mubr.bf16.gmra.mxu0 %v2879
  %v2978 = vpop.f32.mrf.mxu0
  %v2979 = vadd.f32 0.0, %v2978
  %v2980 = vpop.f32.mrf.mxu0
  %v2981 = vpop.f32.mrf.mxu0
  %v2982 = vadd.f32 0.0, %v2981
  %v2983 = vpop.f32.mrf.mxu0
  %2984 = vdwg.mxu0
  %2985 = vst [vmem:[%s6] sm:$0xff] %v2979
  %2986 = vst [vmem:[%s6 + $0x8] sm:$0xff] %v2982
  // Predicated region
  $region26: #{spatial_stream_forward.1} parent=0 // pred_check
    _
  $region27: #{spatial_stream_forward.1} parent=0 // pred_check_branch
    %2988 = sbr.rel (0) target = $region29
  $region28: #{spatial_stream_forward.1} parent=0 // pred_region
    _
  $region29: #{spatial_stream_forward.1} parent=0 // pred_fallthru
    _
  // Predicated region
  $region30: #{spatial_stream_forward.1} parent=0 // pred_check
    _
  $region31: #{spatial_stream_forward.1} parent=0 // pred_check_branch
    %2990 = sbr.rel (0) target = $region33
  $region32: #{spatial_stream_forward.1} parent=0 // pred_region
    _
  $region33: #{spatial_stream_forward.1} parent=0 // pred_fallthru
    _

</llo_original>
